<compile_context>
chip_gen: v7x
topology: tpu7x:2x2x1
jax: 0.10.0
libtpu: 0.0.40
codegen_flags: <defaults>
</compile_context>

<pallas_src>
import jax
import jax.numpy as jnp
import numpy as np
from jax.experimental import pallas as pl
from jax.experimental.pallas import tpu as pltpu

EPS = 1e-5

# MXU operand dtype.  float32 keeps exact parity with the f32 PyTorch-style
# reference below; switch to jnp.bfloat16 on v6e/v7x for ~2x MXU throughput and
# half the conv DMA bytes (accumulation stays f32 via preferred_element_type).
MXU_DTYPE = jnp.float32


# ----------------------------------------------------------------------------
# Fused kernel: 3x3 conv (+ optional folded BN+ReLU on its input) + BN stats.
# Input block is pre-padded (1, H+2, W+2, Cin); weight is (9*Cin, Cout).
# Outputs: y (1, H*W, Cout), and resident accumulators sum/sqsum (1, Cout)
# that are accumulated across the batch grid axis.
# ----------------------------------------------------------------------------
def _make_conv_bn_kernel(H, W, Cin, Cout, fuse_input_bn_relu, use_im2col):
    HW = H * W

    def kernel(*refs):
        if fuse_input_bn_relu:
            x_ref, w_ref, scale_ref, bias_ref, y_ref, sum_ref, sq_ref = refs
        else:
            x_ref, w_ref, y_ref, sum_ref, sq_ref = refs

        # Zero the resident per-channel stat accumulators on the first step.
        @pl.when(pl.program_id(0) == 0)
        def _():
            sum_ref[...] = jnp.zeros_like(sum_ref)
            sq_ref[...] = jnp.zeros_like(sq_ref)

        xp = x_ref[0].astype(jnp.float32)          # (H+2, W+2, Cin)

        if fuse_input_bn_relu:
            # Fused BN1-apply + ReLU on conv2's input.  The zero pad halo must
            # stay exactly zero (relu(bias) != 0 in general), so mask it back.
            s = scale_ref[...].reshape(1, 1, Cin)
            t = bias_ref[...].reshape(1, 1, Cin)
            z = jnp.maximum(xp * s + t, 0.0)
            hi = jax.lax.broadcasted_iota(jnp.int32, (H + 2, W + 2, 1), 0)
            wi = jax.lax.broadcasted_iota(jnp.int32, (H + 2, W + 2, 1), 1)
            interior = (hi >= 1) & (hi <= H) & (wi >= 1) & (wi <= W)
            xp = jnp.where(interior, z, 0.0)

        xp = xp.astype(MXU_DTYPE)
        wm = w_ref[...]                            # (9*Cin, Cout)

        if use_im2col:
            # im2col: one (H*W, 9*Cin) matrix -> a single MXU matmul (K=9*Cin)
            # instead of nine K=Cin matmuls.
            cols = [xp[kh:kh + H, kw:kw + W, :].reshape(HW, Cin)
                    for kh in range(3) for kw in range(3)]
            col = jnp.concatenate(cols, axis=-1)           # (H*W, 9*Cin)
            acc = jnp.dot(col, wm, preferred_element_type=jnp.float32)
        else:
            # Fallback contraction (known-good lowering): 9 shifted matmuls.
            acc = jnp.zeros((HW, Cout), jnp.float32)
            for kh in range(3):
                for kw in range(3):
                    idx = kh * 3 + kw
                    patch = xp[kh:kh + H, kw:kw + W, :].reshape(HW, Cin)
                    acc = acc + jnp.dot(patch,
                                        wm[idx * Cin:(idx + 1) * Cin, :],
                                        preferred_element_type=jnp.float32)

        y_ref[...] = acc.reshape(1, HW, Cout)

        # Fused BatchNorm batch statistics, accumulated across the batch axis.
        sum_ref[...] += jnp.sum(acc, axis=0, keepdims=True)
        sq_ref[...] += jnp.sum(acc * acc, axis=0, keepdims=True)

    return kernel


def conv3x3_bn_stats(x_nhwc, w_hwio, scale=None, bias=None, use_im2col=True):
    """3x3 conv (stride 1, pad 1, no bias) fused with BN statistics.

    If scale/bias are given, relu(x*scale + bias) (the folded previous BN +
    ReLU) is applied to the input inside the kernel before the convolution.
    Returns (y_flat (B, H*W, Cout) f32, sum (Cout,), sum_sq (Cout,)).
    """
    B, H, W, Cin = x_nhwc.shape
    Cout = w_hwio.shape[-1]
    Hp, Wp, HW = H + 2, W + 2, H * W
    fused = scale is not None

    # Pad the spatial halo in the wrapper (smallest tensor touched).  The fused
    # BN on conv2's input stays correct because the kernel masks the halo.
    # TODO(synk): build the halo in-kernel (VMEM scratch) to drop this HBM copy.
    xpad = jnp.pad(x_nhwc, ((0, 0), (1, 1), (1, 1), (0, 0)))
    w_flat = w_hwio.reshape(9 * Cin, Cout).astype(MXU_DTYPE)

    kernel = _make_conv_bn_kernel(H, W, Cin, Cout, fused, use_im2col)

    in_specs = [
        pl.BlockSpec((1, Hp, Wp, Cin), lambda b: (b, 0, 0, 0)),
        pl.BlockSpec((9 * Cin, Cout), lambda b: (0, 0)),
    ]
    args = [xpad, w_flat]
    if fused:
        in_specs += [pl.BlockSpec((1, Cin), lambda b: (0, 0)),
                     pl.BlockSpec((1, Cin), lambda b: (0, 0))]
        args += [scale.reshape(1, Cin).astype(jnp.float32),
                 bias.reshape(1, Cin).astype(jnp.float32)]

    y, s, q = pl.pallas_call(
        kernel,
        out_shape=(jax.ShapeDtypeStruct((B, HW, Cout), jnp.float32),
                   jax.ShapeDtypeStruct((1, Cout), jnp.float32),
                   jax.ShapeDtypeStruct((1, Cout), jnp.float32)),
        grid=(B,),
        in_specs=in_specs,
        out_specs=(pl.BlockSpec((1, HW, Cout), lambda b: (b, 0, 0)),
                   pl.BlockSpec((1, Cout), lambda b: (0, 0)),
                   pl.BlockSpec((1, Cout), lambda b: (0, 0))),
        compiler_params=pltpu.CompilerParams(
            dimension_semantics=("arbitrary",)),   # stats accumulate across b
    )(*args)
    return y, s.reshape(Cout), q.reshape(Cout)


# ----------------------------------------------------------------------------
# Epilogue kernel: y = relu(x * scale + bias + residual), lane-dense layout.
# Operands are (rows, W*C) with W*C a multiple of 128 here (unmasked stores).
# ----------------------------------------------------------------------------
def _bn_add_relu_kernel(y_ref, res_ref, scale_ref, bias_ref, o_ref):
    o_ref[...] = jnp.maximum(
        y_ref[...] * scale_ref[...] + bias_ref[...] + res_ref[...], 0.0)


def bn_add_relu(y2d, res2d, scale_c, bias_c, W):
    R, L = y2d.shape                      # R = B*H, L = W*C (lane dim)
    scale_l = jnp.tile(scale_c, W).reshape(1, L).astype(jnp.float32)
    bias_l = jnp.tile(bias_c, W).reshape(1, L).astype(jnp.float32)

    tr = R
    for cand in (512, 256, 128, 64, 32, 16, 8):   # biggest row tile dividing R
        if R % cand == 0:
            tr = cand
            break

    return pl.pallas_call(
        _bn_add_relu_kernel,
        out_shape=jax.ShapeDtypeStruct((R, L), jnp.float32),
        grid=(R // tr,),
        in_specs=[pl.BlockSpec((tr, L), lambda i: (i, 0)),
                  pl.BlockSpec((tr, L), lambda i: (i, 0)),
                  pl.BlockSpec((1, L), lambda i: (0, 0)),
                  pl.BlockSpec((1, L), lambda i: (0, 0))],
        out_specs=pl.BlockSpec((tr, L), lambda i: (i, 0)),
        compiler_params=pltpu.CompilerParams(
            dimension_semantics=("parallel",)),
    )(y2d, res2d, scale_l, bias_l)


# ----------------------------------------------------------------------------
# BasicBlock forward (stride=1, downsample=None; training-mode BN stats).
# ----------------------------------------------------------------------------
def basic_block_forward(x_nchw, params, use_im2col=True):
    B, C, H, W = x_nchw.shape
    # Interface transposes only (the surrounding model would ideally stay NHWC).
    x = jnp.transpose(x_nchw, (0, 2, 3, 1)).astype(jnp.float32)   # NCHW -> NHWC
    n = float(B * H * W)

    # conv1 + fused BN1 batch statistics.
    y1, s1, q1 = conv3x3_bn_stats(x, params["w1"], use_im2col=use_im2col)
    mean1 = s1 / n
    # E[x^2]-m^2 in f32; clamped at 0 (fine at these magnitudes).
    var1 = jnp.maximum(q1 / n - mean1 * mean1, 0.0)
    scale1 = params["gamma1"] / jnp.sqrt(var1 + EPS)
    bias1 = params["beta1"] - mean1 * scale1

    # conv2 with BN1-apply + ReLU fused into its input path + fused BN2 stats.
    y2, s2, q2 = conv3x3_bn_stats(y1.reshape(B, H, W, C), params["w2"],
                                  scale=scale1, bias=bias1,
                                  use_im2col=use_im2col)
    mean2 = s2 / n
    var2 = jnp.maximum(q2 / n - mean2 * mean2, 0.0)
    scale2 = params["gamma2"] / jnp.sqrt(var2 + EPS)
    bias2 = params["beta2"] - mean2 * scale2

    # BN2-apply + residual add + ReLU on a lane-dense (B*H, W*C) view.
    out2d = bn_add_relu(y2.reshape(B * H, W * C), x.reshape(B * H, W * C),
                        scale2, bias2, W)
    out = out2d.reshape(B, H, W, C)
    return jnp.transpose(out, (0, 3, 1, 2))                        # -> NCHW


# ----------------------------------------------------------------------------
# Pure-JAX reference for correctness checking.
# ----------------------------------------------------------------------------
def ref_forward(x_nchw, params):
    def conv(x, w_hwio):
        w_oihw = jnp.transpose(w_hwio, (3, 2, 0, 1))
        return jax.lax.conv_general_dilated(
            x, w_oihw, window_strides=(1, 1), padding=((1, 1), (1, 1)),
            dimension_numbers=("NCHW", "OIHW", "NCHW"))

    def bn(x, gamma, beta):
        mean = jnp.mean(x, axis=(0, 2, 3), keepdims=True)
        var = jnp.mean((x - mean) ** 2, axis=(0, 2, 3), keepdims=True)
        g = gamma.reshape(1, -1, 1, 1)
        b = beta.reshape(1, -1, 1, 1)
        return (x - mean) / jnp.sqrt(var + EPS) * g + b

    out = jax.nn.relu(bn(conv(x_nchw, params["w1"]),
                         params["gamma1"], params["beta1"]))
    out = bn(conv(out, params["w2"]), params["gamma2"], params["beta2"])
    return jax.nn.relu(out + x_nchw)


if __name__ == "__main__":
    # inplanes == planes (residual needs equal channels with downsample=None);
    # W*C = 16*8 = 128 makes the epilogue kernel exactly lane-dense.
    B, C, H, W = 2, 8, 16, 16

    key = jax.random.PRNGKey(0)
    kx, k1, k2 = jax.random.split(key, 3)
    x = jax.random.normal(kx, (B, C, H, W), dtype=jnp.float32)

    fan_in = C * 3 * 3
    params = {
        # weights stored HWIO (kh, kw, cin, cout)
        "w1": jax.random.normal(k1, (3, 3, C, C), dtype=jnp.float32)
              * (2.0 / fan_in) ** 0.5,
        "w2": jax.random.normal(k2, (3, 3, C, C), dtype=jnp.float32)
              * (2.0 / fan_in) ** 0.5,
        # BatchNorm2d default init: weight=1, bias=0
        "gamma1": jnp.ones((C,), jnp.float32),
        "beta1": jnp.zeros((C,), jnp.float32),
        "gamma2": jnp.ones((C,), jnp.float32),
        "beta2": jnp.zeros((C,), jnp.float32),
    }

    try:
        out = jax.block_until_ready(
            basic_block_forward(x, params, use_im2col=True))
    except Exception:
        # Insurance: if this Mosaic build rejects the unaligned lane-dim
        # concatenate used by the single-matmul im2col, fall back to the
        # 9-tap contraction.  All fusions (BN stats, BN1+ReLU input fusion,
        # lane-dense epilogue) are identical in both paths.
        out = jax.block_until_ready(
            basic_block_forward(x, params, use_im2col=False))

    ref = jax.block_until_ready(ref_forward(x, params))
    assert out.shape == (B, C, H, W)
    np.testing.assert_allclose(np.asarray(out), np.asarray(ref),
                               rtol=1e-4, atol=1e-4)

    print("KERNEL_OK")
</pallas_src>

<mosaic_0001>
module attributes {stable_mosaic.version = 11 : i64} {
  func.func @kernel(%arg0: i32, %arg1: memref<1x18x18x8xf32, #tpu.memory_space<vmem>>, %arg2: memref<72x8xf32, #tpu.memory_space<vmem>>, %arg3: memref<1x256x8xf32, #tpu.memory_space<vmem>>, %arg4: memref<1x8xf32, #tpu.memory_space<vmem>>, %arg5: memref<1x8xf32, #tpu.memory_space<vmem>>) attributes {dimension_semantics = [#tpu.dimension_semantics<arbitrary>], iteration_bounds = array<i64: 2>, scalar_prefetch = 0 : i64, scratch_operands = 0 : i64, tpu.core_type = #tpu.core_type<tc>, window_params = [{transform_indices = @transform_0, window_bounds = array<i64: 1, 18, 18, 8>}, {pipeline_mode = #tpu.pipeline_mode<synchronous>, transform_indices = @transform_1, window_bounds = array<i64: 72, 8>}, {transform_indices = @transform_2, window_bounds = array<i64: 1, 256, 8>}, {pipeline_mode = #tpu.pipeline_mode<synchronous>, transform_indices = @transform_3, window_bounds = array<i64: 1, 8>}, {pipeline_mode = #tpu.pipeline_mode<synchronous>, transform_indices = @transform_4, window_bounds = array<i64: 1, 8>}]} {
    %c0_i32 = arith.constant 0 : i32
    %0 = arith.cmpi eq, %arg0, %c0_i32 : i32
    %1 = arith.extui %0 : i1 to i32
    %c0_i32_0 = arith.constant 0 : i32
    %2 = arith.cmpi ne, %1, %c0_i32_0 : i32
    scf.if %2 {
      %cst_19 = arith.constant 0.000000e+00 : f32
      %39 = vector.broadcast %cst_19 : f32 to vector<1x8xf32>
      %c0_20 = arith.constant 0 : index
      %c0_21 = arith.constant 0 : index
      %40 = vector.load %arg4[%c0_20, %c0_21] : memref<1x8xf32, #tpu.memory_space<vmem>>, vector<1x8xf32>
      tpu.vector_store %arg4[%c0_20, %c0_21], %39 {strides = array<i32>} : memref<1x8xf32, #tpu.memory_space<vmem>>, vector<1x8xf32>,
      %cst_22 = arith.constant 0.000000e+00 : f32
      %41 = vector.broadcast %cst_22 : f32 to vector<1x8xf32>
      %c0_23 = arith.constant 0 : index
      %c0_24 = arith.constant 0 : index
      %42 = vector.load %arg5[%c0_23, %c0_24] : memref<1x8xf32, #tpu.memory_space<vmem>>, vector<1x8xf32>
      tpu.vector_store %arg5[%c0_23, %c0_24], %41 {strides = array<i32>} : memref<1x8xf32, #tpu.memory_space<vmem>>, vector<1x8xf32>,
    } else {
    }
    %c0 = arith.constant 0 : index
    %c0_1 = arith.constant 0 : index
    %c0_2 = arith.constant 0 : index
    %c0_3 = arith.constant 0 : index
    %3 = vector.load %arg1[%c0, %c0_1, %c0_2, %c0_3] : memref<1x18x18x8xf32, #tpu.memory_space<vmem>>, vector<1x18x18x8xf32>
    %4 = vector.shape_cast %3 : vector<1x18x18x8xf32> to vector<18x18x8xf32>
    %c0_4 = arith.constant 0 : index
    %c0_5 = arith.constant 0 : index
    %5 = vector.load %arg2[%c0_4, %c0_5] : memref<72x8xf32, #tpu.memory_space<vmem>>, vector<72x8xf32>
    %6 = vector.extract_strided_slice %4 {offsets = [0, 0, 0], sizes = [16, 16, 8], strides = [1, 1, 1]} : vector<18x18x8xf32> to vector<16x16x8xf32>
    %7 = vector.shape_cast %6 : vector<16x16x8xf32> to vector<256x8xf32>
    %8 = vector.extract_strided_slice %4 {offsets = [0, 1, 0], sizes = [16, 16, 8], strides = [1, 1, 1]} : vector<18x18x8xf32> to vector<16x16x8xf32>
    %9 = vector.shape_cast %8 : vector<16x16x8xf32> to vector<256x8xf32>
    %10 = vector.extract_strided_slice %4 {offsets = [0, 2, 0], sizes = [16, 16, 8], strides = [1, 1, 1]} : vector<18x18x8xf32> to vector<16x16x8xf32>
    %11 = vector.shape_cast %10 : vector<16x16x8xf32> to vector<256x8xf32>
    %12 = vector.extract_strided_slice %4 {offsets = [1, 0, 0], sizes = [16, 16, 8], strides = [1, 1, 1]} : vector<18x18x8xf32> to vector<16x16x8xf32>
    %13 = vector.shape_cast %12 : vector<16x16x8xf32> to vector<256x8xf32>
    %14 = vector.extract_strided_slice %4 {offsets = [1, 1, 0], sizes = [16, 16, 8], strides = [1, 1, 1]} : vector<18x18x8xf32> to vector<16x16x8xf32>
    %15 = vector.shape_cast %14 : vector<16x16x8xf32> to vector<256x8xf32>
    %16 = vector.extract_strided_slice %4 {offsets = [1, 2, 0], sizes = [16, 16, 8], strides = [1, 1, 1]} : vector<18x18x8xf32> to vector<16x16x8xf32>
    %17 = vector.shape_cast %16 : vector<16x16x8xf32> to vector<256x8xf32>
    %18 = vector.extract_strided_slice %4 {offsets = [2, 0, 0], sizes = [16, 16, 8], strides = [1, 1, 1]} : vector<18x18x8xf32> to vector<16x16x8xf32>
    %19 = vector.shape_cast %18 : vector<16x16x8xf32> to vector<256x8xf32>
    %20 = vector.extract_strided_slice %4 {offsets = [2, 1, 0], sizes = [16, 16, 8], strides = [1, 1, 1]} : vector<18x18x8xf32> to vector<16x16x8xf32>
    %21 = vector.shape_cast %20 : vector<16x16x8xf32> to vector<256x8xf32>
    %22 = vector.extract_strided_slice %4 {offsets = [2, 2, 0], sizes = [16, 16, 8], strides = [1, 1, 1]} : vector<18x18x8xf32> to vector<16x16x8xf32>
    %23 = vector.shape_cast %22 : vector<16x16x8xf32> to vector<256x8xf32>
    %24 = tpu.concatenate %7, %9, %11, %13, %15, %17, %19, %21, %23 in 1 : vector<256x8xf32>, vector<256x8xf32>, vector<256x8xf32>, vector<256x8xf32>, vector<256x8xf32>, vector<256x8xf32>, vector<256x8xf32>, vector<256x8xf32>, vector<256x8xf32> -> vector<256x72xf32>
    %cst = arith.constant dense<0.000000e+00> : vector<256x8xf32>
    %25 = tpu.matmul %24, %5, %cst {dimension_numbers = #tpu.dot_dimension_numbers<[1], [0], [0], [1], [0, 0, 1, 1], [], []>} : vector<256x72xf32>, vector<72x8xf32>, vector<256x8xf32> -> vector<256x8xf32>
    %26 = vector.shape_cast %25 : vector<256x8xf32> to vector<1x256x8xf32>
    %c0_6 = arith.constant 0 : index
    %c0_7 = arith.constant 0 : index
    %c0_8 = arith.constant 0 : index
    %27 = vector.load %arg3[%c0_6, %c0_7, %c0_8] : memref<1x256x8xf32, #tpu.memory_space<vmem>>, vector<1x256x8xf32>
    tpu.vector_store %arg3[%c0_6, %c0_7, %c0_8], %26 {strides = array<i32>} : memref<1x256x8xf32, #tpu.memory_space<vmem>>, vector<1x256x8xf32>,
    %c0_9 = arith.constant 0 : index
    %c0_10 = arith.constant 0 : index
    %28 = vector.load %arg4[%c0_9, %c0_10] : memref<1x8xf32, #tpu.memory_space<vmem>>, vector<1x8xf32>
    %cst_11 = arith.constant dense<0.000000e+00> : vector<8xf32>
    %29 = vector.multi_reduction <add>, %25, %cst_11 [0] : vector<256x8xf32> to vector<8xf32>
    %30 = vector.shape_cast %29 : vector<8xf32> to vector<1x8xf32>
    %31 = arith.addf %28, %30 : vector<1x8xf32>
    %c0_12 = arith.constant 0 : index
    %c0_13 = arith.constant 0 : index
    %32 = vector.load %arg4[%c0_12, %c0_13] : memref<1x8xf32, #tpu.memory_space<vmem>>, vector<1x8xf32>
    tpu.vector_store %arg4[%c0_12, %c0_13], %31 {strides = array<i32>} : memref<1x8xf32, #tpu.memory_space<vmem>>, vector<1x8xf32>,
    %c0_14 = arith.constant 0 : index
    %c0_15 = arith.constant 0 : index
    %33 = vector.load %arg5[%c0_14, %c0_15] : memref<1x8xf32, #tpu.memory_space<vmem>>, vector<1x8xf32>
    %34 = arith.mulf %25, %25 : vector<256x8xf32>
    %cst_16 = arith.constant dense<0.000000e+00> : vector<8xf32>
    %35 = vector.multi_reduction <add>, %34, %cst_16 [0] : vector<256x8xf32> to vector<8xf32>
    %36 = vector.shape_cast %35 : vector<8xf32> to vector<1x8xf32>
    %37 = arith.addf %33, %36 : vector<1x8xf32>
    %c0_17 = arith.constant 0 : index
    %c0_18 = arith.constant 0 : index
    %38 = vector.load %arg5[%c0_17, %c0_18] : memref<1x8xf32, #tpu.memory_space<vmem>>, vector<1x8xf32>
    tpu.vector_store %arg5[%c0_17, %c0_18], %37 {strides = array<i32>} : memref<1x8xf32, #tpu.memory_space<vmem>>, vector<1x8xf32>,
    return
  }
  func.func @transform_0(%arg0: i32) -> (i32, i32, i32, i32) {
    %c0_i32 = arith.constant 0 : i32
    %c0_i32_0 = arith.constant 0 : i32
    %c0_i32_1 = arith.constant 0 : i32
    %c0_i32_2 = arith.constant 0 : i32
    return %arg0, %c0_i32, %c0_i32_0, %c0_i32_1 : i32, i32, i32, i32
  }
  func.func @transform_1(%arg0: i32) -> (i32, i32) {
    %c0_i32 = arith.constant 0 : i32
    %c0_i32_0 = arith.constant 0 : i32
    %c0_i32_1 = arith.constant 0 : i32
    return %c0_i32, %c0_i32_0 : i32, i32
  }
  func.func @transform_2(%arg0: i32) -> (i32, i32, i32) {
    %c0_i32 = arith.constant 0 : i32
    %c0_i32_0 = arith.constant 0 : i32
    %c0_i32_1 = arith.constant 0 : i32
    return %arg0, %c0_i32, %c0_i32_0 : i32, i32, i32
  }
  func.func @transform_3(%arg0: i32) -> (i32, i32) {
    %c0_i32 = arith.constant 0 : i32
    %c0_i32_0 = arith.constant 0 : i32
    %c0_i32_1 = arith.constant 0 : i32
    return %c0_i32, %c0_i32_0 : i32, i32
  }
  func.func @transform_4(%arg0: i32) -> (i32, i32) {
    %c0_i32 = arith.constant 0 : i32
    %c0_i32_0 = arith.constant 0 : i32
    %c0_i32_1 = arith.constant 0 : i32
    return %c0_i32, %c0_i32_0 : i32, i32
  }
}

module attributes {stable_mosaic.version = 11 : i64} {
  func.func @kernel(%arg0: i32, %arg1: memref<1x18x18x8xf32, #tpu.memory_space<vmem>>, %arg2: memref<72x8xf32, #tpu.memory_space<vmem>>, %arg3: memref<1x256x8xf32, #tpu.memory_space<vmem>>, %arg4: memref<1x8xf32, #tpu.memory_space<vmem>>, %arg5: memref<1x8xf32, #tpu.memory_space<vmem>>) attributes {dimension_semantics = [#tpu.dimension_semantics<arbitrary>], iteration_bounds = array<i64: 2>, scalar_prefetch = 0 : i64, scratch_operands = 0 : i64, tpu.core_type = #tpu.core_type<tc>, window_params = [{transform_indices = @transform_0, window_bounds = array<i64: 1, 18, 18, 8>}, {pipeline_mode = #tpu.pipeline_mode<synchronous>, transform_indices = @transform_1, window_bounds = array<i64: 72, 8>}, {transform_indices = @transform_2, window_bounds = array<i64: 1, 256, 8>}, {pipeline_mode = #tpu.pipeline_mode<synchronous>, transform_indices = @transform_3, window_bounds = array<i64: 1, 8>}, {pipeline_mode = #tpu.pipeline_mode<synchronous>, transform_indices = @transform_4, window_bounds = array<i64: 1, 8>}]} {
    %c0_i32 = arith.constant 0 : i32
    %0 = arith.cmpi eq, %arg0, %c0_i32 : i32
    %1 = arith.extui %0 : i1 to i32
    %c0_i32_0 = arith.constant 0 : i32
    %2 = arith.cmpi ne, %1, %c0_i32_0 : i32
    scf.if %2 {
      %cst_28 = arith.constant 0.000000e+00 : f32
      %65 = vector.broadcast %cst_28 : f32 to vector<1x8xf32>
      %c0_29 = arith.constant 0 : index
      %c0_30 = arith.constant 0 : index
      %66 = vector.load %arg4[%c0_29, %c0_30] : memref<1x8xf32, #tpu.memory_space<vmem>>, vector<1x8xf32>
      tpu.vector_store %arg4[%c0_29, %c0_30], %65 {strides = array<i32>} : memref<1x8xf32, #tpu.memory_space<vmem>>, vector<1x8xf32>,
      %cst_31 = arith.constant 0.000000e+00 : f32
      %67 = vector.broadcast %cst_31 : f32 to vector<1x8xf32>
      %c0_32 = arith.constant 0 : index
      %c0_33 = arith.constant 0 : index
      %68 = vector.load %arg5[%c0_32, %c0_33] : memref<1x8xf32, #tpu.memory_space<vmem>>, vector<1x8xf32>
      tpu.vector_store %arg5[%c0_32, %c0_33], %67 {strides = array<i32>} : memref<1x8xf32, #tpu.memory_space<vmem>>, vector<1x8xf32>,
    } else {
    }
    %c0 = arith.constant 0 : index
    %c0_1 = arith.constant 0 : index
    %c0_2 = arith.constant 0 : index
    %c0_3 = arith.constant 0 : index
    %3 = vector.load %arg1[%c0, %c0_1, %c0_2, %c0_3] : memref<1x18x18x8xf32, #tpu.memory_space<vmem>>, vector<1x18x18x8xf32>
    %4 = vector.shape_cast %3 : vector<1x18x18x8xf32> to vector<18x18x8xf32>
    %c0_4 = arith.constant 0 : index
    %c0_5 = arith.constant 0 : index
    %5 = vector.load %arg2[%c0_4, %c0_5] : memref<72x8xf32, #tpu.memory_space<vmem>>, vector<72x8xf32>
    %cst = arith.constant 0.000000e+00 : f32
    %6 = vector.broadcast %cst : f32 to vector<256x8xf32>
    %7 = vector.extract_strided_slice %4 {offsets = [0, 0, 0], sizes = [16, 16, 8], strides = [1, 1, 1]} : vector<18x18x8xf32> to vector<16x16x8xf32>
    %8 = vector.shape_cast %7 : vector<16x16x8xf32> to vector<256x8xf32>
    %9 = vector.extract_strided_slice %5 {offsets = [0, 0], sizes = [8, 8], strides = [1, 1]} : vector<72x8xf32> to vector<8x8xf32>
    %cst_6 = arith.constant dense<0.000000e+00> : vector<256x8xf32>
    %10 = tpu.matmul %8, %9, %cst_6 {dimension_numbers = #tpu.dot_dimension_numbers<[1], [0], [0], [1], [0, 0, 1, 1], [], []>} : vector<256x8xf32>, vector<8x8xf32>, vector<256x8xf32> -> vector<256x8xf32>
    %11 = arith.addf %6, %10 : vector<256x8xf32>
    %12 = vector.extract_strided_slice %4 {offsets = [0, 1, 0], sizes = [16, 16, 8], strides = [1, 1, 1]} : vector<18x18x8xf32> to vector<16x16x8xf32>
    %13 = vector.shape_cast %12 : vector<16x16x8xf32> to vector<256x8xf32>
    %14 = vector.extract_strided_slice %5 {offsets = [8, 0], sizes = [8, 8], strides = [1, 1]} : vector<72x8xf32> to vector<8x8xf32>
    %cst_7 = arith.constant dense<0.000000e+00> : vector<256x8xf32>
    %15 = tpu.matmul %13, %14, %cst_7 {dimension_numbers = #tpu.dot_dimension_numbers<[1], [0], [0], [1], [0, 0, 1, 1], [], []>} : vector<256x8xf32>, vector<8x8xf32>, vector<256x8xf32> -> vector<256x8xf32>
    %16 = arith.addf %11, %15 : vector<256x8xf32>
    %17 = vector.extract_strided_slice %4 {offsets = [0, 2, 0], sizes = [16, 16, 8], strides = [1, 1, 1]} : vector<18x18x8xf32> to vector<16x16x8xf32>
    %18 = vector.shape_cast %17 : vector<16x16x8xf32> to vector<256x8xf32>
    %19 = vector.extract_strided_slice %5 {offsets = [16, 0], sizes = [8, 8], strides = [1, 1]} : vector<72x8xf32> to vector<8x8xf32>
    %cst_8 = arith.constant dense<0.000000e+00> : vector<256x8xf32>
    %20 = tpu.matmul %18, %19, %cst_8 {dimension_numbers = #tpu.dot_dimension_numbers<[1], [0], [0], [1], [0, 0, 1, 1], [], []>} : vector<256x8xf32>, vector<8x8xf32>, vector<256x8xf32> -> vector<256x8xf32>
    %21 = arith.addf %16, %20 : vector<256x8xf32>
    %22 = vector.extract_strided_slice %4 {offsets = [1, 0, 0], sizes = [16, 16, 8], strides = [1, 1, 1]} : vector<18x18x8xf32> to vector<16x16x8xf32>
    %23 = vector.shape_cast %22 : vector<16x16x8xf32> to vector<256x8xf32>
    %24 = vector.extract_strided_slice %5 {offsets = [24, 0], sizes = [8, 8], strides = [1, 1]} : vector<72x8xf32> to vector<8x8xf32>
    %cst_9 = arith.constant dense<0.000000e+00> : vector<256x8xf32>
    %25 = tpu.matmul %23, %24, %cst_9 {dimension_numbers = #tpu.dot_dimension_numbers<[1], [0], [0], [1], [0, 0, 1, 1], [], []>} : vector<256x8xf32>, vector<8x8xf32>, vector<256x8xf32> -> vector<256x8xf32>
    %26 = arith.addf %21, %25 : vector<256x8xf32>
    %27 = vector.extract_strided_slice %4 {offsets = [1, 1, 0], sizes = [16, 16, 8], strides = [1, 1, 1]} : vector<18x18x8xf32> to vector<16x16x8xf32>
    %28 = vector.shape_cast %27 : vector<16x16x8xf32> to vector<256x8xf32>
    %29 = vector.extract_strided_slice %5 {offsets = [32, 0], sizes = [8, 8], strides = [1, 1]} : vector<72x8xf32> to vector<8x8xf32>
    %cst_10 = arith.constant dense<0.000000e+00> : vector<256x8xf32>
    %30 = tpu.matmul %28, %29, %cst_10 {dimension_numbers = #tpu.dot_dimension_numbers<[1], [0], [0], [1], [0, 0, 1, 1], [], []>} : vector<256x8xf32>, vector<8x8xf32>, vector<256x8xf32> -> vector<256x8xf32>
    %31 = arith.addf %26, %30 : vector<256x8xf32>
    %32 = vector.extract_strided_slice %4 {offsets = [1, 2, 0], sizes = [16, 16, 8], strides = [1, 1, 1]} : vector<18x18x8xf32> to vector<16x16x8xf32>
    %33 = vector.shape_cast %32 : vector<16x16x8xf32> to vector<256x8xf32>
    %34 = vector.extract_strided_slice %5 {offsets = [40, 0], sizes = [8, 8], strides = [1, 1]} : vector<72x8xf32> to vector<8x8xf32>
    %cst_11 = arith.constant dense<0.000000e+00> : vector<256x8xf32>
    %35 = tpu.matmul %33, %34, %cst_11 {dimension_numbers = #tpu.dot_dimension_numbers<[1], [0], [0], [1], [0, 0, 1, 1], [], []>} : vector<256x8xf32>, vector<8x8xf32>, vector<256x8xf32> -> vector<256x8xf32>
    %36 = arith.addf %31, %35 : vector<256x8xf32>
    %37 = vector.extract_strided_slice %4 {offsets = [2, 0, 0], sizes = [16, 16, 8], strides = [1, 1, 1]} : vector<18x18x8xf32> to vector<16x16x8xf32>
    %38 = vector.shape_cast %37 : vector<16x16x8xf32> to vector<256x8xf32>
    %39 = vector.extract_strided_slice %5 {offsets = [48, 0], sizes = [8, 8], strides = [1, 1]} : vector<72x8xf32> to vector<8x8xf32>
    %cst_12 = arith.constant dense<0.000000e+00> : vector<256x8xf32>
    %40 = tpu.matmul %38, %39, %cst_12 {dimension_numbers = #tpu.dot_dimension_numbers<[1], [0], [0], [1], [0, 0, 1, 1], [], []>} : vector<256x8xf32>, vector<8x8xf32>, vector<256x8xf32> -> vector<256x8xf32>
    %41 = arith.addf %36, %40 : vector<256x8xf32>
    %42 = vector.extract_strided_slice %4 {offsets = [2, 1, 0], sizes = [16, 16, 8], strides = [1, 1, 1]} : vector<18x18x8xf32> to vector<16x16x8xf32>
    %43 = vector.shape_cast %42 : vector<16x16x8xf32> to vector<256x8xf32>
    %44 = vector.extract_strided_slice %5 {offsets = [56, 0], sizes = [8, 8], strides = [1, 1]} : vector<72x8xf32> to vector<8x8xf32>
    %cst_13 = arith.constant dense<0.000000e+00> : vector<256x8xf32>
    %45 = tpu.matmul %43, %44, %cst_13 {dimension_numbers = #tpu.dot_dimension_numbers<[1], [0], [0], [1], [0, 0, 1, 1], [], []>} : vector<256x8xf32>, vector<8x8xf32>, vector<256x8xf32> -> vector<256x8xf32>
    %46 = arith.addf %41, %45 : vector<256x8xf32>
    %47 = vector.extract_strided_slice %4 {offsets = [2, 2, 0], sizes = [16, 16, 8], strides = [1, 1, 1]} : vector<18x18x8xf32> to vector<16x16x8xf32>
    %48 = vector.shape_cast %47 : vector<16x16x8xf32> to vector<256x8xf32>
    %49 = vector.extract_strided_slice %5 {offsets = [64, 0], sizes = [8, 8], strides = [1, 1]} : vector<72x8xf32> to vector<8x8xf32>
    %cst_14 = arith.constant dense<0.000000e+00> : vector<256x8xf32>
    %50 = tpu.matmul %48, %49, %cst_14 {dimension_numbers = #tpu.dot_dimension_numbers<[1], [0], [0], [1], [0, 0, 1, 1], [], []>} : vector<256x8xf32>, vector<8x8xf32>, vector<256x8xf32> -> vector<256x8xf32>
    %51 = arith.addf %46, %50 : vector<256x8xf32>
    %52 = vector.shape_cast %51 : vector<256x8xf32> to vector<1x256x8xf32>
    %c0_15 = arith.constant 0 : index
    %c0_16 = arith.constant 0 : index
    %c0_17 = arith.constant 0 : index
    %53 = vector.load %arg3[%c0_15, %c0_16, %c0_17] : memref<1x256x8xf32, #tpu.memory_space<vmem>>, vector<1x256x8xf32>
    tpu.vector_store %arg3[%c0_15, %c0_16, %c0_17], %52 {strides = array<i32>} : memref<1x256x8xf32, #tpu.memory_space<vmem>>, vector<1x256x8xf32>,
    %c0_18 = arith.constant 0 : index
    %c0_19 = arith.constant 0 : index
    %54 = vector.load %arg4[%c0_18, %c0_19] : memref<1x8xf32, #tpu.memory_space<vmem>>, vector<1x8xf32>
    %cst_20 = arith.constant dense<0.000000e+00> : vector<8xf32>
    %55 = vector.multi_reduction <add>, %51, %cst_20 [0] : vector<256x8xf32> to vector<8xf32>
    %56 = vector.shape_cast %55 : vector<8xf32> to vector<1x8xf32>
    %57 = arith.addf %54, %56 : vector<1x8xf32>
    %c0_21 = arith.constant 0 : index
    %c0_22 = arith.constant 0 : index
    %58 = vector.load %arg4[%c0_21, %c0_22] : memref<1x8xf32, #tpu.memory_space<vmem>>, vector<1x8xf32>
    tpu.vector_store %arg4[%c0_21, %c0_22], %57 {strides = array<i32>} : memref<1x8xf32, #tpu.memory_space<vmem>>, vector<1x8xf32>,
    %c0_23 = arith.constant 0 : index
    %c0_24 = arith.constant 0 : index
    %59 = vector.load %arg5[%c0_23, %c0_24] : memref<1x8xf32, #tpu.memory_space<vmem>>, vector<1x8xf32>
    %60 = arith.mulf %51, %51 : vector<256x8xf32>
    %cst_25 = arith.constant dense<0.000000e+00> : vector<8xf32>
    %61 = vector.multi_reduction <add>, %60, %cst_25 [0] : vector<256x8xf32> to vector<8xf32>
    %62 = vector.shape_cast %61 : vector<8xf32> to vector<1x8xf32>
    %63 = arith.addf %59, %62 : vector<1x8xf32>
    %c0_26 = arith.constant 0 : index
    %c0_27 = arith.constant 0 : index
    %64 = vector.load %arg5[%c0_26, %c0_27] : memref<1x8xf32, #tpu.memory_space<vmem>>, vector<1x8xf32>
    tpu.vector_store %arg5[%c0_26, %c0_27], %63 {strides = array<i32>} : memref<1x8xf32, #tpu.memory_space<vmem>>, vector<1x8xf32>,
    return
  }
  func.func @transform_0(%arg0: i32) -> (i32, i32, i32, i32) {
    %c0_i32 = arith.constant 0 : i32
    %c0_i32_0 = arith.constant 0 : i32
    %c0_i32_1 = arith.constant 0 : i32
    %c0_i32_2 = arith.constant 0 : i32
    return %arg0, %c0_i32, %c0_i32_0, %c0_i32_1 : i32, i32, i32, i32
  }
  func.func @transform_1(%arg0: i32) -> (i32, i32) {
    %c0_i32 = arith.constant 0 : i32
    %c0_i32_0 = arith.constant 0 : i32
    %c0_i32_1 = arith.constant 0 : i32
    return %c0_i32, %c0_i32_0 : i32, i32
  }
  func.func @transform_2(%arg0: i32) -> (i32, i32, i32) {
    %c0_i32 = arith.constant 0 : i32
    %c0_i32_0 = arith.constant 0 : i32
    %c0_i32_1 = arith.constant 0 : i32
    return %arg0, %c0_i32, %c0_i32_0 : i32, i32, i32
  }
  func.func @transform_3(%arg0: i32) -> (i32, i32) {
    %c0_i32 = arith.constant 0 : i32
    %c0_i32_0 = arith.constant 0 : i32
    %c0_i32_1 = arith.constant 0 : i32
    return %c0_i32, %c0_i32_0 : i32, i32
  }
  func.func @transform_4(%arg0: i32) -> (i32, i32) {
    %c0_i32 = arith.constant 0 : i32
    %c0_i32_0 = arith.constant 0 : i32
    %c0_i32_1 = arith.constant 0 : i32
    return %c0_i32, %c0_i32_0 : i32, i32
  }
}

</mosaic_0001>

<llo_original>
// kernel: tpu_custom_call.1
$region0: #{tpu_custom_call.1}
  #allocation0 [shape = 'u32[]', space=smem, size = 0x4, offset = 0x4, fixed_abs, tag = 'smem constant byte address 0x4 - core index']
  #allocation1 [shape = 'u32[144,128]{1,0:T(1,128)}', space=vmem, size = 0x12000, scoped, tag = 'internal scratch']
  %s0 = inlined_call_operand.vmem [shape: f32[2,18,18,8], index: 0, kind: input, shape index: {}]
  %s1 = inlined_call_operand.vmem [shape: f32[72,8], index: 1, kind: input, shape index: {}]
  %s2 = inlined_call_operand.vmem [shape: f32[2,256,8], index: 2, kind: output, shape index: {0}]
  %s3 = inlined_call_operand.hbm [shape: f32[1,8], index: 3, kind: output, shape index: {1}]
  %s4 = inlined_call_operand.hbm [shape: f32[1,8], index: 4, kind: output, shape index: {2}]
  %5 = xla_tuple %s2, %s3, %s4
  %s6 = sld [smem:[#allocation0]]
  $region61: #{tpu_custom_call.1} parent=0
    _
  %s8 = ssub.s32 1, %s6
  %s9 = scalar_select 0, %s8, %s6
  $region1: #{tpu_custom_call.1} parent=0
    #allocation2 [shape = 'u8[512]{0}', space=vmem, size = 0x400, scoped, tag = 'output window, operand 1, single buffered']
    #allocation3 [shape = 's32[2]{0}', space=sflag, size = 0x8, scoped, tag = 'scoped memory for tpu_custom_call.1']
    #allocation4 [shape = 'u8[512]{0}', space=vmem, size = 0x400, scoped, tag = 'output window, operand 2, single buffered']
    #allocation5 [shape = 's32[1]{0}', space=sflag, size = 0x4, scoped, tag = 'scoped memory for tpu_custom_call.1']
    %10 = vsyncpa [#allocation3], 0
    %11 = vsyncpa [#allocation5], 0
    loop: start=0, step=1, limit=4
    $region2: #{tpu_custom_call.1} parent=1 // loop_pre_header
      _
    $region3: #{tpu_custom_call.1} parent=1 // loop_header
      %s13 = sphi 0, %s17
      %p14 = scmp.ge.s32.totalorder %s13, 4
      %s23 = sphi 0, %s25
      %s26 = sphi 0, %s23
      %s27 = sphi 0, %s26
      %s43 = sphi 0, %s27
      %s47 = sphi 0, %s47
      %s49 = sphi 0, %s47
      %s50 = sphi 0, %s49
      %s64 = sphi 0, %s50
      %s70 = sphi 0, %s72
      %s73 = sphi 0, %s70
      %s74 = sphi 0, %s73
      %s90 = sphi 0, %s74
      %s94 = sphi 0, %s94
      %s96 = sphi 0, %s94
      %s97 = sphi 0, %s96
      %s111 = sphi 0, %s97
      %s115 = sphi 0, %s115
      %s117 = sphi 0, %s115
      %s118 = sphi 0, %s117
      %s132 = sphi 0, %s118
    $region4: #{tpu_custom_call.1} parent=1 // loop_header_branch
      %16 = sbr.rel (%p14) target = $region8
    $region5: #{tpu_custom_call.1} parent=1 // loop_body
      %s18 = ssub.s32 %s13, 1
      %s19 = ssub.s32 %s13, 2
      %s20 = sadd.s32 %s13, 1
      %s21 = ssub.s32 %s13, %s20
      %p22 = scmp.eq.s32.totalorder %s21, 0
      %s24 = sadd.s32 %s23, 1
      %s25 = scalar_select %p22, %s23, %s24
      %p28 = pneg %p22
      %p29 = scmp.eq.s32.totalorder %s13, 1
      %p30 = por %p28, %p29
      %p31 = scmp.ne.s32.totalorder %s23, %s26
      %p32 = scmp.eq.s32.totalorder %s13, 0
      %p33 = por %p31, %p32
      %p34 = scmp.ne.s32.totalorder %s23, %s26
      %p35 = scmp.eq.s32.totalorder %s18, 1
      %p36 = por %p34, %p35
      %p37 = scmp.ne.s32.totalorder %s26, %s27
      %p38 = scmp.eq.s32.totalorder %s18, 0
      %p39 = por %p37, %p38
      %p40 = scmp.ne.s32.totalorder %s26, %s27
      %p41 = scmp.eq.s32.totalorder %s19, 1
      %p42 = por %p40, %p41
      %p44 = scmp.ne.s32.totalorder %s27, %s43
      %p45 = scmp.eq.s32.totalorder %s19, 0
      %p46 = por %p44, %p45
      %s48 = sadd.s32 %s47, 1
      %p51 = scmp.eq.s32.totalorder %s13, 1
      %p52 = scmp.ne.s32.totalorder %s47, %s49
      %p53 = scmp.eq.s32.totalorder %s13, 0
      %p54 = por %p52, %p53
      %p55 = scmp.ne.s32.totalorder %s47, %s49
      %p56 = scmp.eq.s32.totalorder %s18, 1
      %p57 = por %p55, %p56
      %p58 = scmp.ne.s32.totalorder %s49, %s50
      %p59 = scmp.eq.s32.totalorder %s18, 0
      %p60 = por %p58, %p59
      %p61 = scmp.ne.s32.totalorder %s49, %s50
      %p62 = scmp.eq.s32.totalorder %s19, 1
      %p63 = por %p61, %p62
      %p65 = scmp.ne.s32.totalorder %s50, %s64
      %p66 = scmp.eq.s32.totalorder %s19, 0
      %p67 = por %p65, %p66
      %s68 = ssub.s32 %s13, %s20
      %p69 = scmp.eq.s32.totalorder %s68, 0
      %s71 = sadd.s32 %s70, 1
      %s72 = scalar_select %p69, %s70, %s71
      %p75 = pneg %p69
      %p76 = scmp.eq.s32.totalorder %s13, 1
      %p77 = por %p75, %p76
      %p78 = scmp.ne.s32.totalorder %s70, %s73
      %p79 = scmp.eq.s32.totalorder %s13, 0
      %p80 = por %p78, %p79
      %p81 = scmp.ne.s32.totalorder %s70, %s73
      %p82 = scmp.eq.s32.totalorder %s18, 1
      %p83 = por %p81, %p82
      %p84 = scmp.ne.s32.totalorder %s73, %s74
      %p85 = scmp.eq.s32.totalorder %s18, 0
      %p86 = por %p84, %p85
      %p87 = scmp.ne.s32.totalorder %s73, %s74
      %p88 = scmp.eq.s32.totalorder %s19, 1
      %p89 = por %p87, %p88
      %p91 = scmp.ne.s32.totalorder %s74, %s90
      %p92 = scmp.eq.s32.totalorder %s19, 0
      %p93 = por %p91, %p92
      %s95 = sadd.s32 %s94, 1
      %p98 = scmp.eq.s32.totalorder %s13, 1
      %p99 = scmp.ne.s32.totalorder %s94, %s96
      %p100 = scmp.eq.s32.totalorder %s13, 0
      %p101 = por %p99, %p100
      %p102 = scmp.ne.s32.totalorder %s94, %s96
      %p103 = scmp.eq.s32.totalorder %s18, 1
      %p104 = por %p102, %p103
      %p105 = scmp.ne.s32.totalorder %s96, %s97
      %p106 = scmp.eq.s32.totalorder %s18, 0
      %p107 = por %p105, %p106
      %p108 = scmp.ne.s32.totalorder %s96, %s97
      %p109 = scmp.eq.s32.totalorder %s19, 1
      %p110 = por %p108, %p109
      %p112 = scmp.ne.s32.totalorder %s97, %s111
      %p113 = scmp.eq.s32.totalorder %s19, 0
      %p114 = por %p112, %p113
      %s116 = sadd.s32 %s115, 1
      %p119 = scmp.eq.s32.totalorder %s13, 1
      %p120 = scmp.ne.s32.totalorder %s115, %s117
      %p121 = scmp.eq.s32.totalorder %s13, 0
      %p122 = por %p120, %p121
      %p123 = scmp.ne.s32.totalorder %s115, %s117
      %p124 = scmp.eq.s32.totalorder %s18, 1
      %p125 = por %p123, %p124
      %p126 = scmp.ne.s32.totalorder %s117, %s118
      %p127 = scmp.eq.s32.totalorder %s18, 0
      %p128 = por %p126, %p127
      %p129 = scmp.ne.s32.totalorder %s117, %s118
      %p130 = scmp.eq.s32.totalorder %s19, 1
      %p131 = por %p129, %p130
      %p133 = scmp.ne.s32.totalorder %s118, %s132
      %p134 = scmp.eq.s32.totalorder %s19, 0
      %p135 = por %p133, %p134
      %p136 = scmp.le.s32.totalorder 1, %s13
      %p137 = scmp.lt.s32.totalorder %s13, 3
      %p138 = pnand %p136, %p137
      %p139 = pneg %p138
      // Predicated region
      $region9: #{tpu_custom_call.1} parent=5 // pred_check
        _
      $region10: #{tpu_custom_call.1} parent=5 // pred_check_branch
        %141 = sbr.rel (%p138) target = $region12
      $region11: #{tpu_custom_call.1} parent=5 // pred_region
        %s142 = ssub.s32 %s13, 1
        // Predicated region
        $region13: #{tpu_custom_call.1} parent=11 // pred_check
          %p143 = pneg %p60
        $region14: #{tpu_custom_call.1} parent=11 // pred_check_branch
          %145 = sbr.rel (%p143) target = $region16
        $region15: #{tpu_custom_call.1} parent=11 // pred_region
          _
        $region16: #{tpu_custom_call.1} parent=11 // pred_fallthru
          _
      $region12: #{tpu_custom_call.1} parent=5 // pred_fallthru
        _
      %p146 = scmp.lt.s32.totalorder %s13, 2
      // Predicated region
      $region17: #{tpu_custom_call.1} parent=5 // pred_check
        %p147 = pneg %p146
      $region18: #{tpu_custom_call.1} parent=5 // pred_check_branch
        %149 = sbr.rel (%p147) target = $region20
      $region19: #{tpu_custom_call.1} parent=5 // pred_region
        // Predicated region
        $region21: #{tpu_custom_call.1} parent=19 // pred_check
          %p150 = pneg %p33
        $region22: #{tpu_custom_call.1} parent=19 // pred_check_branch
          %152 = sbr.rel (%p150) target = $region24
        $region23: #{tpu_custom_call.1} parent=19 // pred_region
          %p153 = scmp.lt.s32.totalorder %s13, 1
          %s154 = scalar_select %p153, %s13, 1
          %s155 = smul.addr %s154, 54
          %s156 = smul.addr %s155, 8
          %s157 = scalar_lea.vmem %s0, %s156
        $region24: #{tpu_custom_call.1} parent=19 // pred_fallthru
          _
      $region20: #{tpu_custom_call.1} parent=5 // pred_fallthru
        _
      %p158 = scmp.le.s32.totalorder 1, %s13
      %p159 = scmp.lt.s32.totalorder %s13, 3
      %p160 = pnand %p158, %p159
      %p161 = pneg %p160
      // Predicated region
      $region25: #{tpu_custom_call.1} parent=5 // pred_check
        _
      $region26: #{tpu_custom_call.1} parent=5 // pred_check_branch
        %163 = sbr.rel (%p160) target = $region28
      $region27: #{tpu_custom_call.1} parent=5 // pred_region
        %s164 = ssub.s32 %s13, 1
        %p165 = scmp.lt.s32.totalorder %s18, 1
        %s166 = scalar_select %p165, %s18, 1
        %s167 = smul.addr %s166, 54
        %s168 = smul.addr %s167, 8
        %s169 = scalar_lea.vmem %s0, %s168
        %p170 = pneg %p39
        %p171 = pneg %p36
        %p172 = pneg %p60
        %p173 = pneg %p57
        %p174 = pneg %p86
        %p175 = pneg %p83
        %p176 = scmp.lt.s32.totalorder %s18, 1
        %s177 = scalar_select %p176, %s18, 1
        %s178 = smul.addr %s177, 32
        %s179 = smul.addr %s178, 8
        %s180 = scalar_lea.vmem %s2, %s179
        %p181 = pneg %p107
        %p182 = pneg %p104
        %p183 = pneg %p128
        %p184 = pneg %p125
        %p185 = scmp.lt.s32.totalorder %s18, 1
        %s186 = scalar_select %p185, %s18, 1
        %s187 = smul.addr %s186, 54
        %s188 = smul.addr %s187, 8
        %s189 = scalar_lea.vmem %s0, %s188
        %p190 = scmp.lt.s32.totalorder %s18, 1
        %s191 = scalar_select %p190, %s18, 1
        %s192 = smul.addr %s191, 32
        %s193 = smul.addr %s192, 8
        %s194 = scalar_lea.vmem %s2, %s193
        %p195 = scmp.eq.s32.totalorder %s18, 0
        // Predicated region
        $region29: #{tpu_custom_call.1} parent=27 // pred_check
          %p196 = pneg %p195
        $region30: #{tpu_custom_call.1} parent=27 // pred_check_branch
          %198 = sbr.rel (%p196) target = $region32
        $region31: #{tpu_custom_call.1} parent=27 // pred_region
          %vm199 = vcmask 57344
          %200 = vst.msk [vmem:[#allocation2] sm:$0x1] %vm199, 0.0
          %201 = vst.msk [vmem:[#allocation4] sm:$0x1] %vm199, 0.0
        $region32: #{tpu_custom_call.1} parent=27 // pred_fallthru
          _
        %v202 = vld [vmem:[%s189] sm:$0xff]
        %v203 = vld [vmem:[%s189 + $0x8] sm:$0xff]
        %v204 = vld [vmem:[%s189 + $0x10] sm:$0x3]
        %v205 = vld [vmem:[%s189 + $0x18] sm:$0xff]
        %v206 = vld [vmem:[%s189 + $0x20] sm:$0xff]
        %v207 = vld [vmem:[%s189 + $0x28] sm:$0x3]
        %v208 = vld [vmem:[%s189 + $0x30] sm:$0xff]
        %v209 = vld [vmem:[%s189 + $0x38] sm:$0xff]
        %v210 = vld [vmem:[%s189 + $0x40] sm:$0x3]
        %v211 = vld [vmem:[%s189 + $0x48] sm:$0xff]
        %v212 = vld [vmem:[%s189 + $0x50] sm:$0xff]
        %v213 = vld [vmem:[%s189 + $0x58] sm:$0x3]
        %v214 = vld [vmem:[%s189 + $0x60] sm:$0xff]
        %v215 = vld [vmem:[%s189 + $0x68] sm:$0xff]
        %v216 = vld [vmem:[%s189 + $0x70] sm:$0x3]
        %v217 = vld [vmem:[%s189 + $0x78] sm:$0xff]
        %v218 = vld [vmem:[%s189 + $0x80] sm:$0xff]
        %v219 = vld [vmem:[%s189 + $0x88] sm:$0x3]
        %v220 = vld [vmem:[%s189 + $0x90] sm:$0xff]
        %v221 = vld [vmem:[%s189 + $0x98] sm:$0xff]
        %v222 = vld [vmem:[%s189 + $0xa0] sm:$0x3]
        %v223 = vld [vmem:[%s189 + $0xa8] sm:$0xff]
        %v224 = vld [vmem:[%s189 + $0xb0] sm:$0xff]
        %v225 = vld [vmem:[%s189 + $0xb8] sm:$0x3]
        %v226 = vld [vmem:[%s189 + $0xc0] sm:$0xff]
        %v227 = vld [vmem:[%s189 + $0xc8] sm:$0xff]
        %v228 = vld [vmem:[%s189 + $0xd0] sm:$0x3]
        %v229 = vld [vmem:[%s189 + $0xd8] sm:$0xff]
        %v230 = vld [vmem:[%s189 + $0xe0] sm:$0xff]
        %v231 = vld [vmem:[%s189 + $0xe8] sm:$0x3]
        %v232 = vld [vmem:[%s189 + $0xf0] sm:$0xff]
        %v233 = vld [vmem:[%s189 + $0xf8] sm:$0xff]
        %v234 = vld [vmem:[%s189 + $0x100] sm:$0x3]
        %v235 = vld [vmem:[%s189 + $0x108] sm:$0xff]
        %v236 = vld [vmem:[%s189 + $0x110] sm:$0xff]
        %v237 = vld [vmem:[%s189 + $0x118] sm:$0x3]
        %v238 = vld [vmem:[%s189 + $0x120] sm:$0xff]
        %v239 = vld [vmem:[%s189 + $0x128] sm:$0xff]
        %v240 = vld [vmem:[%s189 + $0x130] sm:$0x3]
        %v241 = vld [vmem:[%s189 + $0x138] sm:$0xff]
        %v242 = vld [vmem:[%s189 + $0x140] sm:$0xff]
        %v243 = vld [vmem:[%s189 + $0x148] sm:$0x3]
        %v244 = vld [vmem:[%s189 + $0x150] sm:$0xff]
        %v245 = vld [vmem:[%s189 + $0x158] sm:$0xff]
        %v246 = vld [vmem:[%s189 + $0x160] sm:$0x3]
        %v247 = vld [vmem:[%s189 + $0x168] sm:$0xff]
        %v248 = vld [vmem:[%s189 + $0x170] sm:$0xff]
        %v249 = vld [vmem:[%s189 + $0x178] sm:$0x3]
        %v250 = vld [vmem:[%s189 + $0x180] sm:$0xff]
        %v251 = vld [vmem:[%s189 + $0x188] sm:$0xff]
        %v252 = vld [vmem:[%s189 + $0x190] sm:$0x3]
        %v253 = vld [vmem:[%s189 + $0x198] sm:$0xff]
        %v254 = vld [vmem:[%s189 + $0x1a0] sm:$0xff]
        %v255 = vld [vmem:[%s189 + $0x1a8] sm:$0x3]
        %v256 = vld [vmem:[%s1] sm:$0xff]
        %v257 = vld [vmem:[%s1 + $0x8] sm:$0xff]
        %v258 = vld [vmem:[%s1 + $0x10] sm:$0xff]
        %v259 = vld [vmem:[%s1 + $0x18] sm:$0xff]
        %v260 = vld [vmem:[%s1 + $0x20] sm:$0xff]
        %v261 = vld [vmem:[%s1 + $0x28] sm:$0xff]
        %v262 = vld [vmem:[%s1 + $0x30] sm:$0xff]
        %v263 = vld [vmem:[%s1 + $0x38] sm:$0xff]
        %v264 = vld [vmem:[%s1 + $0x40] sm:$0xff]
        %vm313 = vcmask 1046528
        %v314 = vrot.slane %v202, 1
        %v315 = vrot.slane %v203, 1
        %v316 = vsel %vm313, %v314, %v315
        %v317 = vrot.slane %v204, 1
        %v318 = vsel %vm313, %v315, %v317
        %v319 = vrot.slane %v205, 1
        %v320 = vrot.slane %v206, 1
        %v321 = vsel %vm313, %v319, %v320
        %v322 = vrot.slane %v207, 1
        %v323 = vsel %vm313, %v320, %v322
        %v324 = vrot.slane %v208, 1
        %v325 = vrot.slane %v209, 1
        %v326 = vsel %vm313, %v324, %v325
        %v327 = vrot.slane %v210, 1
        %v328 = vsel %vm313, %v325, %v327
        %v329 = vrot.slane %v211, 1
        %v330 = vrot.slane %v212, 1
        %v331 = vsel %vm313, %v329, %v330
        %v332 = vrot.slane %v213, 1
        %v333 = vsel %vm313, %v330, %v332
        %v334 = vrot.slane %v214, 1
        %v335 = vrot.slane %v215, 1
        %v336 = vsel %vm313, %v334, %v335
        %v337 = vrot.slane %v216, 1
        %v338 = vsel %vm313, %v335, %v337
        %v339 = vrot.slane %v217, 1
        %v340 = vrot.slane %v218, 1
        %v341 = vsel %vm313, %v339, %v340
        %v342 = vrot.slane %v219, 1
        %v343 = vsel %vm313, %v340, %v342
        %v344 = vrot.slane %v220, 1
        %v345 = vrot.slane %v221, 1
        %v346 = vsel %vm313, %v344, %v345
        %v347 = vrot.slane %v222, 1
        %v348 = vsel %vm313, %v345, %v347
        %v349 = vrot.slane %v223, 1
        %v350 = vrot.slane %v224, 1
        %v351 = vsel %vm313, %v349, %v350
        %v352 = vrot.slane %v225, 1
        %v353 = vsel %vm313, %v350, %v352
        %v354 = vrot.slane %v226, 1
        %v355 = vrot.slane %v227, 1
        %v356 = vsel %vm313, %v354, %v355
        %v357 = vrot.slane %v228, 1
        %v358 = vsel %vm313, %v355, %v357
        %v359 = vrot.slane %v229, 1
        %v360 = vrot.slane %v230, 1
        %v361 = vsel %vm313, %v359, %v360
        %v362 = vrot.slane %v231, 1
        %v363 = vsel %vm313, %v360, %v362
        %v364 = vrot.slane %v232, 1
        %v365 = vrot.slane %v233, 1
        %v366 = vsel %vm313, %v364, %v365
        %v367 = vrot.slane %v234, 1
        %v368 = vsel %vm313, %v365, %v367
        %v369 = vrot.slane %v235, 1
        %v370 = vrot.slane %v236, 1
        %v371 = vsel %vm313, %v369, %v370
        %v372 = vrot.slane %v237, 1
        %v373 = vsel %vm313, %v370, %v372
        %v374 = vrot.slane %v238, 1
        %v375 = vrot.slane %v239, 1
        %v376 = vsel %vm313, %v374, %v375
        %v377 = vrot.slane %v240, 1
        %v378 = vsel %vm313, %v375, %v377
        %v379 = vrot.slane %v241, 1
        %v380 = vrot.slane %v242, 1
        %v381 = vsel %vm313, %v379, %v380
        %v382 = vrot.slane %v243, 1
        %v383 = vsel %vm313, %v380, %v382
        %v384 = vrot.slane %v244, 1
        %v385 = vrot.slane %v245, 1
        %v386 = vsel %vm313, %v384, %v385
        %v387 = vrot.slane %v246, 1
        %v388 = vsel %vm313, %v385, %v387
        %v389 = vrot.slane %v247, 1
        %v390 = vrot.slane %v248, 1
        %v391 = vsel %vm313, %v389, %v390
        %v392 = vrot.slane %v249, 1
        %v393 = vsel %vm313, %v390, %v392
        %vm394 = vcmask 1045504
        %v395 = vrot.slane %v202, 2
        %v396 = vrot.slane %v203, 2
        %v397 = vsel %vm394, %v395, %v396
        %v398 = vrot.slane %v204, 2
        %v399 = vsel %vm394, %v396, %v398
        %v400 = vrot.slane %v205, 2
        %v401 = vrot.slane %v206, 2
        %v402 = vsel %vm394, %v400, %v401
        %v403 = vrot.slane %v207, 2
        %v404 = vsel %vm394, %v401, %v403
        %v405 = vrot.slane %v208, 2
        %v406 = vrot.slane %v209, 2
        %v407 = vsel %vm394, %v405, %v406
        %v408 = vrot.slane %v210, 2
        %v409 = vsel %vm394, %v406, %v408
        %v410 = vrot.slane %v211, 2
        %v411 = vrot.slane %v212, 2
        %v412 = vsel %vm394, %v410, %v411
        %v413 = vrot.slane %v213, 2
        %v414 = vsel %vm394, %v411, %v413
        %v415 = vrot.slane %v214, 2
        %v416 = vrot.slane %v215, 2
        %v417 = vsel %vm394, %v415, %v416
        %v418 = vrot.slane %v216, 2
        %v419 = vsel %vm394, %v416, %v418
        %v420 = vrot.slane %v217, 2
        %v421 = vrot.slane %v218, 2
        %v422 = vsel %vm394, %v420, %v421
        %v423 = vrot.slane %v219, 2
        %v424 = vsel %vm394, %v421, %v423
        %v425 = vrot.slane %v220, 2
        %v426 = vrot.slane %v221, 2
        %v427 = vsel %vm394, %v425, %v426
        %v428 = vrot.slane %v222, 2
        %v429 = vsel %vm394, %v426, %v428
        %v430 = vrot.slane %v223, 2
        %v431 = vrot.slane %v224, 2
        %v432 = vsel %vm394, %v430, %v431
        %v433 = vrot.slane %v225, 2
        %v434 = vsel %vm394, %v431, %v433
        %v435 = vrot.slane %v226, 2
        %v436 = vrot.slane %v227, 2
        %v437 = vsel %vm394, %v435, %v436
        %v438 = vrot.slane %v228, 2
        %v439 = vsel %vm394, %v436, %v438
        %v440 = vrot.slane %v229, 2
        %v441 = vrot.slane %v230, 2
        %v442 = vsel %vm394, %v440, %v441
        %v443 = vrot.slane %v231, 2
        %v444 = vsel %vm394, %v441, %v443
        %v445 = vrot.slane %v232, 2
        %v446 = vrot.slane %v233, 2
        %v447 = vsel %vm394, %v445, %v446
        %v448 = vrot.slane %v234, 2
        %v449 = vsel %vm394, %v446, %v448
        %v450 = vrot.slane %v235, 2
        %v451 = vrot.slane %v236, 2
        %v452 = vsel %vm394, %v450, %v451
        %v453 = vrot.slane %v237, 2
        %v454 = vsel %vm394, %v451, %v453
        %v455 = vrot.slane %v238, 2
        %v456 = vrot.slane %v239, 2
        %v457 = vsel %vm394, %v455, %v456
        %v458 = vrot.slane %v240, 2
        %v459 = vsel %vm394, %v456, %v458
        %v460 = vrot.slane %v241, 2
        %v461 = vrot.slane %v242, 2
        %v462 = vsel %vm394, %v460, %v461
        %v463 = vrot.slane %v243, 2
        %v464 = vsel %vm394, %v461, %v463
        %v465 = vrot.slane %v244, 2
        %v466 = vrot.slane %v245, 2
        %v467 = vsel %vm394, %v465, %v466
        %v468 = vrot.slane %v246, 2
        %v469 = vsel %vm394, %v466, %v468
        %v470 = vrot.slane %v247, 2
        %v471 = vrot.slane %v248, 2
        %v472 = vsel %vm394, %v470, %v471
        %v473 = vrot.slane %v249, 2
        %v474 = vsel %vm394, %v471, %v473
        %v478 = vrot.slane %v250, 1
        %v479 = vrot.slane %v251, 1
        %v480 = vsel %vm313, %v478, %v479
        %v481 = vrot.slane %v252, 1
        %v482 = vsel %vm313, %v479, %v481
        %v483 = vrot.slane %v250, 2
        %v484 = vrot.slane %v251, 2
        %v485 = vsel %vm394, %v483, %v484
        %v486 = vrot.slane %v252, 2
        %v487 = vsel %vm394, %v484, %v486
        %v491 = vrot.slane %v253, 1
        %v492 = vrot.slane %v254, 1
        %v493 = vsel %vm313, %v491, %v492
        %v494 = vrot.slane %v255, 1
        %v495 = vsel %vm313, %v492, %v494
        %v496 = vrot.slane %v253, 2
        %v497 = vrot.slane %v254, 2
        %v498 = vsel %vm394, %v496, %v497
        %v499 = vrot.slane %v255, 2
        %v500 = vsel %vm394, %v497, %v499
        %501 = vrot.lane.b32.xlu0 %v316, 8
        %v502 = vpop.permute.xlu0 %501
        %503 = vrot.lane.b32.xlu0 %v318, 8
        %v504 = vpop.permute.xlu0 %503
        %505 = vrot.lane.b32.xlu0 %v321, 8
        %v506 = vpop.permute.xlu0 %505
        %507 = vrot.lane.b32.xlu0 %v323, 8
        %v508 = vpop.permute.xlu0 %507
        %509 = vrot.lane.b32.xlu0 %v326, 8
        %v510 = vpop.permute.xlu0 %509
        %511 = vrot.lane.b32.xlu0 %v328, 8
        %v512 = vpop.permute.xlu0 %511
        %513 = vrot.lane.b32.xlu0 %v331, 8
        %v514 = vpop.permute.xlu0 %513
        %515 = vrot.lane.b32.xlu0 %v333, 8
        %v516 = vpop.permute.xlu0 %515
        %517 = vrot.lane.b32.xlu0 %v336, 8
        %v518 = vpop.permute.xlu0 %517
        %519 = vrot.lane.b32.xlu0 %v338, 8
        %v520 = vpop.permute.xlu0 %519
        %521 = vrot.lane.b32.xlu0 %v341, 8
        %v522 = vpop.permute.xlu0 %521
        %523 = vrot.lane.b32.xlu0 %v343, 8
        %v524 = vpop.permute.xlu0 %523
        %525 = vrot.lane.b32.xlu0 %v346, 8
        %v526 = vpop.permute.xlu0 %525
        %527 = vrot.lane.b32.xlu0 %v348, 8
        %v528 = vpop.permute.xlu0 %527
        %529 = vrot.lane.b32.xlu0 %v351, 8
        %v530 = vpop.permute.xlu0 %529
        %531 = vrot.lane.b32.xlu0 %v353, 8
        %v532 = vpop.permute.xlu0 %531
        %533 = vrot.lane.b32.xlu0 %v356, 8
        %v534 = vpop.permute.xlu0 %533
        %535 = vrot.lane.b32.xlu0 %v358, 8
        %v536 = vpop.permute.xlu0 %535
        %537 = vrot.lane.b32.xlu0 %v361, 8
        %v538 = vpop.permute.xlu0 %537
        %539 = vrot.lane.b32.xlu0 %v363, 8
        %v540 = vpop.permute.xlu0 %539
        %541 = vrot.lane.b32.xlu0 %v366, 8
        %v542 = vpop.permute.xlu0 %541
        %543 = vrot.lane.b32.xlu0 %v368, 8
        %v544 = vpop.permute.xlu0 %543
        %545 = vrot.lane.b32.xlu0 %v371, 8
        %v546 = vpop.permute.xlu0 %545
        %547 = vrot.lane.b32.xlu0 %v373, 8
        %v548 = vpop.permute.xlu0 %547
        %549 = vrot.lane.b32.xlu0 %v376, 8
        %v550 = vpop.permute.xlu0 %549
        %551 = vrot.lane.b32.xlu0 %v378, 8
        %v552 = vpop.permute.xlu0 %551
        %553 = vrot.lane.b32.xlu0 %v381, 8
        %v554 = vpop.permute.xlu0 %553
        %555 = vrot.lane.b32.xlu0 %v383, 8
        %v556 = vpop.permute.xlu0 %555
        %557 = vrot.lane.b32.xlu0 %v386, 8
        %v558 = vpop.permute.xlu0 %557
        %559 = vrot.lane.b32.xlu0 %v388, 8
        %v560 = vpop.permute.xlu0 %559
        %561 = vrot.lane.b32.xlu0 %v391, 8
        %v562 = vpop.permute.xlu0 %561
        %563 = vrot.lane.b32.xlu0 %v393, 8
        %v564 = vpop.permute.xlu0 %563
        %597 = vrot.lane.b32.xlu0 %v397, 16
        %v598 = vpop.permute.xlu0 %597
        %599 = vrot.lane.b32.xlu0 %v399, 16
        %v600 = vpop.permute.xlu0 %599
        %601 = vrot.lane.b32.xlu0 %v402, 16
        %v602 = vpop.permute.xlu0 %601
        %603 = vrot.lane.b32.xlu0 %v404, 16
        %v604 = vpop.permute.xlu0 %603
        %605 = vrot.lane.b32.xlu0 %v407, 16
        %v606 = vpop.permute.xlu0 %605
        %607 = vrot.lane.b32.xlu0 %v409, 16
        %v608 = vpop.permute.xlu0 %607
        %609 = vrot.lane.b32.xlu0 %v412, 16
        %v610 = vpop.permute.xlu0 %609
        %611 = vrot.lane.b32.xlu0 %v414, 16
        %v612 = vpop.permute.xlu0 %611
        %613 = vrot.lane.b32.xlu0 %v417, 16
        %v614 = vpop.permute.xlu0 %613
        %615 = vrot.lane.b32.xlu0 %v419, 16
        %v616 = vpop.permute.xlu0 %615
        %617 = vrot.lane.b32.xlu0 %v422, 16
        %v618 = vpop.permute.xlu0 %617
        %619 = vrot.lane.b32.xlu0 %v424, 16
        %v620 = vpop.permute.xlu0 %619
        %621 = vrot.lane.b32.xlu0 %v427, 16
        %v622 = vpop.permute.xlu0 %621
        %623 = vrot.lane.b32.xlu0 %v429, 16
        %v624 = vpop.permute.xlu0 %623
        %625 = vrot.lane.b32.xlu0 %v432, 16
        %v626 = vpop.permute.xlu0 %625
        %627 = vrot.lane.b32.xlu0 %v434, 16
        %v628 = vpop.permute.xlu0 %627
        %629 = vrot.lane.b32.xlu0 %v437, 16
        %v630 = vpop.permute.xlu0 %629
        %631 = vrot.lane.b32.xlu0 %v439, 16
        %v632 = vpop.permute.xlu0 %631
        %633 = vrot.lane.b32.xlu0 %v442, 16
        %v634 = vpop.permute.xlu0 %633
        %635 = vrot.lane.b32.xlu0 %v444, 16
        %v636 = vpop.permute.xlu0 %635
        %637 = vrot.lane.b32.xlu0 %v447, 16
        %v638 = vpop.permute.xlu0 %637
        %639 = vrot.lane.b32.xlu0 %v449, 16
        %v640 = vpop.permute.xlu0 %639
        %641 = vrot.lane.b32.xlu0 %v452, 16
        %v642 = vpop.permute.xlu0 %641
        %643 = vrot.lane.b32.xlu0 %v454, 16
        %v644 = vpop.permute.xlu0 %643
        %645 = vrot.lane.b32.xlu0 %v457, 16
        %v646 = vpop.permute.xlu0 %645
        %647 = vrot.lane.b32.xlu0 %v459, 16
        %v648 = vpop.permute.xlu0 %647
        %649 = vrot.lane.b32.xlu0 %v462, 16
        %v650 = vpop.permute.xlu0 %649
        %651 = vrot.lane.b32.xlu0 %v464, 16
        %v652 = vpop.permute.xlu0 %651
        %653 = vrot.lane.b32.xlu0 %v467, 16
        %v654 = vpop.permute.xlu0 %653
        %655 = vrot.lane.b32.xlu0 %v469, 16
        %v656 = vpop.permute.xlu0 %655
        %657 = vrot.lane.b32.xlu0 %v472, 16
        %v658 = vpop.permute.xlu0 %657
        %659 = vrot.lane.b32.xlu0 %v474, 16
        %v660 = vpop.permute.xlu0 %659
        %693 = vrot.lane.b32.xlu0 %v205, 24
        %v694 = vpop.permute.xlu0 %693
        %695 = vrot.lane.b32.xlu0 %v206, 24
        %v696 = vpop.permute.xlu0 %695
        %697 = vrot.lane.b32.xlu0 %v208, 24
        %v698 = vpop.permute.xlu0 %697
        %699 = vrot.lane.b32.xlu0 %v209, 24
        %v700 = vpop.permute.xlu0 %699
        %701 = vrot.lane.b32.xlu0 %v211, 24
        %v702 = vpop.permute.xlu0 %701
        %703 = vrot.lane.b32.xlu0 %v212, 24
        %v704 = vpop.permute.xlu0 %703
        %705 = vrot.lane.b32.xlu0 %v214, 24
        %v706 = vpop.permute.xlu0 %705
        %707 = vrot.lane.b32.xlu0 %v215, 24
        %v708 = vpop.permute.xlu0 %707
        %709 = vrot.lane.b32.xlu0 %v217, 24
        %v710 = vpop.permute.xlu0 %709
        %711 = vrot.lane.b32.xlu0 %v218, 24
        %v712 = vpop.permute.xlu0 %711
        %713 = vrot.lane.b32.xlu0 %v220, 24
        %v714 = vpop.permute.xlu0 %713
        %715 = vrot.lane.b32.xlu0 %v221, 24
        %v716 = vpop.permute.xlu0 %715
        %717 = vrot.lane.b32.xlu0 %v223, 24
        %v718 = vpop.permute.xlu0 %717
        %719 = vrot.lane.b32.xlu0 %v224, 24
        %v720 = vpop.permute.xlu0 %719
        %721 = vrot.lane.b32.xlu0 %v226, 24
        %v722 = vpop.permute.xlu0 %721
        %723 = vrot.lane.b32.xlu0 %v227, 24
        %v724 = vpop.permute.xlu0 %723
        %725 = vrot.lane.b32.xlu0 %v229, 24
        %v726 = vpop.permute.xlu0 %725
        %727 = vrot.lane.b32.xlu0 %v230, 24
        %v728 = vpop.permute.xlu0 %727
        %729 = vrot.lane.b32.xlu0 %v232, 24
        %v730 = vpop.permute.xlu0 %729
        %731 = vrot.lane.b32.xlu0 %v233, 24
        %v732 = vpop.permute.xlu0 %731
        %733 = vrot.lane.b32.xlu0 %v235, 24
        %v734 = vpop.permute.xlu0 %733
        %735 = vrot.lane.b32.xlu0 %v236, 24
        %v736 = vpop.permute.xlu0 %735
        %737 = vrot.lane.b32.xlu0 %v238, 24
        %v738 = vpop.permute.xlu0 %737
        %739 = vrot.lane.b32.xlu0 %v239, 24
        %v740 = vpop.permute.xlu0 %739
        %741 = vrot.lane.b32.xlu0 %v241, 24
        %v742 = vpop.permute.xlu0 %741
        %743 = vrot.lane.b32.xlu0 %v242, 24
        %v744 = vpop.permute.xlu0 %743
        %745 = vrot.lane.b32.xlu0 %v244, 24
        %v746 = vpop.permute.xlu0 %745
        %747 = vrot.lane.b32.xlu0 %v245, 24
        %v748 = vpop.permute.xlu0 %747
        %749 = vrot.lane.b32.xlu0 %v247, 24
        %v750 = vpop.permute.xlu0 %749
        %751 = vrot.lane.b32.xlu0 %v248, 24
        %v752 = vpop.permute.xlu0 %751
        %753 = vrot.lane.b32.xlu0 %v250, 24
        %v754 = vpop.permute.xlu0 %753
        %755 = vrot.lane.b32.xlu0 %v251, 24
        %v756 = vpop.permute.xlu0 %755
        %789 = vrot.lane.b32.xlu0 %v321, 32
        %v790 = vpop.permute.xlu0 %789
        %791 = vrot.lane.b32.xlu0 %v323, 32
        %v792 = vpop.permute.xlu0 %791
        %793 = vrot.lane.b32.xlu0 %v326, 32
        %v794 = vpop.permute.xlu0 %793
        %795 = vrot.lane.b32.xlu0 %v328, 32
        %v796 = vpop.permute.xlu0 %795
        %797 = vrot.lane.b32.xlu0 %v331, 32
        %v798 = vpop.permute.xlu0 %797
        %799 = vrot.lane.b32.xlu0 %v333, 32
        %v800 = vpop.permute.xlu0 %799
        %801 = vrot.lane.b32.xlu0 %v336, 32
        %v802 = vpop.permute.xlu0 %801
        %803 = vrot.lane.b32.xlu0 %v338, 32
        %v804 = vpop.permute.xlu0 %803
        %805 = vrot.lane.b32.xlu0 %v341, 32
        %v806 = vpop.permute.xlu0 %805
        %807 = vrot.lane.b32.xlu0 %v343, 32
        %v808 = vpop.permute.xlu0 %807
        %809 = vrot.lane.b32.xlu0 %v346, 32
        %v810 = vpop.permute.xlu0 %809
        %811 = vrot.lane.b32.xlu0 %v348, 32
        %v812 = vpop.permute.xlu0 %811
        %813 = vrot.lane.b32.xlu0 %v351, 32
        %v814 = vpop.permute.xlu0 %813
        %815 = vrot.lane.b32.xlu0 %v353, 32
        %v816 = vpop.permute.xlu0 %815
        %817 = vrot.lane.b32.xlu0 %v356, 32
        %v818 = vpop.permute.xlu0 %817
        %819 = vrot.lane.b32.xlu0 %v358, 32
        %v820 = vpop.permute.xlu0 %819
        %821 = vrot.lane.b32.xlu0 %v361, 32
        %v822 = vpop.permute.xlu0 %821
        %823 = vrot.lane.b32.xlu0 %v363, 32
        %v824 = vpop.permute.xlu0 %823
        %825 = vrot.lane.b32.xlu0 %v366, 32
        %v826 = vpop.permute.xlu0 %825
        %827 = vrot.lane.b32.xlu0 %v368, 32
        %v828 = vpop.permute.xlu0 %827
        %829 = vrot.lane.b32.xlu0 %v371, 32
        %v830 = vpop.permute.xlu0 %829
        %831 = vrot.lane.b32.xlu0 %v373, 32
        %v832 = vpop.permute.xlu0 %831
        %833 = vrot.lane.b32.xlu0 %v376, 32
        %v834 = vpop.permute.xlu0 %833
        %835 = vrot.lane.b32.xlu0 %v378, 32
        %v836 = vpop.permute.xlu0 %835
        %837 = vrot.lane.b32.xlu0 %v381, 32
        %v838 = vpop.permute.xlu0 %837
        %839 = vrot.lane.b32.xlu0 %v383, 32
        %v840 = vpop.permute.xlu0 %839
        %841 = vrot.lane.b32.xlu0 %v386, 32
        %v842 = vpop.permute.xlu0 %841
        %843 = vrot.lane.b32.xlu0 %v388, 32
        %v844 = vpop.permute.xlu0 %843
        %845 = vrot.lane.b32.xlu0 %v391, 32
        %v846 = vpop.permute.xlu0 %845
        %847 = vrot.lane.b32.xlu0 %v393, 32
        %v848 = vpop.permute.xlu0 %847
        %849 = vrot.lane.b32.xlu0 %v480, 32
        %v850 = vpop.permute.xlu0 %849
        %851 = vrot.lane.b32.xlu0 %v482, 32
        %v852 = vpop.permute.xlu0 %851
        %885 = vrot.lane.b32.xlu0 %v402, 40
        %v886 = vpop.permute.xlu0 %885
        %887 = vrot.lane.b32.xlu0 %v404, 40
        %v888 = vpop.permute.xlu0 %887
        %889 = vrot.lane.b32.xlu0 %v407, 40
        %v890 = vpop.permute.xlu0 %889
        %891 = vrot.lane.b32.xlu0 %v409, 40
        %v892 = vpop.permute.xlu0 %891
        %893 = vrot.lane.b32.xlu0 %v412, 40
        %v894 = vpop.permute.xlu0 %893
        %895 = vrot.lane.b32.xlu0 %v414, 40
        %v896 = vpop.permute.xlu0 %895
        %897 = vrot.lane.b32.xlu0 %v417, 40
        %v898 = vpop.permute.xlu0 %897
        %899 = vrot.lane.b32.xlu0 %v419, 40
        %v900 = vpop.permute.xlu0 %899
        %901 = vrot.lane.b32.xlu0 %v422, 40
        %v902 = vpop.permute.xlu0 %901
        %903 = vrot.lane.b32.xlu0 %v424, 40
        %v904 = vpop.permute.xlu0 %903
        %905 = vrot.lane.b32.xlu0 %v427, 40
        %v906 = vpop.permute.xlu0 %905
        %907 = vrot.lane.b32.xlu0 %v429, 40
        %v908 = vpop.permute.xlu0 %907
        %909 = vrot.lane.b32.xlu0 %v432, 40
        %v910 = vpop.permute.xlu0 %909
        %911 = vrot.lane.b32.xlu0 %v434, 40
        %v912 = vpop.permute.xlu0 %911
        %913 = vrot.lane.b32.xlu0 %v437, 40
        %v914 = vpop.permute.xlu0 %913
        %915 = vrot.lane.b32.xlu0 %v439, 40
        %v916 = vpop.permute.xlu0 %915
        %917 = vrot.lane.b32.xlu0 %v442, 40
        %v918 = vpop.permute.xlu0 %917
        %919 = vrot.lane.b32.xlu0 %v444, 40
        %v920 = vpop.permute.xlu0 %919
        %921 = vrot.lane.b32.xlu0 %v447, 40
        %v922 = vpop.permute.xlu0 %921
        %923 = vrot.lane.b32.xlu0 %v449, 40
        %v924 = vpop.permute.xlu0 %923
        %925 = vrot.lane.b32.xlu0 %v452, 40
        %v926 = vpop.permute.xlu0 %925
        %927 = vrot.lane.b32.xlu0 %v454, 40
        %v928 = vpop.permute.xlu0 %927
        %929 = vrot.lane.b32.xlu0 %v457, 40
        %v930 = vpop.permute.xlu0 %929
        %931 = vrot.lane.b32.xlu0 %v459, 40
        %v932 = vpop.permute.xlu0 %931
        %933 = vrot.lane.b32.xlu0 %v462, 40
        %v934 = vpop.permute.xlu0 %933
        %935 = vrot.lane.b32.xlu0 %v464, 40
        %v936 = vpop.permute.xlu0 %935
        %937 = vrot.lane.b32.xlu0 %v467, 40
        %v938 = vpop.permute.xlu0 %937
        %939 = vrot.lane.b32.xlu0 %v469, 40
        %v940 = vpop.permute.xlu0 %939
        %941 = vrot.lane.b32.xlu0 %v472, 40
        %v942 = vpop.permute.xlu0 %941
        %943 = vrot.lane.b32.xlu0 %v474, 40
        %v944 = vpop.permute.xlu0 %943
        %945 = vrot.lane.b32.xlu0 %v485, 40
        %v946 = vpop.permute.xlu0 %945
        %947 = vrot.lane.b32.xlu0 %v487, 40
        %v948 = vpop.permute.xlu0 %947
        %981 = vrot.lane.b32.xlu0 %v208, 48
        %v982 = vpop.permute.xlu0 %981
        %983 = vrot.lane.b32.xlu0 %v209, 48
        %v984 = vpop.permute.xlu0 %983
        %985 = vrot.lane.b32.xlu0 %v211, 48
        %v986 = vpop.permute.xlu0 %985
        %987 = vrot.lane.b32.xlu0 %v212, 48
        %v988 = vpop.permute.xlu0 %987
        %989 = vrot.lane.b32.xlu0 %v214, 48
        %v990 = vpop.permute.xlu0 %989
        %991 = vrot.lane.b32.xlu0 %v215, 48
        %v992 = vpop.permute.xlu0 %991
        %993 = vrot.lane.b32.xlu0 %v217, 48
        %v994 = vpop.permute.xlu0 %993
        %995 = vrot.lane.b32.xlu0 %v218, 48
        %v996 = vpop.permute.xlu0 %995
        %997 = vrot.lane.b32.xlu0 %v220, 48
        %v998 = vpop.permute.xlu0 %997
        %999 = vrot.lane.b32.xlu0 %v221, 48
        %v1000 = vpop.permute.xlu0 %999
        %1001 = vrot.lane.b32.xlu0 %v223, 48
        %v1002 = vpop.permute.xlu0 %1001
        %1003 = vrot.lane.b32.xlu0 %v224, 48
        %v1004 = vpop.permute.xlu0 %1003
        %1005 = vrot.lane.b32.xlu0 %v226, 48
        %v1006 = vpop.permute.xlu0 %1005
        %1007 = vrot.lane.b32.xlu0 %v227, 48
        %v1008 = vpop.permute.xlu0 %1007
        %1009 = vrot.lane.b32.xlu0 %v229, 48
        %v1010 = vpop.permute.xlu0 %1009
        %1011 = vrot.lane.b32.xlu0 %v230, 48
        %v1012 = vpop.permute.xlu0 %1011
        %1013 = vrot.lane.b32.xlu0 %v232, 48
        %v1014 = vpop.permute.xlu0 %1013
        %1015 = vrot.lane.b32.xlu0 %v233, 48
        %v1016 = vpop.permute.xlu0 %1015
        %1017 = vrot.lane.b32.xlu0 %v235, 48
        %v1018 = vpop.permute.xlu0 %1017
        %1019 = vrot.lane.b32.xlu0 %v236, 48
        %v1020 = vpop.permute.xlu0 %1019
        %1021 = vrot.lane.b32.xlu0 %v238, 48
        %v1022 = vpop.permute.xlu0 %1021
        %1023 = vrot.lane.b32.xlu0 %v239, 48
        %v1024 = vpop.permute.xlu0 %1023
        %1025 = vrot.lane.b32.xlu0 %v241, 48
        %v1026 = vpop.permute.xlu0 %1025
        %1027 = vrot.lane.b32.xlu0 %v242, 48
        %v1028 = vpop.permute.xlu0 %1027
        %1029 = vrot.lane.b32.xlu0 %v244, 48
        %v1030 = vpop.permute.xlu0 %1029
        %1031 = vrot.lane.b32.xlu0 %v245, 48
        %v1032 = vpop.permute.xlu0 %1031
        %1033 = vrot.lane.b32.xlu0 %v247, 48
        %v1034 = vpop.permute.xlu0 %1033
        %1035 = vrot.lane.b32.xlu0 %v248, 48
        %v1036 = vpop.permute.xlu0 %1035
        %1037 = vrot.lane.b32.xlu0 %v250, 48
        %v1038 = vpop.permute.xlu0 %1037
        %1039 = vrot.lane.b32.xlu0 %v251, 48
        %v1040 = vpop.permute.xlu0 %1039
        %1041 = vrot.lane.b32.xlu0 %v253, 48
        %v1042 = vpop.permute.xlu0 %1041
        %1043 = vrot.lane.b32.xlu0 %v254, 48
        %v1044 = vpop.permute.xlu0 %1043
        %1077 = vrot.lane.b32.xlu0 %v326, 56
        %v1078 = vpop.permute.xlu0 %1077
        %1079 = vrot.lane.b32.xlu0 %v328, 56
        %v1080 = vpop.permute.xlu0 %1079
        %1081 = vrot.lane.b32.xlu0 %v331, 56
        %v1082 = vpop.permute.xlu0 %1081
        %1083 = vrot.lane.b32.xlu0 %v333, 56
        %v1084 = vpop.permute.xlu0 %1083
        %1085 = vrot.lane.b32.xlu0 %v336, 56
        %v1086 = vpop.permute.xlu0 %1085
        %1087 = vrot.lane.b32.xlu0 %v338, 56
        %v1088 = vpop.permute.xlu0 %1087
        %1089 = vrot.lane.b32.xlu0 %v341, 56
        %v1090 = vpop.permute.xlu0 %1089
        %1091 = vrot.lane.b32.xlu0 %v343, 56
        %v1092 = vpop.permute.xlu0 %1091
        %1093 = vrot.lane.b32.xlu0 %v346, 56
        %v1094 = vpop.permute.xlu0 %1093
        %1095 = vrot.lane.b32.xlu0 %v348, 56
        %v1096 = vpop.permute.xlu0 %1095
        %1097 = vrot.lane.b32.xlu0 %v351, 56
        %v1098 = vpop.permute.xlu0 %1097
        %1099 = vrot.lane.b32.xlu0 %v353, 56
        %v1100 = vpop.permute.xlu0 %1099
        %1101 = vrot.lane.b32.xlu0 %v356, 56
        %v1102 = vpop.permute.xlu0 %1101
        %1103 = vrot.lane.b32.xlu0 %v358, 56
        %v1104 = vpop.permute.xlu0 %1103
        %1105 = vrot.lane.b32.xlu0 %v361, 56
        %v1106 = vpop.permute.xlu0 %1105
        %1107 = vrot.lane.b32.xlu0 %v363, 56
        %v1108 = vpop.permute.xlu0 %1107
        %1109 = vrot.lane.b32.xlu0 %v366, 56
        %v1110 = vpop.permute.xlu0 %1109
        %1111 = vrot.lane.b32.xlu0 %v368, 56
        %v1112 = vpop.permute.xlu0 %1111
        %1113 = vrot.lane.b32.xlu0 %v371, 56
        %v1114 = vpop.permute.xlu0 %1113
        %1115 = vrot.lane.b32.xlu0 %v373, 56
        %v1116 = vpop.permute.xlu0 %1115
        %1117 = vrot.lane.b32.xlu0 %v376, 56
        %v1118 = vpop.permute.xlu0 %1117
        %1119 = vrot.lane.b32.xlu0 %v378, 56
        %v1120 = vpop.permute.xlu0 %1119
        %1121 = vrot.lane.b32.xlu0 %v381, 56
        %v1122 = vpop.permute.xlu0 %1121
        %1123 = vrot.lane.b32.xlu0 %v383, 56
        %v1124 = vpop.permute.xlu0 %1123
        %1125 = vrot.lane.b32.xlu0 %v386, 56
        %v1126 = vpop.permute.xlu0 %1125
        %1127 = vrot.lane.b32.xlu0 %v388, 56
        %v1128 = vpop.permute.xlu0 %1127
        %1129 = vrot.lane.b32.xlu0 %v391, 56
        %v1130 = vpop.permute.xlu0 %1129
        %1131 = vrot.lane.b32.xlu0 %v393, 56
        %v1132 = vpop.permute.xlu0 %1131
        %1133 = vrot.lane.b32.xlu0 %v480, 56
        %v1134 = vpop.permute.xlu0 %1133
        %1135 = vrot.lane.b32.xlu0 %v482, 56
        %v1136 = vpop.permute.xlu0 %1135
        %1137 = vrot.lane.b32.xlu0 %v493, 56
        %v1138 = vpop.permute.xlu0 %1137
        %1139 = vrot.lane.b32.xlu0 %v495, 56
        %v1140 = vpop.permute.xlu0 %1139
        %1173 = vrot.lane.b32.xlu0 %v407, 64
        %v1174 = vpop.permute.xlu0 %1173
        %1175 = vrot.lane.b32.xlu0 %v409, 64
        %v1176 = vpop.permute.xlu0 %1175
        %1177 = vrot.lane.b32.xlu0 %v412, 64
        %v1178 = vpop.permute.xlu0 %1177
        %1179 = vrot.lane.b32.xlu0 %v414, 64
        %v1180 = vpop.permute.xlu0 %1179
        %1181 = vrot.lane.b32.xlu0 %v417, 64
        %v1182 = vpop.permute.xlu0 %1181
        %1183 = vrot.lane.b32.xlu0 %v419, 64
        %v1184 = vpop.permute.xlu0 %1183
        %1185 = vrot.lane.b32.xlu0 %v422, 64
        %v1186 = vpop.permute.xlu0 %1185
        %1187 = vrot.lane.b32.xlu0 %v424, 64
        %v1188 = vpop.permute.xlu0 %1187
        %1189 = vrot.lane.b32.xlu0 %v427, 64
        %v1190 = vpop.permute.xlu0 %1189
        %1191 = vrot.lane.b32.xlu0 %v429, 64
        %v1192 = vpop.permute.xlu0 %1191
        %1193 = vrot.lane.b32.xlu0 %v432, 64
        %v1194 = vpop.permute.xlu0 %1193
        %1195 = vrot.lane.b32.xlu0 %v434, 64
        %v1196 = vpop.permute.xlu0 %1195
        %1197 = vrot.lane.b32.xlu0 %v437, 64
        %v1198 = vpop.permute.xlu0 %1197
        %1199 = vrot.lane.b32.xlu0 %v439, 64
        %v1200 = vpop.permute.xlu0 %1199
        %1201 = vrot.lane.b32.xlu0 %v442, 64
        %v1202 = vpop.permute.xlu0 %1201
        %1203 = vrot.lane.b32.xlu0 %v444, 64
        %v1204 = vpop.permute.xlu0 %1203
        %1205 = vrot.lane.b32.xlu0 %v447, 64
        %v1206 = vpop.permute.xlu0 %1205
        %1207 = vrot.lane.b32.xlu0 %v449, 64
        %v1208 = vpop.permute.xlu0 %1207
        %1209 = vrot.lane.b32.xlu0 %v452, 64
        %v1210 = vpop.permute.xlu0 %1209
        %1211 = vrot.lane.b32.xlu0 %v454, 64
        %v1212 = vpop.permute.xlu0 %1211
        %1213 = vrot.lane.b32.xlu0 %v457, 64
        %v1214 = vpop.permute.xlu0 %1213
        %1215 = vrot.lane.b32.xlu0 %v459, 64
        %v1216 = vpop.permute.xlu0 %1215
        %1217 = vrot.lane.b32.xlu0 %v462, 64
        %v1218 = vpop.permute.xlu0 %1217
        %1219 = vrot.lane.b32.xlu0 %v464, 64
        %v1220 = vpop.permute.xlu0 %1219
        %1221 = vrot.lane.b32.xlu0 %v467, 64
        %v1222 = vpop.permute.xlu0 %1221
        %1223 = vrot.lane.b32.xlu0 %v469, 64
        %v1224 = vpop.permute.xlu0 %1223
        %1225 = vrot.lane.b32.xlu0 %v472, 64
        %v1226 = vpop.permute.xlu0 %1225
        %1227 = vrot.lane.b32.xlu0 %v474, 64
        %v1228 = vpop.permute.xlu0 %1227
        %1229 = vrot.lane.b32.xlu0 %v485, 64
        %v1230 = vpop.permute.xlu0 %1229
        %1231 = vrot.lane.b32.xlu0 %v487, 64
        %v1232 = vpop.permute.xlu0 %1231
        %1233 = vrot.lane.b32.xlu0 %v498, 64
        %v1234 = vpop.permute.xlu0 %1233
        %1235 = vrot.lane.b32.xlu0 %v500, 64
        %v1236 = vpop.permute.xlu0 %1235
        %vm1269 = vcmask 64512
        %v1270 = vsel %vm1269, %v202, %v502
        %v1271 = vsel %vm1269, %v203, %v504
        %v1272 = vsel %vm1269, %v205, %v506
        %v1273 = vsel %vm1269, %v206, %v508
        %v1274 = vsel %vm1269, %v208, %v510
        %v1275 = vsel %vm1269, %v209, %v512
        %v1276 = vsel %vm1269, %v211, %v514
        %v1277 = vsel %vm1269, %v212, %v516
        %v1278 = vsel %vm1269, %v214, %v518
        %v1279 = vsel %vm1269, %v215, %v520
        %v1280 = vsel %vm1269, %v217, %v522
        %v1281 = vsel %vm1269, %v218, %v524
        %v1282 = vsel %vm1269, %v220, %v526
        %v1283 = vsel %vm1269, %v221, %v528
        %v1284 = vsel %vm1269, %v223, %v530
        %v1285 = vsel %vm1269, %v224, %v532
        %v1286 = vsel %vm1269, %v226, %v534
        %v1287 = vsel %vm1269, %v227, %v536
        %v1288 = vsel %vm1269, %v229, %v538
        %v1289 = vsel %vm1269, %v230, %v540
        %v1290 = vsel %vm1269, %v232, %v542
        %v1291 = vsel %vm1269, %v233, %v544
        %v1292 = vsel %vm1269, %v235, %v546
        %v1293 = vsel %vm1269, %v236, %v548
        %v1294 = vsel %vm1269, %v238, %v550
        %v1295 = vsel %vm1269, %v239, %v552
        %v1296 = vsel %vm1269, %v241, %v554
        %v1297 = vsel %vm1269, %v242, %v556
        %v1298 = vsel %vm1269, %v244, %v558
        %v1299 = vsel %vm1269, %v245, %v560
        %v1300 = vsel %vm1269, %v247, %v562
        %v1301 = vsel %vm1269, %v248, %v564
        %vm1302 = vcmask 130048
        %v1303 = vsel %vm1302, %v1270, %v598
        %v1304 = vsel %vm1302, %v1271, %v600
        %v1305 = vsel %vm1302, %v1272, %v602
        %v1306 = vsel %vm1302, %v1273, %v604
        %v1307 = vsel %vm1302, %v1274, %v606
        %v1308 = vsel %vm1302, %v1275, %v608
        %v1309 = vsel %vm1302, %v1276, %v610
        %v1310 = vsel %vm1302, %v1277, %v612
        %v1311 = vsel %vm1302, %v1278, %v614
        %v1312 = vsel %vm1302, %v1279, %v616
        %v1313 = vsel %vm1302, %v1280, %v618
        %v1314 = vsel %vm1302, %v1281, %v620
        %v1315 = vsel %vm1302, %v1282, %v622
        %v1316 = vsel %vm1302, %v1283, %v624
        %v1317 = vsel %vm1302, %v1284, %v626
        %v1318 = vsel %vm1302, %v1285, %v628
        %v1319 = vsel %vm1302, %v1286, %v630
        %v1320 = vsel %vm1302, %v1287, %v632
        %v1321 = vsel %vm1302, %v1288, %v634
        %v1322 = vsel %vm1302, %v1289, %v636
        %v1323 = vsel %vm1302, %v1290, %v638
        %v1324 = vsel %vm1302, %v1291, %v640
        %v1325 = vsel %vm1302, %v1292, %v642
        %v1326 = vsel %vm1302, %v1293, %v644
        %v1327 = vsel %vm1302, %v1294, %v646
        %v1328 = vsel %vm1302, %v1295, %v648
        %v1329 = vsel %vm1302, %v1296, %v650
        %v1330 = vsel %vm1302, %v1297, %v652
        %v1331 = vsel %vm1302, %v1298, %v654
        %v1332 = vsel %vm1302, %v1299, %v656
        %v1333 = vsel %vm1302, %v1300, %v658
        %v1334 = vsel %vm1302, %v1301, %v660
        %vm1335 = vcmask 195584
        %v1336 = vsel %vm1335, %v1303, %v694
        %v1337 = vsel %vm1335, %v1304, %v696
        %v1338 = vsel %vm1335, %v1305, %v698
        %v1339 = vsel %vm1335, %v1306, %v700
        %v1340 = vsel %vm1335, %v1307, %v702
        %v1341 = vsel %vm1335, %v1308, %v704
        %v1342 = vsel %vm1335, %v1309, %v706
        %v1343 = vsel %vm1335, %v1310, %v708
        %v1344 = vsel %vm1335, %v1311, %v710
        %v1345 = vsel %vm1335, %v1312, %v712
        %v1346 = vsel %vm1335, %v1313, %v714
        %v1347 = vsel %vm1335, %v1314, %v716
        %v1348 = vsel %vm1335, %v1315, %v718
        %v1349 = vsel %vm1335, %v1316, %v720
        %v1350 = vsel %vm1335, %v1317, %v722
        %v1351 = vsel %vm1335, %v1318, %v724
        %v1352 = vsel %vm1335, %v1319, %v726
        %v1353 = vsel %vm1335, %v1320, %v728
        %v1354 = vsel %vm1335, %v1321, %v730
        %v1355 = vsel %vm1335, %v1322, %v732
        %v1356 = vsel %vm1335, %v1323, %v734
        %v1357 = vsel %vm1335, %v1324, %v736
        %v1358 = vsel %vm1335, %v1325, %v738
        %v1359 = vsel %vm1335, %v1326, %v740
        %v1360 = vsel %vm1335, %v1327, %v742
        %v1361 = vsel %vm1335, %v1328, %v744
        %v1362 = vsel %vm1335, %v1329, %v746
        %v1363 = vsel %vm1335, %v1330, %v748
        %v1364 = vsel %vm1335, %v1331, %v750
        %v1365 = vsel %vm1335, %v1332, %v752
        %v1366 = vsel %vm1335, %v1333, %v754
        %v1367 = vsel %vm1335, %v1334, %v756
        %vm1368 = vcmask 261120
        %v1369 = vsel %vm1368, %v1336, %v790
        %v1370 = vsel %vm1368, %v1337, %v792
        %v1371 = vsel %vm1368, %v1338, %v794
        %v1372 = vsel %vm1368, %v1339, %v796
        %v1373 = vsel %vm1368, %v1340, %v798
        %v1374 = vsel %vm1368, %v1341, %v800
        %v1375 = vsel %vm1368, %v1342, %v802
        %v1376 = vsel %vm1368, %v1343, %v804
        %v1377 = vsel %vm1368, %v1344, %v806
        %v1378 = vsel %vm1368, %v1345, %v808
        %v1379 = vsel %vm1368, %v1346, %v810
        %v1380 = vsel %vm1368, %v1347, %v812
        %v1381 = vsel %vm1368, %v1348, %v814
        %v1382 = vsel %vm1368, %v1349, %v816
        %v1383 = vsel %vm1368, %v1350, %v818
        %v1384 = vsel %vm1368, %v1351, %v820
        %v1385 = vsel %vm1368, %v1352, %v822
        %v1386 = vsel %vm1368, %v1353, %v824
        %v1387 = vsel %vm1368, %v1354, %v826
        %v1388 = vsel %vm1368, %v1355, %v828
        %v1389 = vsel %vm1368, %v1356, %v830
        %v1390 = vsel %vm1368, %v1357, %v832
        %v1391 = vsel %vm1368, %v1358, %v834
        %v1392 = vsel %vm1368, %v1359, %v836
        %v1393 = vsel %vm1368, %v1360, %v838
        %v1394 = vsel %vm1368, %v1361, %v840
        %v1395 = vsel %vm1368, %v1362, %v842
        %v1396 = vsel %vm1368, %v1363, %v844
        %v1397 = vsel %vm1368, %v1364, %v846
        %v1398 = vsel %vm1368, %v1365, %v848
        %v1399 = vsel %vm1368, %v1366, %v850
        %v1400 = vsel %vm1368, %v1367, %v852
        %vm1401 = vcmask 326656
        %v1402 = vsel %vm1401, %v1369, %v886
        %v1403 = vsel %vm1401, %v1370, %v888
        %v1404 = vsel %vm1401, %v1371, %v890
        %v1405 = vsel %vm1401, %v1372, %v892
        %v1406 = vsel %vm1401, %v1373, %v894
        %v1407 = vsel %vm1401, %v1374, %v896
        %v1408 = vsel %vm1401, %v1375, %v898
        %v1409 = vsel %vm1401, %v1376, %v900
        %v1410 = vsel %vm1401, %v1377, %v902
        %v1411 = vsel %vm1401, %v1378, %v904
        %v1412 = vsel %vm1401, %v1379, %v906
        %v1413 = vsel %vm1401, %v1380, %v908
        %v1414 = vsel %vm1401, %v1381, %v910
        %v1415 = vsel %vm1401, %v1382, %v912
        %v1416 = vsel %vm1401, %v1383, %v914
        %v1417 = vsel %vm1401, %v1384, %v916
        %v1418 = vsel %vm1401, %v1385, %v918
        %v1419 = vsel %vm1401, %v1386, %v920
        %v1420 = vsel %vm1401, %v1387, %v922
        %v1421 = vsel %vm1401, %v1388, %v924
        %v1422 = vsel %vm1401, %v1389, %v926
        %v1423 = vsel %vm1401, %v1390, %v928
        %v1424 = vsel %vm1401, %v1391, %v930
        %v1425 = vsel %vm1401, %v1392, %v932
        %v1426 = vsel %vm1401, %v1393, %v934
        %v1427 = vsel %vm1401, %v1394, %v936
        %v1428 = vsel %vm1401, %v1395, %v938
        %v1429 = vsel %vm1401, %v1396, %v940
        %v1430 = vsel %vm1401, %v1397, %v942
        %v1431 = vsel %vm1401, %v1398, %v944
        %v1432 = vsel %vm1401, %v1399, %v946
        %v1433 = vsel %vm1401, %v1400, %v948
        %vm1434 = vcmask 392192
        %v1435 = vsel %vm1434, %v1402, %v982
        %v1436 = vsel %vm1434, %v1403, %v984
        %v1437 = vsel %vm1434, %v1404, %v986
        %v1438 = vsel %vm1434, %v1405, %v988
        %v1439 = vsel %vm1434, %v1406, %v990
        %v1440 = vsel %vm1434, %v1407, %v992
        %v1441 = vsel %vm1434, %v1408, %v994
        %v1442 = vsel %vm1434, %v1409, %v996
        %v1443 = vsel %vm1434, %v1410, %v998
        %v1444 = vsel %vm1434, %v1411, %v1000
        %v1445 = vsel %vm1434, %v1412, %v1002
        %v1446 = vsel %vm1434, %v1413, %v1004
        %v1447 = vsel %vm1434, %v1414, %v1006
        %v1448 = vsel %vm1434, %v1415, %v1008
        %v1449 = vsel %vm1434, %v1416, %v1010
        %v1450 = vsel %vm1434, %v1417, %v1012
        %v1451 = vsel %vm1434, %v1418, %v1014
        %v1452 = vsel %vm1434, %v1419, %v1016
        %v1453 = vsel %vm1434, %v1420, %v1018
        %v1454 = vsel %vm1434, %v1421, %v1020
        %v1455 = vsel %vm1434, %v1422, %v1022
        %v1456 = vsel %vm1434, %v1423, %v1024
        %v1457 = vsel %vm1434, %v1424, %v1026
        %v1458 = vsel %vm1434, %v1425, %v1028
        %v1459 = vsel %vm1434, %v1426, %v1030
        %v1460 = vsel %vm1434, %v1427, %v1032
        %v1461 = vsel %vm1434, %v1428, %v1034
        %v1462 = vsel %vm1434, %v1429, %v1036
        %v1463 = vsel %vm1434, %v1430, %v1038
        %v1464 = vsel %vm1434, %v1431, %v1040
        %v1465 = vsel %vm1434, %v1432, %v1042
        %v1466 = vsel %vm1434, %v1433, %v1044
        %vm1467 = vcmask 457728
        %v1468 = vsel %vm1467, %v1435, %v1078
        %v1469 = vsel %vm1467, %v1436, %v1080
        %v1470 = vsel %vm1467, %v1437, %v1082
        %v1471 = vsel %vm1467, %v1438, %v1084
        %v1472 = vsel %vm1467, %v1439, %v1086
        %v1473 = vsel %vm1467, %v1440, %v1088
        %v1474 = vsel %vm1467, %v1441, %v1090
        %v1475 = vsel %vm1467, %v1442, %v1092
        %v1476 = vsel %vm1467, %v1443, %v1094
        %v1477 = vsel %vm1467, %v1444, %v1096
        %v1478 = vsel %vm1467, %v1445, %v1098
        %v1479 = vsel %vm1467, %v1446, %v1100
        %v1480 = vsel %vm1467, %v1447, %v1102
        %v1481 = vsel %vm1467, %v1448, %v1104
        %v1482 = vsel %vm1467, %v1449, %v1106
        %v1483 = vsel %vm1467, %v1450, %v1108
        %v1484 = vsel %vm1467, %v1451, %v1110
        %v1485 = vsel %vm1467, %v1452, %v1112
        %v1486 = vsel %vm1467, %v1453, %v1114
        %v1487 = vsel %vm1467, %v1454, %v1116
        %v1488 = vsel %vm1467, %v1455, %v1118
        %v1489 = vsel %vm1467, %v1456, %v1120
        %v1490 = vsel %vm1467, %v1457, %v1122
        %v1491 = vsel %vm1467, %v1458, %v1124
        %v1492 = vsel %vm1467, %v1459, %v1126
        %v1493 = vsel %vm1467, %v1460, %v1128
        %v1494 = vsel %vm1467, %v1461, %v1130
        %v1495 = vsel %vm1467, %v1462, %v1132
        %v1496 = vsel %vm1467, %v1463, %v1134
        %v1497 = vsel %vm1467, %v1464, %v1136
        %v1498 = vsel %vm1467, %v1465, %v1138
        %v1499 = vsel %vm1467, %v1466, %v1140
        %vm1500 = vcmask 523264
        %v1501 = vsel %vm1500, %v1468, %v1174
        %v1502 = vsel %vm1500, %v1469, %v1176
        %v1503 = vsel %vm1500, %v1470, %v1178
        %v1504 = vsel %vm1500, %v1471, %v1180
        %v1505 = vsel %vm1500, %v1472, %v1182
        %v1506 = vsel %vm1500, %v1473, %v1184
        %v1507 = vsel %vm1500, %v1474, %v1186
        %v1508 = vsel %vm1500, %v1475, %v1188
        %v1509 = vsel %vm1500, %v1476, %v1190
        %v1510 = vsel %vm1500, %v1477, %v1192
        %v1511 = vsel %vm1500, %v1478, %v1194
        %v1512 = vsel %vm1500, %v1479, %v1196
        %v1513 = vsel %vm1500, %v1480, %v1198
        %v1514 = vsel %vm1500, %v1481, %v1200
        %v1515 = vsel %vm1500, %v1482, %v1202
        %v1516 = vsel %vm1500, %v1483, %v1204
        %v1517 = vsel %vm1500, %v1484, %v1206
        %v1518 = vsel %vm1500, %v1485, %v1208
        %v1519 = vsel %vm1500, %v1486, %v1210
        %v1520 = vsel %vm1500, %v1487, %v1212
        %v1521 = vsel %vm1500, %v1488, %v1214
        %v1522 = vsel %vm1500, %v1489, %v1216
        %v1523 = vsel %vm1500, %v1490, %v1218
        %v1524 = vsel %vm1500, %v1491, %v1220
        %v1525 = vsel %vm1500, %v1492, %v1222
        %v1526 = vsel %vm1500, %v1493, %v1224
        %v1527 = vsel %vm1500, %v1494, %v1226
        %v1528 = vsel %vm1500, %v1495, %v1228
        %v1529 = vsel %vm1500, %v1496, %v1230
        %v1530 = vsel %vm1500, %v1497, %v1232
        %v1531 = vsel %vm1500, %v1498, %v1234
        %v1532 = vsel %vm1500, %v1499, %v1236
        %vm1533 = vcmask 588800
        %v1535 = vsel %vm1533, %v1501, 0
        %v1538 = vsel %vm1533, %v1502, 0
        %v1541 = vsel %vm1533, %v1503, 0
        %v1544 = vsel %vm1533, %v1504, 0
        %v1547 = vsel %vm1533, %v1505, 0
        %v1550 = vsel %vm1533, %v1506, 0
        %v1553 = vsel %vm1533, %v1507, 0
        %v1556 = vsel %vm1533, %v1508, 0
        %v1559 = vsel %vm1533, %v1509, 0
        %v1562 = vsel %vm1533, %v1510, 0
        %v1565 = vsel %vm1533, %v1511, 0
        %v1568 = vsel %vm1533, %v1512, 0
        %v1571 = vsel %vm1533, %v1513, 0
        %v1574 = vsel %vm1533, %v1514, 0
        %v1577 = vsel %vm1533, %v1515, 0
        %v1580 = vsel %vm1533, %v1516, 0
        %v1583 = vsel %vm1533, %v1517, 0
        %v1586 = vsel %vm1533, %v1518, 0
        %v1589 = vsel %vm1533, %v1519, 0
        %v1592 = vsel %vm1533, %v1520, 0
        %v1595 = vsel %vm1533, %v1521, 0
        %v1598 = vsel %vm1533, %v1522, 0
        %v1601 = vsel %vm1533, %v1523, 0
        %v1604 = vsel %vm1533, %v1524, 0
        %v1607 = vsel %vm1533, %v1525, 0
        %v1610 = vsel %vm1533, %v1526, 0
        %v1613 = vsel %vm1533, %v1527, 0
        %v1616 = vsel %vm1533, %v1528, 0
        %v1619 = vsel %vm1533, %v1529, 0
        %v1622 = vsel %vm1533, %v1530, 0
        %v1625 = vsel %vm1533, %v1531, 0
        %v1628 = vsel %vm1533, %v1532, 0
        %1630 = vmatprep.subr.mxu0 0.0
        %1631 = vmatpush1.msra.mxu0 %v256
        %1632 = vmatprep.subr.mxu0 0.0
        %1633 = vmatpush1.msra.mxu0 %v257
        %1634 = vmatprep.subr.mxu0 0.0
        %1635 = vmatpush1.msra.mxu0 %v258
        %1636 = vmatprep.subr.mxu0 0.0
        %1637 = vmatpush1.msra.mxu0 %v259
        %1638 = vmatprep.subr.mxu0 0.0
        %1639 = vmatpush1.msra.mxu0 %v260
        %1640 = vmatprep.subr.mxu0 0.0
        %1641 = vmatpush1.msra.mxu0 %v261
        %1642 = vmatprep.subr.mxu0 0.0
        %1643 = vmatpush1.msra.mxu0 %v262
        %1644 = vmatprep.subr.mxu0 0.0
        %1645 = vmatpush1.msra.mxu0 %v263
        %1646 = vmatprep.subr.mxu0 0.0
        %1647 = vmatpush1.msra.mxu0 %v264
        %1648 = vmatprep.subr.mxu0 0.0
        %1649 = vmatpush1.msra.mxu0 0.0
        %1650 = vmatprep.subr.mxu0 0.0
        %1651 = vmatpush1.msra.mxu0 0.0
        %1652 = vmatprep.subr.mxu0 0.0
        %1653 = vmatpush1.msra.mxu0 0.0
        %1654 = vmatprep.subr.mxu0 0.0
        %1655 = vmatpush1.msra.mxu0 0.0
        %1656 = vmatprep.subr.mxu0 0.0
        %1657 = vmatpush1.msra.mxu0 0.0
        %1658 = vmatprep.subr.mxu0 0.0
        %1659 = vmatpush1.msra.mxu0 0.0
        %1660 = vmatprep.subr.mxu0 0.0
        %1661 = vmatpush1.msra.mxu0 0.0
        %1662 = vmatprep.subr.mxu0 0.0
        %1663 = vmatpush1.msra.mxu0 0.0
        %1664 = vmatprep.subr.mxu0 0.0
        %1665 = vmatpush1.msra.mxu0 0.0
        %1666 = vmatprep.subr.mxu0 0.0
        %1667 = vmatpush1.msra.mxu0 0.0
        %1668 = vmatprep.subr.mxu0 0.0
        %1669 = vmatpush1.msra.mxu0 0.0
        %1670 = vmatprep.subr.mxu0 0.0
        %1671 = vmatpush1.msra.mxu0 0.0
        %1672 = vmatprep.subr.mxu0 0.0
        %1673 = vmatpush1.msra.mxu0 0.0
        %1674 = vmatprep.subr.mxu0 0.0
        %1675 = vmatpush1.msra.mxu0 0.0
        %1676 = vmatprep.subr.mxu0 0.0
        %1677 = vmatpush1.msra.mxu0 0.0
        %1678 = vmatprep.subr.mxu0 0.0
        %1679 = vmatpush1.msra.mxu0 0.0
        %1680 = vmatprep.subr.mxu0 0.0
        %1681 = vmatpush1.msra.mxu0 0.0
        %1682 = vmatprep.subr.mxu0 0.0
        %1683 = vmatpush1.msra.mxu0 0.0
        %1684 = vmatprep.subr.mxu0 0.0
        %1685 = vmatpush1.msra.mxu0 0.0
        %1686 = vmatprep.subr.mxu0 0.0
        %1687 = vmatpush1.msra.mxu0 0.0
        %1688 = vmatprep.subr.mxu0 0.0
        %1689 = vmatpush1.msra.mxu0 0.0
        %1690 = vmatprep.subr.mxu0 0.0
        %1691 = vmatpush1.msra.mxu0 0.0
        %1692 = vmatprep.subr.mxu0 0.0
        %1693 = vmatpush1.msra.mxu0 0.0
        %1694 = vmatprep.mubr.f32.mxu0 0.0
        %1695 = vmatmul.mubr.f32.gmra.mrb[0].mxu0 %v1535
        %v1696 = vpop.f32.mrb[0].mxu0
        %v1697 = vadd.f32 0.0, %v1696
        %v1698 = vpop.f32.mrb[0].mxu0
        %1699 = vmatprep.mubr.f32.mxu0 0.0
        %1700 = vmatmul.mubr.f32.gmra.mrb[0].mxu0 %v1538
        %v1701 = vpop.f32.mrb[0].mxu0
        %v1702 = vadd.f32 0.0, %v1701
        %v1703 = vpop.f32.mrb[0].mxu0
        %1704 = vmatprep.mubr.f32.mxu0 0.0
        %1705 = vmatmul.mubr.f32.gmra.mrb[0].mxu0 %v1541
        %v1706 = vpop.f32.mrb[0].mxu0
        %v1707 = vadd.f32 0.0, %v1706
        %v1708 = vpop.f32.mrb[0].mxu0
        %1709 = vmatprep.mubr.f32.mxu0 0.0
        %1710 = vmatmul.mubr.f32.gmra.mrb[0].mxu0 %v1544
        %v1711 = vpop.f32.mrb[0].mxu0
        %v1712 = vadd.f32 0.0, %v1711
        %v1713 = vpop.f32.mrb[0].mxu0
        %1714 = vmatprep.mubr.f32.mxu0 0.0
        %1715 = vmatmul.mubr.f32.gmra.mrb[0].mxu0 %v1547
        %v1716 = vpop.f32.mrb[0].mxu0
        %v1717 = vadd.f32 0.0, %v1716
        %v1718 = vpop.f32.mrb[0].mxu0
        %1719 = vmatprep.mubr.f32.mxu0 0.0
        %1720 = vmatmul.mubr.f32.gmra.mrb[0].mxu0 %v1550
        %v1721 = vpop.f32.mrb[0].mxu0
        %v1722 = vadd.f32 0.0, %v1721
        %v1723 = vpop.f32.mrb[0].mxu0
        %1724 = vmatprep.mubr.f32.mxu0 0.0
        %1725 = vmatmul.mubr.f32.gmra.mrb[0].mxu0 %v1553
        %v1726 = vpop.f32.mrb[0].mxu0
        %v1727 = vadd.f32 0.0, %v1726
        %v1728 = vpop.f32.mrb[0].mxu0
        %1729 = vmatprep.mubr.f32.mxu0 0.0
        %1730 = vmatmul.mubr.f32.gmra.mrb[0].mxu0 %v1556
        %v1731 = vpop.f32.mrb[0].mxu0
        %v1732 = vadd.f32 0.0, %v1731
        %v1733 = vpop.f32.mrb[0].mxu0
        %1734 = vmatprep.mubr.f32.mxu0 0.0
        %1735 = vmatmul.mubr.f32.gmra.mrb[0].mxu0 %v1559
        %v1736 = vpop.f32.mrb[0].mxu0
        %v1737 = vadd.f32 0.0, %v1736
        %v1738 = vpop.f32.mrb[0].mxu0
        %1739 = vmatprep.mubr.f32.mxu0 0.0
        %1740 = vmatmul.mubr.f32.gmra.mrb[0].mxu0 %v1562
        %v1741 = vpop.f32.mrb[0].mxu0
        %v1742 = vadd.f32 0.0, %v1741
        %v1743 = vpop.f32.mrb[0].mxu0
        %1744 = vmatprep.mubr.f32.mxu0 0.0
        %1745 = vmatmul.mubr.f32.gmra.mrb[0].mxu0 %v1565
        %v1746 = vpop.f32.mrb[0].mxu0
        %v1747 = vadd.f32 0.0, %v1746
        %v1748 = vpop.f32.mrb[0].mxu0
        %1749 = vmatprep.mubr.f32.mxu0 0.0
        %1750 = vmatmul.mubr.f32.gmra.mrb[0].mxu0 %v1568
        %v1751 = vpop.f32.mrb[0].mxu0
        %v1752 = vadd.f32 0.0, %v1751
        %v1753 = vpop.f32.mrb[0].mxu0
        %1754 = vmatprep.mubr.f32.mxu0 0.0
        %1755 = vmatmul.mubr.f32.gmra.mrb[0].mxu0 %v1571
        %v1756 = vpop.f32.mrb[0].mxu0
        %v1757 = vadd.f32 0.0, %v1756
        %v1758 = vpop.f32.mrb[0].mxu0
        %1759 = vmatprep.mubr.f32.mxu0 0.0
        %1760 = vmatmul.mubr.f32.gmra.mrb[0].mxu0 %v1574
        %v1761 = vpop.f32.mrb[0].mxu0
        %v1762 = vadd.f32 0.0, %v1761
        %v1763 = vpop.f32.mrb[0].mxu0
        %1764 = vmatprep.mubr.f32.mxu0 0.0
        %1765 = vmatmul.mubr.f32.gmra.mrb[0].mxu0 %v1577
        %v1766 = vpop.f32.mrb[0].mxu0
        %v1767 = vadd.f32 0.0, %v1766
        %v1768 = vpop.f32.mrb[0].mxu0
        %1769 = vmatprep.mubr.f32.mxu0 0.0
        %1770 = vmatmul.mubr.f32.gmra.mrb[0].mxu0 %v1580
        %v1771 = vpop.f32.mrb[0].mxu0
        %v1772 = vadd.f32 0.0, %v1771
        %v1773 = vpop.f32.mrb[0].mxu0
        %1774 = vmatprep.mubr.f32.mxu0 0.0
        %1775 = vmatmul.mubr.f32.gmra.mrb[0].mxu0 %v1583
        %v1776 = vpop.f32.mrb[0].mxu0
        %v1777 = vadd.f32 0.0, %v1776
        %v1778 = vpop.f32.mrb[0].mxu0
        %1779 = vmatprep.mubr.f32.mxu0 0.0
        %1780 = vmatmul.mubr.f32.gmra.mrb[0].mxu0 %v1586
        %v1781 = vpop.f32.mrb[0].mxu0
        %v1782 = vadd.f32 0.0, %v1781
        %v1783 = vpop.f32.mrb[0].mxu0
        %1784 = vmatprep.mubr.f32.mxu0 0.0
        %1785 = vmatmul.mubr.f32.gmra.mrb[0].mxu0 %v1589
        %v1786 = vpop.f32.mrb[0].mxu0
        %v1787 = vadd.f32 0.0, %v1786
        %v1788 = vpop.f32.mrb[0].mxu0
        %1789 = vmatprep.mubr.f32.mxu0 0.0
        %1790 = vmatmul.mubr.f32.gmra.mrb[0].mxu0 %v1592
        %v1791 = vpop.f32.mrb[0].mxu0
        %v1792 = vadd.f32 0.0, %v1791
        %v1793 = vpop.f32.mrb[0].mxu0
        %1794 = vmatprep.mubr.f32.mxu0 0.0
        %1795 = vmatmul.mubr.f32.gmra.mrb[0].mxu0 %v1595
        %v1796 = vpop.f32.mrb[0].mxu0
        %v1797 = vadd.f32 0.0, %v1796
        %v1798 = vpop.f32.mrb[0].mxu0
        %1799 = vmatprep.mubr.f32.mxu0 0.0
        %1800 = vmatmul.mubr.f32.gmra.mrb[0].mxu0 %v1598
        %v1801 = vpop.f32.mrb[0].mxu0
        %v1802 = vadd.f32 0.0, %v1801
        %v1803 = vpop.f32.mrb[0].mxu0
        %1804 = vmatprep.mubr.f32.mxu0 0.0
        %1805 = vmatmul.mubr.f32.gmra.mrb[0].mxu0 %v1601
        %v1806 = vpop.f32.mrb[0].mxu0
        %v1807 = vadd.f32 0.0, %v1806
        %v1808 = vpop.f32.mrb[0].mxu0
        %1809 = vmatprep.mubr.f32.mxu0 0.0
        %1810 = vmatmul.mubr.f32.gmra.mrb[0].mxu0 %v1604
        %v1811 = vpop.f32.mrb[0].mxu0
        %v1812 = vadd.f32 0.0, %v1811
        %v1813 = vpop.f32.mrb[0].mxu0
        %1814 = vmatprep.mubr.f32.mxu0 0.0
        %1815 = vmatmul.mubr.f32.gmra.mrb[0].mxu0 %v1607
        %v1816 = vpop.f32.mrb[0].mxu0
        %v1817 = vadd.f32 0.0, %v1816
        %v1818 = vpop.f32.mrb[0].mxu0
        %1819 = vmatprep.mubr.f32.mxu0 0.0
        %1820 = vmatmul.mubr.f32.gmra.mrb[0].mxu0 %v1610
        %v1821 = vpop.f32.mrb[0].mxu0
        %v1822 = vadd.f32 0.0, %v1821
        %v1823 = vpop.f32.mrb[0].mxu0
        %1824 = vmatprep.mubr.f32.mxu0 0.0
        %1825 = vmatmul.mubr.f32.gmra.mrb[0].mxu0 %v1613
        %v1826 = vpop.f32.mrb[0].mxu0
        %v1827 = vadd.f32 0.0, %v1826
        %v1828 = vpop.f32.mrb[0].mxu0
        %1829 = vmatprep.mubr.f32.mxu0 0.0
        %1830 = vmatmul.mubr.f32.gmra.mrb[0].mxu0 %v1616
        %v1831 = vpop.f32.mrb[0].mxu0
        %v1832 = vadd.f32 0.0, %v1831
        %v1833 = vpop.f32.mrb[0].mxu0
        %1834 = vmatprep.mubr.f32.mxu0 0.0
        %1835 = vmatmul.mubr.f32.gmra.mrb[0].mxu0 %v1619
        %v1836 = vpop.f32.mrb[0].mxu0
        %v1837 = vadd.f32 0.0, %v1836
        %v1838 = vpop.f32.mrb[0].mxu0
        %1839 = vmatprep.mubr.f32.mxu0 0.0
        %1840 = vmatmul.mubr.f32.gmra.mrb[0].mxu0 %v1622
        %v1841 = vpop.f32.mrb[0].mxu0
        %v1842 = vadd.f32 0.0, %v1841
        %v1843 = vpop.f32.mrb[0].mxu0
        %1844 = vmatprep.mubr.f32.mxu0 0.0
        %1845 = vmatmul.mubr.f32.gmra.mrb[0].mxu0 %v1625
        %v1846 = vpop.f32.mrb[0].mxu0
        %v1847 = vadd.f32 0.0, %v1846
        %v1848 = vpop.f32.mrb[0].mxu0
        %1849 = vmatprep.mubr.f32.mxu0 0.0
        %1850 = vmatmul.mubr.f32.gmra.mrb[0].mxu0 %v1628
        %v1851 = vpop.f32.mrb[0].mxu0
        %v1852 = vadd.f32 0.0, %v1851
        %v1853 = vpop.f32.mrb[0].mxu0
        %1854 = vdwg.mxu0
        %1855 = vst.msk [vmem:[%s194] sm:$0xff] %vm1269, %v1697
        %1856 = vst.msk [vmem:[%s194 + $0x8] sm:$0xff] %vm1269, %v1702
        %1857 = vst.msk [vmem:[%s194 + $0x10] sm:$0xff] %vm1269, %v1707
        %1858 = vst.msk [vmem:[%s194 + $0x18] sm:$0xff] %vm1269, %v1712
        %1859 = vst.msk [vmem:[%s194 + $0x20] sm:$0xff] %vm1269, %v1717
        %1860 = vst.msk [vmem:[%s194 + $0x28] sm:$0xff] %vm1269, %v1722
        %1861 = vst.msk [vmem:[%s194 + $0x30] sm:$0xff] %vm1269, %v1727
        %1862 = vst.msk [vmem:[%s194 + $0x38] sm:$0xff] %vm1269, %v1732
        %1863 = vst.msk [vmem:[%s194 + $0x40] sm:$0xff] %vm1269, %v1737
        %1864 = vst.msk [vmem:[%s194 + $0x48] sm:$0xff] %vm1269, %v1742
        %1865 = vst.msk [vmem:[%s194 + $0x50] sm:$0xff] %vm1269, %v1747
        %1866 = vst.msk [vmem:[%s194 + $0x58] sm:$0xff] %vm1269, %v1752
        %1867 = vst.msk [vmem:[%s194 + $0x60] sm:$0xff] %vm1269, %v1757
        %1868 = vst.msk [vmem:[%s194 + $0x68] sm:$0xff] %vm1269, %v1762
        %1869 = vst.msk [vmem:[%s194 + $0x70] sm:$0xff] %vm1269, %v1767
        %1870 = vst.msk [vmem:[%s194 + $0x78] sm:$0xff] %vm1269, %v1772
        %1871 = vst.msk [vmem:[%s194 + $0x80] sm:$0xff] %vm1269, %v1777
        %1872 = vst.msk [vmem:[%s194 + $0x88] sm:$0xff] %vm1269, %v1782
        %1873 = vst.msk [vmem:[%s194 + $0x90] sm:$0xff] %vm1269, %v1787
        %1874 = vst.msk [vmem:[%s194 + $0x98] sm:$0xff] %vm1269, %v1792
        %1875 = vst.msk [vmem:[%s194 + $0xa0] sm:$0xff] %vm1269, %v1797
        %1876 = vst.msk [vmem:[%s194 + $0xa8] sm:$0xff] %vm1269, %v1802
        %1877 = vst.msk [vmem:[%s194 + $0xb0] sm:$0xff] %vm1269, %v1807
        %1878 = vst.msk [vmem:[%s194 + $0xb8] sm:$0xff] %vm1269, %v1812
        %1879 = vst.msk [vmem:[%s194 + $0xc0] sm:$0xff] %vm1269, %v1817
        %1880 = vst.msk [vmem:[%s194 + $0xc8] sm:$0xff] %vm1269, %v1822
        %1881 = vst.msk [vmem:[%s194 + $0xd0] sm:$0xff] %vm1269, %v1827
        %1882 = vst.msk [vmem:[%s194 + $0xd8] sm:$0xff] %vm1269, %v1832
        %1883 = vst.msk [vmem:[%s194 + $0xe0] sm:$0xff] %vm1269, %v1837
        %1884 = vst.msk [vmem:[%s194 + $0xe8] sm:$0xff] %vm1269, %v1842
        %1885 = vst.msk [vmem:[%s194 + $0xf0] sm:$0xff] %vm1269, %v1847
        %1886 = vst.msk [vmem:[%s194 + $0xf8] sm:$0xff] %vm1269, %v1852
        %v1887 = vld [vmem:[#allocation2] sm:$0x1]
        %v1888 = vsel %vm1269, %v1697, 0.0
        %v1889 = vsel %vm1269, %v1702, 0.0
        %v1890 = vadd.f32 %v1888, %v1889
        %v1891 = vsel %vm1269, %v1707, 0.0
        %v1892 = vadd.f32 %v1890, %v1891
        %v1893 = vsel %vm1269, %v1712, 0.0
        %v1894 = vadd.f32 %v1892, %v1893
        %v1895 = vsel %vm1269, %v1717, 0.0
        %v1896 = vadd.f32 %v1894, %v1895
        %v1897 = vsel %vm1269, %v1722, 0.0
        %v1898 = vadd.f32 %v1896, %v1897
        %v1899 = vsel %vm1269, %v1727, 0.0
        %v1900 = vadd.f32 %v1898, %v1899
        %v1901 = vsel %vm1269, %v1732, 0.0
        %v1902 = vadd.f32 %v1900, %v1901
        %v1903 = vsel %vm1269, %v1737, 0.0
        %v1904 = vadd.f32 %v1902, %v1903
        %v1905 = vsel %vm1269, %v1742, 0.0
        %v1906 = vadd.f32 %v1904, %v1905
        %v1907 = vsel %vm1269, %v1747, 0.0
        %v1908 = vadd.f32 %v1906, %v1907
        %v1909 = vsel %vm1269, %v1752, 0.0
        %v1910 = vadd.f32 %v1908, %v1909
        %v1911 = vsel %vm1269, %v1757, 0.0
        %v1912 = vadd.f32 %v1910, %v1911
        %v1913 = vsel %vm1269, %v1762, 0.0
        %v1914 = vadd.f32 %v1912, %v1913
        %v1915 = vsel %vm1269, %v1767, 0.0
        %v1916 = vadd.f32 %v1914, %v1915
        %v1917 = vsel %vm1269, %v1772, 0.0
        %v1918 = vadd.f32 %v1916, %v1917
        %v1919 = vsel %vm1269, %v1777, 0.0
        %v1920 = vadd.f32 %v1918, %v1919
        %v1921 = vsel %vm1269, %v1782, 0.0
        %v1922 = vadd.f32 %v1920, %v1921
        %v1923 = vsel %vm1269, %v1787, 0.0
        %v1924 = vadd.f32 %v1922, %v1923
        %v1925 = vsel %vm1269, %v1792, 0.0
        %v1926 = vadd.f32 %v1924, %v1925
        %v1927 = vsel %vm1269, %v1797, 0.0
        %v1928 = vadd.f32 %v1926, %v1927
        %v1929 = vsel %vm1269, %v1802, 0.0
        %v1930 = vadd.f32 %v1928, %v1929
        %v1931 = vsel %vm1269, %v1807, 0.0
        %v1932 = vadd.f32 %v1930, %v1931
        %v1933 = vsel %vm1269, %v1812, 0.0
        %v1934 = vadd.f32 %v1932, %v1933
        %v1935 = vsel %vm1269, %v1817, 0.0
        %v1936 = vadd.f32 %v1934, %v1935
        %v1937 = vsel %vm1269, %v1822, 0.0
        %v1938 = vadd.f32 %v1936, %v1937
        %v1939 = vsel %vm1269, %v1827, 0.0
        %v1940 = vadd.f32 %v1938, %v1939
        %v1941 = vsel %vm1269, %v1832, 0.0
        %v1942 = vadd.f32 %v1940, %v1941
        %v1943 = vsel %vm1269, %v1837, 0.0
        %v1944 = vadd.f32 %v1942, %v1943
        %v1945 = vsel %vm1269, %v1842, 0.0
        %v1946 = vadd.f32 %v1944, %v1945
        %v1947 = vsel %vm1269, %v1847, 0.0
        %v1948 = vadd.f32 %v1946, %v1947
        %v1949 = vsel %vm1269, %v1852, 0.0
        %v1950 = vadd.f32 %v1948, %v1949
        %v1951 = vrot.slane %v1950, 4
        %v1952 = vadd.f32 %v1950, %v1951
        %v1953 = vrot.slane %v1952, 2
        %v1954 = vadd.f32 %v1952, %v1953
        %v1955 = vrot.slane %v1954, 1
        %v1956 = vadd.f32 %v1954, %v1955
        %v1957 = vadd.f32 %v1887, %v1956
        %vm1958 = vcmask 57344
        %1959 = vst.msk [vmem:[#allocation2] sm:$0x1] %vm1958, %v1957
        %v1960 = vld [vmem:[#allocation4] sm:$0x1]
        %v1961 = vmul.f32 %v1697, %v1697
        %v1962 = vmul.f32 %v1702, %v1702
        %v1963 = vmul.f32 %v1707, %v1707
        %v1964 = vmul.f32 %v1712, %v1712
        %v1965 = vmul.f32 %v1717, %v1717
        %v1966 = vmul.f32 %v1722, %v1722
        %v1967 = vmul.f32 %v1727, %v1727
        %v1968 = vmul.f32 %v1732, %v1732
        %v1969 = vmul.f32 %v1737, %v1737
        %v1970 = vmul.f32 %v1742, %v1742
        %v1971 = vmul.f32 %v1747, %v1747
        %v1972 = vmul.f32 %v1752, %v1752
        %v1973 = vmul.f32 %v1757, %v1757
        %v1974 = vmul.f32 %v1762, %v1762
        %v1975 = vmul.f32 %v1767, %v1767
        %v1976 = vmul.f32 %v1772, %v1772
        %v1977 = vmul.f32 %v1777, %v1777
        %v1978 = vmul.f32 %v1782, %v1782
        %v1979 = vmul.f32 %v1787, %v1787
        %v1980 = vmul.f32 %v1792, %v1792
        %v1981 = vmul.f32 %v1797, %v1797
        %v1982 = vmul.f32 %v1802, %v1802
        %v1983 = vmul.f32 %v1807, %v1807
        %v1984 = vmul.f32 %v1812, %v1812
        %v1985 = vmul.f32 %v1817, %v1817
        %v1986 = vmul.f32 %v1822, %v1822
        %v1987 = vmul.f32 %v1827, %v1827
        %v1988 = vmul.f32 %v1832, %v1832
        %v1989 = vmul.f32 %v1837, %v1837
        %v1990 = vmul.f32 %v1842, %v1842
        %v1991 = vmul.f32 %v1847, %v1847
        %v1992 = vmul.f32 %v1852, %v1852
        %v1993 = vsel %vm1269, %v1961, 0.0
        %v1994 = vsel %vm1269, %v1962, 0.0
        %v1995 = vadd.f32 %v1993, %v1994
        %v1996 = vsel %vm1269, %v1963, 0.0
        %v1997 = vadd.f32 %v1995, %v1996
        %v1998 = vsel %vm1269, %v1964, 0.0
        %v1999 = vadd.f32 %v1997, %v1998
        %v2000 = vsel %vm1269, %v1965, 0.0
        %v2001 = vadd.f32 %v1999, %v2000
        %v2002 = vsel %vm1269, %v1966, 0.0
        %v2003 = vadd.f32 %v2001, %v2002
        %v2004 = vsel %vm1269, %v1967, 0.0
        %v2005 = vadd.f32 %v2003, %v2004
        %v2006 = vsel %vm1269, %v1968, 0.0
        %v2007 = vadd.f32 %v2005, %v2006
        %v2008 = vsel %vm1269, %v1969, 0.0
        %v2009 = vadd.f32 %v2007, %v2008
        %v2010 = vsel %vm1269, %v1970, 0.0
        %v2011 = vadd.f32 %v2009, %v2010
        %v2012 = vsel %vm1269, %v1971, 0.0
        %v2013 = vadd.f32 %v2011, %v2012
        %v2014 = vsel %vm1269, %v1972, 0.0
        %v2015 = vadd.f32 %v2013, %v2014
        %v2016 = vsel %vm1269, %v1973, 0.0
        %v2017 = vadd.f32 %v2015, %v2016
        %v2018 = vsel %vm1269, %v1974, 0.0
        %v2019 = vadd.f32 %v2017, %v2018
        %v2020 = vsel %vm1269, %v1975, 0.0
        %v2021 = vadd.f32 %v2019, %v2020
        %v2022 = vsel %vm1269, %v1976, 0.0
        %v2023 = vadd.f32 %v2021, %v2022
        %v2024 = vsel %vm1269, %v1977, 0.0
        %v2025 = vadd.f32 %v2023, %v2024
        %v2026 = vsel %vm1269, %v1978, 0.0
        %v2027 = vadd.f32 %v2025, %v2026
        %v2028 = vsel %vm1269, %v1979, 0.0
        %v2029 = vadd.f32 %v2027, %v2028
        %v2030 = vsel %vm1269, %v1980, 0.0
        %v2031 = vadd.f32 %v2029, %v2030
        %v2032 = vsel %vm1269, %v1981, 0.0
        %v2033 = vadd.f32 %v2031, %v2032
        %v2034 = vsel %vm1269, %v1982, 0.0
        %v2035 = vadd.f32 %v2033, %v2034
        %v2036 = vsel %vm1269, %v1983, 0.0
        %v2037 = vadd.f32 %v2035, %v2036
        %v2038 = vsel %vm1269, %v1984, 0.0
        %v2039 = vadd.f32 %v2037, %v2038
        %v2040 = vsel %vm1269, %v1985, 0.0
        %v2041 = vadd.f32 %v2039, %v2040
        %v2042 = vsel %vm1269, %v1986, 0.0
        %v2043 = vadd.f32 %v2041, %v2042
        %v2044 = vsel %vm1269, %v1987, 0.0
        %v2045 = vadd.f32 %v2043, %v2044
        %v2046 = vsel %vm1269, %v1988, 0.0
        %v2047 = vadd.f32 %v2045, %v2046
        %v2048 = vsel %vm1269, %v1989, 0.0
        %v2049 = vadd.f32 %v2047, %v2048
        %v2050 = vsel %vm1269, %v1990, 0.0
        %v2051 = vadd.f32 %v2049, %v2050
        %v2052 = vsel %vm1269, %v1991, 0.0
        %v2053 = vadd.f32 %v2051, %v2052
        %v2054 = vsel %vm1269, %v1992, 0.0
        %v2055 = vadd.f32 %v2053, %v2054
        %v2056 = vrot.slane %v2055, 4
        %v2057 = vadd.f32 %v2055, %v2056
        %v2058 = vrot.slane %v2057, 2
        %v2059 = vadd.f32 %v2057, %v2058
        %v2060 = vrot.slane %v2059, 1
        %v2061 = vadd.f32 %v2059, %v2060
        %v2062 = vadd.f32 %v1960, %v2061
        %2063 = vst.msk [vmem:[#allocation4] sm:$0x1] %vm1958, %v2062
        %p2064 = scmp.lt.s32.totalorder %s18, 1
        %s2065 = scalar_select %p2064, %s18, 1
        %s2066 = smul.addr %s2065, 32
        %s2067 = smul.addr %s2066, 8
        %s2068 = scalar_lea.vmem %s2, %s2067
        // Predicated region
        $region33: #{tpu_custom_call.1} parent=27 // pred_check
          %p2069 = pneg %p83
        $region34: #{tpu_custom_call.1} parent=27 // pred_check_branch
          %2071 = sbr.rel (%p2069) target = $region36
        $region35: #{tpu_custom_call.1} parent=27 // pred_region
          _
        $region36: #{tpu_custom_call.1} parent=27 // pred_fallthru
          _
        // Predicated region
        $region37: #{tpu_custom_call.1} parent=27 // pred_check
          %p2072 = pneg %p104
        $region38: #{tpu_custom_call.1} parent=27 // pred_check_branch
          %2074 = sbr.rel (%p2072) target = $region40
        $region39: #{tpu_custom_call.1} parent=27 // pred_region
          %s2076 = ssub.s32 16, 16
          %2077 = vsyncadd [#allocation3], %s2076
          %s2079 = sshll.u32 [#allocation2], 4
          %s2080 = int_to_ptr.vmem [resolvable:$true] %s2079
          %2082 = dma.vmem_to_hbm [thread:$0]  %s2080, 16, %s3, [#allocation3]
        $region40: #{tpu_custom_call.1} parent=27 // pred_fallthru
          _
        // Predicated region
        $region41: #{tpu_custom_call.1} parent=27 // pred_check
          %p2083 = pneg %p125
        $region42: #{tpu_custom_call.1} parent=27 // pred_check_branch
          %2085 = sbr.rel (%p2083) target = $region44
        $region43: #{tpu_custom_call.1} parent=27 // pred_region
          %s2087 = ssub.s32 16, 16
          %2088 = vsyncadd [#allocation5], %s2087
          %s2090 = sshll.u32 [#allocation4], 4
          %s2091 = int_to_ptr.vmem [resolvable:$true] %s2090
          %2093 = dma.vmem_to_hbm [thread:$0]  %s2091, 16, %s4, [#allocation5]
        $region44: #{tpu_custom_call.1} parent=27 // pred_fallthru
          _
        // Predicated region
        $region45: #{tpu_custom_call.1} parent=27 // pred_check
          %p2094 = pneg %p104
        $region46: #{tpu_custom_call.1} parent=27 // pred_check_branch
          %2096 = sbr.rel (%p2094) target = $region48
        $region47: #{tpu_custom_call.1} parent=27 // pred_region
          %2097 = dma.done [#allocation3], 16
        $region48: #{tpu_custom_call.1} parent=27 // pred_fallthru
          _
        // Predicated region
        $region49: #{tpu_custom_call.1} parent=27 // pred_check
          %p2098 = pneg %p125
        $region50: #{tpu_custom_call.1} parent=27 // pred_check_branch
          %2100 = sbr.rel (%p2098) target = $region52
        $region51: #{tpu_custom_call.1} parent=27 // pred_region
          %2101 = dma.done [#allocation5], 16
        $region52: #{tpu_custom_call.1} parent=27 // pred_fallthru
          _
      $region28: #{tpu_custom_call.1} parent=5 // pred_fallthru
        _
      %p2102 = scmp.le.s32.totalorder 2, %s13
      // Predicated region
      $region53: #{tpu_custom_call.1} parent=5 // pred_check
        %p2103 = pneg %p2102
      $region54: #{tpu_custom_call.1} parent=5 // pred_check_branch
        %2105 = sbr.rel (%p2103) target = $region56
      $region55: #{tpu_custom_call.1} parent=5 // pred_region
        %s2106 = ssub.s32 %s13, 2
        // Predicated region
        $region57: #{tpu_custom_call.1} parent=55 // pred_check
          %p2107 = pneg %p89
        $region58: #{tpu_custom_call.1} parent=55 // pred_check_branch
          %2109 = sbr.rel (%p2107) target = $region60
        $region59: #{tpu_custom_call.1} parent=55 // pred_region
          %p2110 = scmp.lt.s32.totalorder %s19, 1
          %s2111 = scalar_select %p2110, %s19, 1
          %s2112 = smul.addr %s2111, 32
          %s2113 = smul.addr %s2112, 8
          %s2114 = scalar_lea.vmem %s2, %s2113
        $region60: #{tpu_custom_call.1} parent=55 // pred_fallthru
          _
      $region56: #{tpu_custom_call.1} parent=5 // pred_fallthru
        _
    $region6: #{tpu_custom_call.1} parent=1 // loop_footer
      %s17 = sadd.s32 1, %s13
    $region7: #{tpu_custom_call.1} parent=1 // loop_footer_branch
      %12 = sbr.rel target = $region3
    $region8: #{tpu_custom_call.1} parent=1 // loop_exit
      _
    %2115 = vsyncpa [#allocation3], 1
    %s2116 = scalar_lea.sflag [#allocation3], 1
    %2117 = vsyncpa %s2116, 1
    %2118 = vsyncpa [#allocation5], 1

// kernel: tpu_custom_call.1
$region0: #{tpu_custom_call.1}
  #allocation0 [shape = 'u32[]', space=smem, size = 0x4, offset = 0x4, fixed_abs, tag = 'smem constant byte address 0x4 - core index']
  #allocation1 [shape = 'u32[144,128]{1,0:T(1,128)}', space=vmem, size = 0x12000, scoped, tag = 'internal scratch']
  %s0 = inlined_call_operand.vmem [shape: f32[2,18,18,8], index: 0, kind: input, shape index: {}]
  %s1 = inlined_call_operand.vmem [shape: f32[72,8], index: 1, kind: input, shape index: {}]
  %s2 = inlined_call_operand.vmem [shape: f32[2,256,8], index: 2, kind: output, shape index: {0}]
  %s3 = inlined_call_operand.hbm [shape: f32[1,8], index: 3, kind: output, shape index: {1}]
  %s4 = inlined_call_operand.hbm [shape: f32[1,8], index: 4, kind: output, shape index: {2}]
  %5 = xla_tuple %s2, %s3, %s4
  %s6 = sld [smem:[#allocation0]]
  $region61: #{tpu_custom_call.1} parent=0
    _
  %s8 = ssub.s32 1, %s6
  %s9 = scalar_select 0, %s8, %s6
  $region1: #{tpu_custom_call.1} parent=0
    #allocation2 [shape = 'u8[512]{0}', space=vmem, size = 0x400, scoped, tag = 'output window, operand 1, single buffered']
    #allocation3 [shape = 's32[2]{0}', space=sflag, size = 0x8, scoped, tag = 'scoped memory for tpu_custom_call.1']
    #allocation4 [shape = 'u8[512]{0}', space=vmem, size = 0x400, scoped, tag = 'output window, operand 2, single buffered']
    #allocation5 [shape = 's32[1]{0}', space=sflag, size = 0x4, scoped, tag = 'scoped memory for tpu_custom_call.1']
    %10 = vsyncpa [#allocation3], 0
    %11 = vsyncpa [#allocation5], 0
    loop: start=0, step=1, limit=4
    $region2: #{tpu_custom_call.1} parent=1 // loop_pre_header
      _
    $region3: #{tpu_custom_call.1} parent=1 // loop_header
      %s13 = sphi 0, %s17
      %p14 = scmp.ge.s32.totalorder %s13, 4
      %s23 = sphi 0, %s25
      %s26 = sphi 0, %s23
      %s27 = sphi 0, %s26
      %s43 = sphi 0, %s27
      %s47 = sphi 0, %s47
      %s49 = sphi 0, %s47
      %s50 = sphi 0, %s49
      %s64 = sphi 0, %s50
      %s70 = sphi 0, %s72
      %s73 = sphi 0, %s70
      %s74 = sphi 0, %s73
      %s90 = sphi 0, %s74
      %s94 = sphi 0, %s94
      %s96 = sphi 0, %s94
      %s97 = sphi 0, %s96
      %s111 = sphi 0, %s97
      %s115 = sphi 0, %s115
      %s117 = sphi 0, %s115
      %s118 = sphi 0, %s117
      %s132 = sphi 0, %s118
    $region4: #{tpu_custom_call.1} parent=1 // loop_header_branch
      %16 = sbr.rel (%p14) target = $region8
    $region5: #{tpu_custom_call.1} parent=1 // loop_body
      %s18 = ssub.s32 %s13, 1
      %s19 = ssub.s32 %s13, 2
      %s20 = sadd.s32 %s13, 1
      %s21 = ssub.s32 %s13, %s20
      %p22 = scmp.eq.s32.totalorder %s21, 0
      %s24 = sadd.s32 %s23, 1
      %s25 = scalar_select %p22, %s23, %s24
      %p28 = pneg %p22
      %p29 = scmp.eq.s32.totalorder %s13, 1
      %p30 = por %p28, %p29
      %p31 = scmp.ne.s32.totalorder %s23, %s26
      %p32 = scmp.eq.s32.totalorder %s13, 0
      %p33 = por %p31, %p32
      %p34 = scmp.ne.s32.totalorder %s23, %s26
      %p35 = scmp.eq.s32.totalorder %s18, 1
      %p36 = por %p34, %p35
      %p37 = scmp.ne.s32.totalorder %s26, %s27
      %p38 = scmp.eq.s32.totalorder %s18, 0
      %p39 = por %p37, %p38
      %p40 = scmp.ne.s32.totalorder %s26, %s27
      %p41 = scmp.eq.s32.totalorder %s19, 1
      %p42 = por %p40, %p41
      %p44 = scmp.ne.s32.totalorder %s27, %s43
      %p45 = scmp.eq.s32.totalorder %s19, 0
      %p46 = por %p44, %p45
      %s48 = sadd.s32 %s47, 1
      %p51 = scmp.eq.s32.totalorder %s13, 1
      %p52 = scmp.ne.s32.totalorder %s47, %s49
      %p53 = scmp.eq.s32.totalorder %s13, 0
      %p54 = por %p52, %p53
      %p55 = scmp.ne.s32.totalorder %s47, %s49
      %p56 = scmp.eq.s32.totalorder %s18, 1
      %p57 = por %p55, %p56
      %p58 = scmp.ne.s32.totalorder %s49, %s50
      %p59 = scmp.eq.s32.totalorder %s18, 0
      %p60 = por %p58, %p59
      %p61 = scmp.ne.s32.totalorder %s49, %s50
      %p62 = scmp.eq.s32.totalorder %s19, 1
      %p63 = por %p61, %p62
      %p65 = scmp.ne.s32.totalorder %s50, %s64
      %p66 = scmp.eq.s32.totalorder %s19, 0
      %p67 = por %p65, %p66
      %s68 = ssub.s32 %s13, %s20
      %p69 = scmp.eq.s32.totalorder %s68, 0
      %s71 = sadd.s32 %s70, 1
      %s72 = scalar_select %p69, %s70, %s71
      %p75 = pneg %p69
      %p76 = scmp.eq.s32.totalorder %s13, 1
      %p77 = por %p75, %p76
      %p78 = scmp.ne.s32.totalorder %s70, %s73
      %p79 = scmp.eq.s32.totalorder %s13, 0
      %p80 = por %p78, %p79
      %p81 = scmp.ne.s32.totalorder %s70, %s73
      %p82 = scmp.eq.s32.totalorder %s18, 1
      %p83 = por %p81, %p82
      %p84 = scmp.ne.s32.totalorder %s73, %s74
      %p85 = scmp.eq.s32.totalorder %s18, 0
      %p86 = por %p84, %p85
      %p87 = scmp.ne.s32.totalorder %s73, %s74
      %p88 = scmp.eq.s32.totalorder %s19, 1
      %p89 = por %p87, %p88
      %p91 = scmp.ne.s32.totalorder %s74, %s90
      %p92 = scmp.eq.s32.totalorder %s19, 0
      %p93 = por %p91, %p92
      %s95 = sadd.s32 %s94, 1
      %p98 = scmp.eq.s32.totalorder %s13, 1
      %p99 = scmp.ne.s32.totalorder %s94, %s96
      %p100 = scmp.eq.s32.totalorder %s13, 0
      %p101 = por %p99, %p100
      %p102 = scmp.ne.s32.totalorder %s94, %s96
      %p103 = scmp.eq.s32.totalorder %s18, 1
      %p104 = por %p102, %p103
      %p105 = scmp.ne.s32.totalorder %s96, %s97
      %p106 = scmp.eq.s32.totalorder %s18, 0
      %p107 = por %p105, %p106
      %p108 = scmp.ne.s32.totalorder %s96, %s97
      %p109 = scmp.eq.s32.totalorder %s19, 1
      %p110 = por %p108, %p109
      %p112 = scmp.ne.s32.totalorder %s97, %s111
      %p113 = scmp.eq.s32.totalorder %s19, 0
      %p114 = por %p112, %p113
      %s116 = sadd.s32 %s115, 1
      %p119 = scmp.eq.s32.totalorder %s13, 1
      %p120 = scmp.ne.s32.totalorder %s115, %s117
      %p121 = scmp.eq.s32.totalorder %s13, 0
      %p122 = por %p120, %p121
      %p123 = scmp.ne.s32.totalorder %s115, %s117
      %p124 = scmp.eq.s32.totalorder %s18, 1
      %p125 = por %p123, %p124
      %p126 = scmp.ne.s32.totalorder %s117, %s118
      %p127 = scmp.eq.s32.totalorder %s18, 0
      %p128 = por %p126, %p127
      %p129 = scmp.ne.s32.totalorder %s117, %s118
      %p130 = scmp.eq.s32.totalorder %s19, 1
      %p131 = por %p129, %p130
      %p133 = scmp.ne.s32.totalorder %s118, %s132
      %p134 = scmp.eq.s32.totalorder %s19, 0
      %p135 = por %p133, %p134
      %p136 = scmp.le.s32.totalorder 1, %s13
      %p137 = scmp.lt.s32.totalorder %s13, 3
      %p138 = pnand %p136, %p137
      %p139 = pneg %p138
      // Predicated region
      $region9: #{tpu_custom_call.1} parent=5 // pred_check
        _
      $region10: #{tpu_custom_call.1} parent=5 // pred_check_branch
        %141 = sbr.rel (%p138) target = $region12
      $region11: #{tpu_custom_call.1} parent=5 // pred_region
        %s142 = ssub.s32 %s13, 1
        // Predicated region
        $region13: #{tpu_custom_call.1} parent=11 // pred_check
          %p143 = pneg %p60
        $region14: #{tpu_custom_call.1} parent=11 // pred_check_branch
          %145 = sbr.rel (%p143) target = $region16
        $region15: #{tpu_custom_call.1} parent=11 // pred_region
          _
        $region16: #{tpu_custom_call.1} parent=11 // pred_fallthru
          _
      $region12: #{tpu_custom_call.1} parent=5 // pred_fallthru
        _
      %p146 = scmp.lt.s32.totalorder %s13, 2
      // Predicated region
      $region17: #{tpu_custom_call.1} parent=5 // pred_check
        %p147 = pneg %p146
      $region18: #{tpu_custom_call.1} parent=5 // pred_check_branch
        %149 = sbr.rel (%p147) target = $region20
      $region19: #{tpu_custom_call.1} parent=5 // pred_region
        // Predicated region
        $region21: #{tpu_custom_call.1} parent=19 // pred_check
          %p150 = pneg %p33
        $region22: #{tpu_custom_call.1} parent=19 // pred_check_branch
          %152 = sbr.rel (%p150) target = $region24
        $region23: #{tpu_custom_call.1} parent=19 // pred_region
          %p153 = scmp.lt.s32.totalorder %s13, 1
          %s154 = scalar_select %p153, %s13, 1
          %s155 = smul.addr %s154, 54
          %s156 = smul.addr %s155, 8
          %s157 = scalar_lea.vmem %s0, %s156
        $region24: #{tpu_custom_call.1} parent=19 // pred_fallthru
          _
      $region20: #{tpu_custom_call.1} parent=5 // pred_fallthru
        _
      %p158 = scmp.le.s32.totalorder 1, %s13
      %p159 = scmp.lt.s32.totalorder %s13, 3
      %p160 = pnand %p158, %p159
      %p161 = pneg %p160
      // Predicated region
      $region25: #{tpu_custom_call.1} parent=5 // pred_check
        _
      $region26: #{tpu_custom_call.1} parent=5 // pred_check_branch
        %163 = sbr.rel (%p160) target = $region28
      $region27: #{tpu_custom_call.1} parent=5 // pred_region
        %s164 = ssub.s32 %s13, 1
        %p165 = scmp.lt.s32.totalorder %s18, 1
        %s166 = scalar_select %p165, %s18, 1
        %s167 = smul.addr %s166, 54
        %s168 = smul.addr %s167, 8
        %s169 = scalar_lea.vmem %s0, %s168
        %p170 = pneg %p39
        %p171 = pneg %p36
        %p172 = pneg %p60
        %p173 = pneg %p57
        %p174 = pneg %p86
        %p175 = pneg %p83
        %p176 = scmp.lt.s32.totalorder %s18, 1
        %s177 = scalar_select %p176, %s18, 1
        %s178 = smul.addr %s177, 32
        %s179 = smul.addr %s178, 8
        %s180 = scalar_lea.vmem %s2, %s179
        %p181 = pneg %p107
        %p182 = pneg %p104
        %p183 = pneg %p128
        %p184 = pneg %p125
        %p185 = scmp.lt.s32.totalorder %s18, 1
        %s186 = scalar_select %p185, %s18, 1
        %s187 = smul.addr %s186, 54
        %s188 = smul.addr %s187, 8
        %s189 = scalar_lea.vmem %s0, %s188
        %p190 = scmp.lt.s32.totalorder %s18, 1
        %s191 = scalar_select %p190, %s18, 1
        %s192 = smul.addr %s191, 32
        %s193 = smul.addr %s192, 8
        %s194 = scalar_lea.vmem %s2, %s193
        %p195 = scmp.eq.s32.totalorder %s18, 0
        // Predicated region
        $region29: #{tpu_custom_call.1} parent=27 // pred_check
          %p196 = pneg %p195
        $region30: #{tpu_custom_call.1} parent=27 // pred_check_branch
          %198 = sbr.rel (%p196) target = $region32
        $region31: #{tpu_custom_call.1} parent=27 // pred_region
          %vm199 = vcmask 57344
          %200 = vst.msk [vmem:[#allocation2] sm:$0x1] %vm199, 0.0
          %201 = vst.msk [vmem:[#allocation4] sm:$0x1] %vm199, 0.0
        $region32: #{tpu_custom_call.1} parent=27 // pred_fallthru
          _
        %v202 = vld [vmem:[%s189] sm:$0xff]
        %v203 = vld [vmem:[%s189 + $0x8] sm:$0xff]
        %v204 = vld [vmem:[%s189 + $0x10] sm:$0x3]
        %v205 = vld [vmem:[%s189 + $0x18] sm:$0xff]
        %v206 = vld [vmem:[%s189 + $0x20] sm:$0xff]
        %v207 = vld [vmem:[%s189 + $0x28] sm:$0x3]
        %v208 = vld [vmem:[%s189 + $0x30] sm:$0xff]
        %v209 = vld [vmem:[%s189 + $0x38] sm:$0xff]
        %v210 = vld [vmem:[%s189 + $0x40] sm:$0x3]
        %v211 = vld [vmem:[%s189 + $0x48] sm:$0xff]
        %v212 = vld [vmem:[%s189 + $0x50] sm:$0xff]
        %v213 = vld [vmem:[%s189 + $0x58] sm:$0x3]
        %v214 = vld [vmem:[%s189 + $0x60] sm:$0xff]
        %v215 = vld [vmem:[%s189 + $0x68] sm:$0xff]
        %v216 = vld [vmem:[%s189 + $0x70] sm:$0x3]
        %v217 = vld [vmem:[%s189 + $0x78] sm:$0xff]
        %v218 = vld [vmem:[%s189 + $0x80] sm:$0xff]
        %v219 = vld [vmem:[%s189 + $0x88] sm:$0x3]
        %v220 = vld [vmem:[%s189 + $0x90] sm:$0xff]
        %v221 = vld [vmem:[%s189 + $0x98] sm:$0xff]
        %v222 = vld [vmem:[%s189 + $0xa0] sm:$0x3]
        %v223 = vld [vmem:[%s189 + $0xa8] sm:$0xff]
        %v224 = vld [vmem:[%s189 + $0xb0] sm:$0xff]
        %v225 = vld [vmem:[%s189 + $0xb8] sm:$0x3]
        %v226 = vld [vmem:[%s189 + $0xc0] sm:$0xff]
        %v227 = vld [vmem:[%s189 + $0xc8] sm:$0xff]
        %v228 = vld [vmem:[%s189 + $0xd0] sm:$0x3]
        %v229 = vld [vmem:[%s189 + $0xd8] sm:$0xff]
        %v230 = vld [vmem:[%s189 + $0xe0] sm:$0xff]
        %v231 = vld [vmem:[%s189 + $0xe8] sm:$0x3]
        %v232 = vld [vmem:[%s189 + $0xf0] sm:$0xff]
        %v233 = vld [vmem:[%s189 + $0xf8] sm:$0xff]
        %v234 = vld [vmem:[%s189 + $0x100] sm:$0x3]
        %v235 = vld [vmem:[%s189 + $0x108] sm:$0xff]
        %v236 = vld [vmem:[%s189 + $0x110] sm:$0xff]
        %v237 = vld [vmem:[%s189 + $0x118] sm:$0x3]
        %v238 = vld [vmem:[%s189 + $0x120] sm:$0xff]
        %v239 = vld [vmem:[%s189 + $0x128] sm:$0xff]
        %v240 = vld [vmem:[%s189 + $0x130] sm:$0x3]
        %v241 = vld [vmem:[%s189 + $0x138] sm:$0xff]
        %v242 = vld [vmem:[%s189 + $0x140] sm:$0xff]
        %v243 = vld [vmem:[%s189 + $0x148] sm:$0x3]
        %v244 = vld [vmem:[%s189 + $0x150] sm:$0xff]
        %v245 = vld [vmem:[%s189 + $0x158] sm:$0xff]
        %v246 = vld [vmem:[%s189 + $0x160] sm:$0x3]
        %v247 = vld [vmem:[%s189 + $0x168] sm:$0xff]
        %v248 = vld [vmem:[%s189 + $0x170] sm:$0xff]
        %v249 = vld [vmem:[%s189 + $0x178] sm:$0x3]
        %v250 = vld [vmem:[%s189 + $0x180] sm:$0xff]
        %v251 = vld [vmem:[%s189 + $0x188] sm:$0xff]
        %v252 = vld [vmem:[%s189 + $0x190] sm:$0x3]
        %v253 = vld [vmem:[%s189 + $0x198] sm:$0xff]
        %v254 = vld [vmem:[%s189 + $0x1a0] sm:$0xff]
        %v255 = vld [vmem:[%s189 + $0x1a8] sm:$0x3]
        %v256 = vld [vmem:[%s1] sm:$0xff]
        %v257 = vld [vmem:[%s1 + $0x8] sm:$0xff]
        %v258 = vld [vmem:[%s1 + $0x10] sm:$0xff]
        %v259 = vld [vmem:[%s1 + $0x18] sm:$0xff]
        %v260 = vld [vmem:[%s1 + $0x20] sm:$0xff]
        %v261 = vld [vmem:[%s1 + $0x28] sm:$0xff]
        %v262 = vld [vmem:[%s1 + $0x30] sm:$0xff]
        %v263 = vld [vmem:[%s1 + $0x38] sm:$0xff]
        %v264 = vld [vmem:[%s1 + $0x40] sm:$0xff]
        %vm313 = vcmask 1046528
        %v314 = vrot.slane %v202, 1
        %v315 = vrot.slane %v203, 1
        %v316 = vsel %vm313, %v314, %v315
        %v317 = vrot.slane %v204, 1
        %v318 = vsel %vm313, %v315, %v317
        %v319 = vrot.slane %v205, 1
        %v320 = vrot.slane %v206, 1
        %v321 = vsel %vm313, %v319, %v320
        %v322 = vrot.slane %v207, 1
        %v323 = vsel %vm313, %v320, %v322
        %v324 = vrot.slane %v208, 1
        %v325 = vrot.slane %v209, 1
        %v326 = vsel %vm313, %v324, %v325
        %v327 = vrot.slane %v210, 1
        %v328 = vsel %vm313, %v325, %v327
        %v329 = vrot.slane %v211, 1
        %v330 = vrot.slane %v212, 1
        %v331 = vsel %vm313, %v329, %v330
        %v332 = vrot.slane %v213, 1
        %v333 = vsel %vm313, %v330, %v332
        %v334 = vrot.slane %v214, 1
        %v335 = vrot.slane %v215, 1
        %v336 = vsel %vm313, %v334, %v335
        %v337 = vrot.slane %v216, 1
        %v338 = vsel %vm313, %v335, %v337
        %v339 = vrot.slane %v217, 1
        %v340 = vrot.slane %v218, 1
        %v341 = vsel %vm313, %v339, %v340
        %v342 = vrot.slane %v219, 1
        %v343 = vsel %vm313, %v340, %v342
        %v344 = vrot.slane %v220, 1
        %v345 = vrot.slane %v221, 1
        %v346 = vsel %vm313, %v344, %v345
        %v347 = vrot.slane %v222, 1
        %v348 = vsel %vm313, %v345, %v347
        %v349 = vrot.slane %v223, 1
        %v350 = vrot.slane %v224, 1
        %v351 = vsel %vm313, %v349, %v350
        %v352 = vrot.slane %v225, 1
        %v353 = vsel %vm313, %v350, %v352
        %v354 = vrot.slane %v226, 1
        %v355 = vrot.slane %v227, 1
        %v356 = vsel %vm313, %v354, %v355
        %v357 = vrot.slane %v228, 1
        %v358 = vsel %vm313, %v355, %v357
        %v359 = vrot.slane %v229, 1
        %v360 = vrot.slane %v230, 1
        %v361 = vsel %vm313, %v359, %v360
        %v362 = vrot.slane %v231, 1
        %v363 = vsel %vm313, %v360, %v362
        %v364 = vrot.slane %v232, 1
        %v365 = vrot.slane %v233, 1
        %v366 = vsel %vm313, %v364, %v365
        %v367 = vrot.slane %v234, 1
        %v368 = vsel %vm313, %v365, %v367
        %v369 = vrot.slane %v235, 1
        %v370 = vrot.slane %v236, 1
        %v371 = vsel %vm313, %v369, %v370
        %v372 = vrot.slane %v237, 1
        %v373 = vsel %vm313, %v370, %v372
        %v374 = vrot.slane %v238, 1
        %v375 = vrot.slane %v239, 1
        %v376 = vsel %vm313, %v374, %v375
        %v377 = vrot.slane %v240, 1
        %v378 = vsel %vm313, %v375, %v377
        %v379 = vrot.slane %v241, 1
        %v380 = vrot.slane %v242, 1
        %v381 = vsel %vm313, %v379, %v380
        %v382 = vrot.slane %v243, 1
        %v383 = vsel %vm313, %v380, %v382
        %v384 = vrot.slane %v244, 1
        %v385 = vrot.slane %v245, 1
        %v386 = vsel %vm313, %v384, %v385
        %v387 = vrot.slane %v246, 1
        %v388 = vsel %vm313, %v385, %v387
        %v389 = vrot.slane %v247, 1
        %v390 = vrot.slane %v248, 1
        %v391 = vsel %vm313, %v389, %v390
        %v392 = vrot.slane %v249, 1
        %v393 = vsel %vm313, %v390, %v392
        %vm394 = vcmask 64512
        %v395 = vsel %vm394, %v316, 0
        %v397 = vsel %vm394, %v318, 0
        %v399 = vsel %vm394, %v321, 0
        %v401 = vsel %vm394, %v323, 0
        %v403 = vsel %vm394, %v326, 0
        %v405 = vsel %vm394, %v328, 0
        %v407 = vsel %vm394, %v331, 0
        %v409 = vsel %vm394, %v333, 0
        %v411 = vsel %vm394, %v336, 0
        %v413 = vsel %vm394, %v338, 0
        %v415 = vsel %vm394, %v341, 0
        %v417 = vsel %vm394, %v343, 0
        %v419 = vsel %vm394, %v346, 0
        %v421 = vsel %vm394, %v348, 0
        %v423 = vsel %vm394, %v351, 0
        %v425 = vsel %vm394, %v353, 0
        %v427 = vsel %vm394, %v356, 0
        %v429 = vsel %vm394, %v358, 0
        %v431 = vsel %vm394, %v361, 0
        %v433 = vsel %vm394, %v363, 0
        %v435 = vsel %vm394, %v366, 0
        %v437 = vsel %vm394, %v368, 0
        %v439 = vsel %vm394, %v371, 0
        %v441 = vsel %vm394, %v373, 0
        %v443 = vsel %vm394, %v376, 0
        %v445 = vsel %vm394, %v378, 0
        %v447 = vsel %vm394, %v381, 0
        %v449 = vsel %vm394, %v383, 0
        %v451 = vsel %vm394, %v386, 0
        %v453 = vsel %vm394, %v388, 0
        %v455 = vsel %vm394, %v391, 0
        %v457 = vsel %vm394, %v393, 0
        %459 = vmatprep.subr.mxu0 0.0
        %460 = vmatpush1.msra.mxu0 %v257
        %461 = vmatprep.subr.mxu0 0.0
        %462 = vmatpush1.msra.mxu0 0.0
        %463 = vmatprep.subr.mxu0 0.0
        %464 = vmatpush1.msra.mxu0 0.0
        %465 = vmatprep.subr.mxu0 0.0
        %466 = vmatpush1.msra.mxu0 0.0
        %467 = vmatprep.subr.mxu0 0.0
        %468 = vmatpush1.msra.mxu0 0.0
        %469 = vmatprep.subr.mxu0 0.0
        %470 = vmatpush1.msra.mxu0 0.0
        %471 = vmatprep.subr.mxu0 0.0
        %472 = vmatpush1.msra.mxu0 0.0
        %473 = vmatprep.subr.mxu0 0.0
        %474 = vmatpush1.msra.mxu0 0.0
        %475 = vmatprep.subr.mxu0 0.0
        %476 = vmatpush1.msra.mxu0 0.0
        %477 = vmatprep.subr.mxu0 0.0
        %478 = vmatpush1.msra.mxu0 0.0
        %479 = vmatprep.subr.mxu0 0.0
        %480 = vmatpush1.msra.mxu0 0.0
        %481 = vmatprep.subr.mxu0 0.0
        %482 = vmatpush1.msra.mxu0 0.0
        %483 = vmatprep.subr.mxu0 0.0
        %484 = vmatpush1.msra.mxu0 0.0
        %485 = vmatprep.subr.mxu0 0.0
        %486 = vmatpush1.msra.mxu0 0.0
        %487 = vmatprep.subr.mxu0 0.0
        %488 = vmatpush1.msra.mxu0 0.0
        %489 = vmatprep.subr.mxu0 0.0
        %490 = vmatpush1.msra.mxu0 0.0
        %491 = vmatprep.subr.mxu0 0.0
        %492 = vmatpush1.msra.mxu0 0.0
        %493 = vmatprep.subr.mxu0 0.0
        %494 = vmatpush1.msra.mxu0 0.0
        %495 = vmatprep.subr.mxu0 0.0
        %496 = vmatpush1.msra.mxu0 0.0
        %497 = vmatprep.subr.mxu0 0.0
        %498 = vmatpush1.msra.mxu0 0.0
        %499 = vmatprep.subr.mxu0 0.0
        %500 = vmatpush1.msra.mxu0 0.0
        %501 = vmatprep.subr.mxu0 0.0
        %502 = vmatpush1.msra.mxu0 0.0
        %503 = vmatprep.subr.mxu0 0.0
        %504 = vmatpush1.msra.mxu0 0.0
        %505 = vmatprep.subr.mxu0 0.0
        %506 = vmatpush1.msra.mxu0 0.0
        %507 = vmatprep.subr.mxu0 0.0
        %508 = vmatpush1.msra.mxu0 0.0
        %509 = vmatprep.subr.mxu0 0.0
        %510 = vmatpush1.msra.mxu0 0.0
        %511 = vmatprep.subr.mxu0 0.0
        %512 = vmatpush1.msra.mxu0 0.0
        %513 = vmatprep.subr.mxu0 0.0
        %514 = vmatpush1.msra.mxu0 0.0
        %515 = vmatprep.subr.mxu0 0.0
        %516 = vmatpush1.msra.mxu0 0.0
        %517 = vmatprep.subr.mxu0 0.0
        %518 = vmatpush1.msra.mxu0 0.0
        %519 = vmatprep.subr.mxu0 0.0
        %520 = vmatpush1.msra.mxu0 0.0
        %521 = vmatprep.subr.mxu0 0.0
        %522 = vmatpush1.msra.mxu0 0.0
        %523 = vmatprep.mubr.f32.mxu0 0.0
        %524 = vmatmul.mubr.f32.gmra.mrb[0].mxu0 %v395
        %v525 = vpop.f32.mrb[0].mxu0
        %v526 = vadd.f32 0.0, %v525
        %v527 = vpop.f32.mrb[0].mxu0
        %528 = vmatprep.mubr.f32.mxu0 0.0
        %529 = vmatmul.mubr.f32.gmra.mrb[0].mxu0 %v397
        %v530 = vpop.f32.mrb[0].mxu0
        %v531 = vadd.f32 0.0, %v530
        %v532 = vpop.f32.mrb[0].mxu0
        %533 = vmatprep.mubr.f32.mxu0 0.0
        %534 = vmatmul.mubr.f32.gmra.mrb[0].mxu0 %v399
        %v535 = vpop.f32.mrb[0].mxu0
        %v536 = vadd.f32 0.0, %v535
        %v537 = vpop.f32.mrb[0].mxu0
        %538 = vmatprep.mubr.f32.mxu0 0.0
        %539 = vmatmul.mubr.f32.gmra.mrb[0].mxu0 %v401
        %v540 = vpop.f32.mrb[0].mxu0
        %v541 = vadd.f32 0.0, %v540
        %v542 = vpop.f32.mrb[0].mxu0
        %543 = vmatprep.mubr.f32.mxu0 0.0
        %544 = vmatmul.mubr.f32.gmra.mrb[0].mxu0 %v403
        %v545 = vpop.f32.mrb[0].mxu0
        %v546 = vadd.f32 0.0, %v545
        %v547 = vpop.f32.mrb[0].mxu0
        %548 = vmatprep.mubr.f32.mxu0 0.0
        %549 = vmatmul.mubr.f32.gmra.mrb[0].mxu0 %v405
        %v550 = vpop.f32.mrb[0].mxu0
        %v551 = vadd.f32 0.0, %v550
        %v552 = vpop.f32.mrb[0].mxu0
        %553 = vmatprep.mubr.f32.mxu0 0.0
        %554 = vmatmul.mubr.f32.gmra.mrb[0].mxu0 %v407
        %v555 = vpop.f32.mrb[0].mxu0
        %v556 = vadd.f32 0.0, %v555
        %v557 = vpop.f32.mrb[0].mxu0
        %558 = vmatprep.mubr.f32.mxu0 0.0
        %559 = vmatmul.mubr.f32.gmra.mrb[0].mxu0 %v409
        %v560 = vpop.f32.mrb[0].mxu0
        %v561 = vadd.f32 0.0, %v560
        %v562 = vpop.f32.mrb[0].mxu0
        %563 = vmatprep.mubr.f32.mxu0 0.0
        %564 = vmatmul.mubr.f32.gmra.mrb[0].mxu0 %v411
        %v565 = vpop.f32.mrb[0].mxu0
        %v566 = vadd.f32 0.0, %v565
        %v567 = vpop.f32.mrb[0].mxu0
        %568 = vmatprep.mubr.f32.mxu0 0.0
        %569 = vmatmul.mubr.f32.gmra.mrb[0].mxu0 %v413
        %v570 = vpop.f32.mrb[0].mxu0
        %v571 = vadd.f32 0.0, %v570
        %v572 = vpop.f32.mrb[0].mxu0
        %573 = vmatprep.mubr.f32.mxu0 0.0
        %574 = vmatmul.mubr.f32.gmra.mrb[0].mxu0 %v415
        %v575 = vpop.f32.mrb[0].mxu0
        %v576 = vadd.f32 0.0, %v575
        %v577 = vpop.f32.mrb[0].mxu0
        %578 = vmatprep.mubr.f32.mxu0 0.0
        %579 = vmatmul.mubr.f32.gmra.mrb[0].mxu0 %v417
        %v580 = vpop.f32.mrb[0].mxu0
        %v581 = vadd.f32 0.0, %v580
        %v582 = vpop.f32.mrb[0].mxu0
        %583 = vmatprep.mubr.f32.mxu0 0.0
        %584 = vmatmul.mubr.f32.gmra.mrb[0].mxu0 %v419
        %v585 = vpop.f32.mrb[0].mxu0
        %v586 = vadd.f32 0.0, %v585
        %v587 = vpop.f32.mrb[0].mxu0
        %588 = vmatprep.mubr.f32.mxu0 0.0
        %589 = vmatmul.mubr.f32.gmra.mrb[0].mxu0 %v421
        %v590 = vpop.f32.mrb[0].mxu0
        %v591 = vadd.f32 0.0, %v590
        %v592 = vpop.f32.mrb[0].mxu0
        %593 = vmatprep.mubr.f32.mxu0 0.0
        %594 = vmatmul.mubr.f32.gmra.mrb[0].mxu0 %v423
        %v595 = vpop.f32.mrb[0].mxu0
        %v596 = vadd.f32 0.0, %v595
        %v597 = vpop.f32.mrb[0].mxu0
        %598 = vmatprep.mubr.f32.mxu0 0.0
        %599 = vmatmul.mubr.f32.gmra.mrb[0].mxu0 %v425
        %v600 = vpop.f32.mrb[0].mxu0
        %v601 = vadd.f32 0.0, %v600
        %v602 = vpop.f32.mrb[0].mxu0
        %603 = vmatprep.mubr.f32.mxu0 0.0
        %604 = vmatmul.mubr.f32.gmra.mrb[0].mxu0 %v427
        %v605 = vpop.f32.mrb[0].mxu0
        %v606 = vadd.f32 0.0, %v605
        %v607 = vpop.f32.mrb[0].mxu0
        %608 = vmatprep.mubr.f32.mxu0 0.0
        %609 = vmatmul.mubr.f32.gmra.mrb[0].mxu0 %v429
        %v610 = vpop.f32.mrb[0].mxu0
        %v611 = vadd.f32 0.0, %v610
        %v612 = vpop.f32.mrb[0].mxu0
        %613 = vmatprep.mubr.f32.mxu0 0.0
        %614 = vmatmul.mubr.f32.gmra.mrb[0].mxu0 %v431
        %v615 = vpop.f32.mrb[0].mxu0
        %v616 = vadd.f32 0.0, %v615
        %v617 = vpop.f32.mrb[0].mxu0
        %618 = vmatprep.mubr.f32.mxu0 0.0
        %619 = vmatmul.mubr.f32.gmra.mrb[0].mxu0 %v433
        %v620 = vpop.f32.mrb[0].mxu0
        %v621 = vadd.f32 0.0, %v620
        %v622 = vpop.f32.mrb[0].mxu0
        %623 = vmatprep.mubr.f32.mxu0 0.0
        %624 = vmatmul.mubr.f32.gmra.mrb[0].mxu0 %v435
        %v625 = vpop.f32.mrb[0].mxu0
        %v626 = vadd.f32 0.0, %v625
        %v627 = vpop.f32.mrb[0].mxu0
        %628 = vmatprep.mubr.f32.mxu0 0.0
        %629 = vmatmul.mubr.f32.gmra.mrb[0].mxu0 %v437
        %v630 = vpop.f32.mrb[0].mxu0
        %v631 = vadd.f32 0.0, %v630
        %v632 = vpop.f32.mrb[0].mxu0
        %633 = vmatprep.mubr.f32.mxu0 0.0
        %634 = vmatmul.mubr.f32.gmra.mrb[0].mxu0 %v439
        %v635 = vpop.f32.mrb[0].mxu0
        %v636 = vadd.f32 0.0, %v635
        %v637 = vpop.f32.mrb[0].mxu0
        %638 = vmatprep.mubr.f32.mxu0 0.0
        %639 = vmatmul.mubr.f32.gmra.mrb[0].mxu0 %v441
        %v640 = vpop.f32.mrb[0].mxu0
        %v641 = vadd.f32 0.0, %v640
        %v642 = vpop.f32.mrb[0].mxu0
        %643 = vmatprep.mubr.f32.mxu0 0.0
        %644 = vmatmul.mubr.f32.gmra.mrb[0].mxu0 %v443
        %v645 = vpop.f32.mrb[0].mxu0
        %v646 = vadd.f32 0.0, %v645
        %v647 = vpop.f32.mrb[0].mxu0
        %648 = vmatprep.mubr.f32.mxu0 0.0
        %649 = vmatmul.mubr.f32.gmra.mrb[0].mxu0 %v445
        %v650 = vpop.f32.mrb[0].mxu0
        %v651 = vadd.f32 0.0, %v650
        %v652 = vpop.f32.mrb[0].mxu0
        %653 = vmatprep.mubr.f32.mxu0 0.0
        %654 = vmatmul.mubr.f32.gmra.mrb[0].mxu0 %v447
        %v655 = vpop.f32.mrb[0].mxu0
        %v656 = vadd.f32 0.0, %v655
        %v657 = vpop.f32.mrb[0].mxu0
        %658 = vmatprep.mubr.f32.mxu0 0.0
        %659 = vmatmul.mubr.f32.gmra.mrb[0].mxu0 %v449
        %v660 = vpop.f32.mrb[0].mxu0
        %v661 = vadd.f32 0.0, %v660
        %v662 = vpop.f32.mrb[0].mxu0
        %663 = vmatprep.mubr.f32.mxu0 0.0
        %664 = vmatmul.mubr.f32.gmra.mrb[0].mxu0 %v451
        %v665 = vpop.f32.mrb[0].mxu0
        %v666 = vadd.f32 0.0, %v665
        %v667 = vpop.f32.mrb[0].mxu0
        %668 = vmatprep.mubr.f32.mxu0 0.0
        %669 = vmatmul.mubr.f32.gmra.mrb[0].mxu0 %v453
        %v670 = vpop.f32.mrb[0].mxu0
        %v671 = vadd.f32 0.0, %v670
        %v672 = vpop.f32.mrb[0].mxu0
        %673 = vmatprep.mubr.f32.mxu0 0.0
        %674 = vmatmul.mubr.f32.gmra.mrb[0].mxu0 %v455
        %v675 = vpop.f32.mrb[0].mxu0
        %v676 = vadd.f32 0.0, %v675
        %v677 = vpop.f32.mrb[0].mxu0
        %678 = vmatprep.mubr.f32.mxu0 0.0
        %679 = vmatmul.mubr.f32.gmra.mrb[0].mxu0 %v457
        %v680 = vpop.f32.mrb[0].mxu0
        %v681 = vadd.f32 0.0, %v680
        %v682 = vpop.f32.mrb[0].mxu0
        %683 = vdwg.mxu0
        %v684 = vsel %vm394, %v202, 0
        %v686 = vsel %vm394, %v203, 0
        %v688 = vsel %vm394, %v205, 0
        %v690 = vsel %vm394, %v206, 0
        %v692 = vsel %vm394, %v208, 0
        %v694 = vsel %vm394, %v209, 0
        %v696 = vsel %vm394, %v211, 0
        %v698 = vsel %vm394, %v212, 0
        %v700 = vsel %vm394, %v214, 0
        %v702 = vsel %vm394, %v215, 0
        %v704 = vsel %vm394, %v217, 0
        %v706 = vsel %vm394, %v218, 0
        %v708 = vsel %vm394, %v220, 0
        %v710 = vsel %vm394, %v221, 0
        %v712 = vsel %vm394, %v223, 0
        %v714 = vsel %vm394, %v224, 0
        %v716 = vsel %vm394, %v226, 0
        %v718 = vsel %vm394, %v227, 0
        %v720 = vsel %vm394, %v229, 0
        %v722 = vsel %vm394, %v230, 0
        %v724 = vsel %vm394, %v232, 0
        %v726 = vsel %vm394, %v233, 0
        %v728 = vsel %vm394, %v235, 0
        %v730 = vsel %vm394, %v236, 0
        %v732 = vsel %vm394, %v238, 0
        %v734 = vsel %vm394, %v239, 0
        %v736 = vsel %vm394, %v241, 0
        %v738 = vsel %vm394, %v242, 0
        %v740 = vsel %vm394, %v244, 0
        %v742 = vsel %vm394, %v245, 0
        %v744 = vsel %vm394, %v247, 0
        %v746 = vsel %vm394, %v248, 0
        %748 = vmatprep.subr.mxu0 0.0
        %749 = vmatpush1.msra.mxu0 %v256
        %750 = vmatprep.subr.mxu0 0.0
        %751 = vmatpush1.msra.mxu0 0.0
        %752 = vmatprep.subr.mxu0 0.0
        %753 = vmatpush1.msra.mxu0 0.0
        %754 = vmatprep.subr.mxu0 0.0
        %755 = vmatpush1.msra.mxu0 0.0
        %756 = vmatprep.subr.mxu0 0.0
        %757 = vmatpush1.msra.mxu0 0.0
        %758 = vmatprep.subr.mxu0 0.0
        %759 = vmatpush1.msra.mxu0 0.0
        %760 = vmatprep.subr.mxu0 0.0
        %761 = vmatpush1.msra.mxu0 0.0
        %762 = vmatprep.subr.mxu0 0.0
        %763 = vmatpush1.msra.mxu0 0.0
        %764 = vmatprep.subr.mxu0 0.0
        %765 = vmatpush1.msra.mxu0 0.0
        %766 = vmatprep.subr.mxu0 0.0
        %767 = vmatpush1.msra.mxu0 0.0
        %768 = vmatprep.subr.mxu0 0.0
        %769 = vmatpush1.msra.mxu0 0.0
        %770 = vmatprep.subr.mxu0 0.0
        %771 = vmatpush1.msra.mxu0 0.0
        %772 = vmatprep.subr.mxu0 0.0
        %773 = vmatpush1.msra.mxu0 0.0
        %774 = vmatprep.subr.mxu0 0.0
        %775 = vmatpush1.msra.mxu0 0.0
        %776 = vmatprep.subr.mxu0 0.0
        %777 = vmatpush1.msra.mxu0 0.0
        %778 = vmatprep.subr.mxu0 0.0
        %779 = vmatpush1.msra.mxu0 0.0
        %780 = vmatprep.subr.mxu0 0.0
        %781 = vmatpush1.msra.mxu0 0.0
        %782 = vmatprep.subr.mxu0 0.0
        %783 = vmatpush1.msra.mxu0 0.0
        %784 = vmatprep.subr.mxu0 0.0
        %785 = vmatpush1.msra.mxu0 0.0
        %786 = vmatprep.subr.mxu0 0.0
        %787 = vmatpush1.msra.mxu0 0.0
        %788 = vmatprep.subr.mxu0 0.0
        %789 = vmatpush1.msra.mxu0 0.0
        %790 = vmatprep.subr.mxu0 0.0
        %791 = vmatpush1.msra.mxu0 0.0
        %792 = vmatprep.subr.mxu0 0.0
        %793 = vmatpush1.msra.mxu0 0.0
        %794 = vmatprep.subr.mxu0 0.0
        %795 = vmatpush1.msra.mxu0 0.0
        %796 = vmatprep.subr.mxu0 0.0
        %797 = vmatpush1.msra.mxu0 0.0
        %798 = vmatprep.subr.mxu0 0.0
        %799 = vmatpush1.msra.mxu0 0.0
        %800 = vmatprep.subr.mxu0 0.0
        %801 = vmatpush1.msra.mxu0 0.0
        %802 = vmatprep.subr.mxu0 0.0
        %803 = vmatpush1.msra.mxu0 0.0
        %804 = vmatprep.subr.mxu0 0.0
        %805 = vmatpush1.msra.mxu0 0.0
        %806 = vmatprep.subr.mxu0 0.0
        %807 = vmatpush1.msra.mxu0 0.0
        %808 = vmatprep.subr.mxu0 0.0
        %809 = vmatpush1.msra.mxu0 0.0
        %810 = vmatprep.subr.mxu0 0.0
        %811 = vmatpush1.msra.mxu0 0.0
        %812 = vmatprep.mubr.f32.mxu0 0.0
        %813 = vmatmul.mubr.f32.gmra.mrb[0].mxu0 %v684
        %v814 = vpop.f32.mrb[0].mxu0
        %v815 = vadd.f32 %v526, %v814
        %v816 = vpop.f32.mrb[0].mxu0
        %817 = vmatprep.mubr.f32.mxu0 0.0
        %818 = vmatmul.mubr.f32.gmra.mrb[0].mxu0 %v686
        %v819 = vpop.f32.mrb[0].mxu0
        %v820 = vadd.f32 %v531, %v819
        %v821 = vpop.f32.mrb[0].mxu0
        %822 = vmatprep.mubr.f32.mxu0 0.0
        %823 = vmatmul.mubr.f32.gmra.mrb[0].mxu0 %v688
        %v824 = vpop.f32.mrb[0].mxu0
        %v825 = vadd.f32 %v536, %v824
        %v826 = vpop.f32.mrb[0].mxu0
        %827 = vmatprep.mubr.f32.mxu0 0.0
        %828 = vmatmul.mubr.f32.gmra.mrb[0].mxu0 %v690
        %v829 = vpop.f32.mrb[0].mxu0
        %v830 = vadd.f32 %v541, %v829
        %v831 = vpop.f32.mrb[0].mxu0
        %832 = vmatprep.mubr.f32.mxu0 0.0
        %833 = vmatmul.mubr.f32.gmra.mrb[0].mxu0 %v692
        %v834 = vpop.f32.mrb[0].mxu0
        %v835 = vadd.f32 %v546, %v834
        %v836 = vpop.f32.mrb[0].mxu0
        %837 = vmatprep.mubr.f32.mxu0 0.0
        %838 = vmatmul.mubr.f32.gmra.mrb[0].mxu0 %v694
        %v839 = vpop.f32.mrb[0].mxu0
        %v840 = vadd.f32 %v551, %v839
        %v841 = vpop.f32.mrb[0].mxu0
        %842 = vmatprep.mubr.f32.mxu0 0.0
        %843 = vmatmul.mubr.f32.gmra.mrb[0].mxu0 %v696
        %v844 = vpop.f32.mrb[0].mxu0
        %v845 = vadd.f32 %v556, %v844
        %v846 = vpop.f32.mrb[0].mxu0
        %847 = vmatprep.mubr.f32.mxu0 0.0
        %848 = vmatmul.mubr.f32.gmra.mrb[0].mxu0 %v698
        %v849 = vpop.f32.mrb[0].mxu0
        %v850 = vadd.f32 %v561, %v849
        %v851 = vpop.f32.mrb[0].mxu0
        %852 = vmatprep.mubr.f32.mxu0 0.0
        %853 = vmatmul.mubr.f32.gmra.mrb[0].mxu0 %v700
        %v854 = vpop.f32.mrb[0].mxu0
        %v855 = vadd.f32 %v566, %v854
        %v856 = vpop.f32.mrb[0].mxu0
        %857 = vmatprep.mubr.f32.mxu0 0.0
        %858 = vmatmul.mubr.f32.gmra.mrb[0].mxu0 %v702
        %v859 = vpop.f32.mrb[0].mxu0
        %v860 = vadd.f32 %v571, %v859
        %v861 = vpop.f32.mrb[0].mxu0
        %862 = vmatprep.mubr.f32.mxu0 0.0
        %863 = vmatmul.mubr.f32.gmra.mrb[0].mxu0 %v704
        %v864 = vpop.f32.mrb[0].mxu0
        %v865 = vadd.f32 %v576, %v864
        %v866 = vpop.f32.mrb[0].mxu0
        %867 = vmatprep.mubr.f32.mxu0 0.0
        %868 = vmatmul.mubr.f32.gmra.mrb[0].mxu0 %v706
        %v869 = vpop.f32.mrb[0].mxu0
        %v870 = vadd.f32 %v581, %v869
        %v871 = vpop.f32.mrb[0].mxu0
        %872 = vmatprep.mubr.f32.mxu0 0.0
        %873 = vmatmul.mubr.f32.gmra.mrb[0].mxu0 %v708
        %v874 = vpop.f32.mrb[0].mxu0
        %v875 = vadd.f32 %v586, %v874
        %v876 = vpop.f32.mrb[0].mxu0
        %877 = vmatprep.mubr.f32.mxu0 0.0
        %878 = vmatmul.mubr.f32.gmra.mrb[0].mxu0 %v710
        %v879 = vpop.f32.mrb[0].mxu0
        %v880 = vadd.f32 %v591, %v879
        %v881 = vpop.f32.mrb[0].mxu0
        %882 = vmatprep.mubr.f32.mxu0 0.0
        %883 = vmatmul.mubr.f32.gmra.mrb[0].mxu0 %v712
        %v884 = vpop.f32.mrb[0].mxu0
        %v885 = vadd.f32 %v596, %v884
        %v886 = vpop.f32.mrb[0].mxu0
        %887 = vmatprep.mubr.f32.mxu0 0.0
        %888 = vmatmul.mubr.f32.gmra.mrb[0].mxu0 %v714
        %v889 = vpop.f32.mrb[0].mxu0
        %v890 = vadd.f32 %v601, %v889
        %v891 = vpop.f32.mrb[0].mxu0
        %892 = vmatprep.mubr.f32.mxu0 0.0
        %893 = vmatmul.mubr.f32.gmra.mrb[0].mxu0 %v716
        %v894 = vpop.f32.mrb[0].mxu0
        %v895 = vadd.f32 %v606, %v894
        %v896 = vpop.f32.mrb[0].mxu0
        %897 = vmatprep.mubr.f32.mxu0 0.0
        %898 = vmatmul.mubr.f32.gmra.mrb[0].mxu0 %v718
        %v899 = vpop.f32.mrb[0].mxu0
        %v900 = vadd.f32 %v611, %v899
        %v901 = vpop.f32.mrb[0].mxu0
        %902 = vmatprep.mubr.f32.mxu0 0.0
        %903 = vmatmul.mubr.f32.gmra.mrb[0].mxu0 %v720
        %v904 = vpop.f32.mrb[0].mxu0
        %v905 = vadd.f32 %v616, %v904
        %v906 = vpop.f32.mrb[0].mxu0
        %907 = vmatprep.mubr.f32.mxu0 0.0
        %908 = vmatmul.mubr.f32.gmra.mrb[0].mxu0 %v722
        %v909 = vpop.f32.mrb[0].mxu0
        %v910 = vadd.f32 %v621, %v909
        %v911 = vpop.f32.mrb[0].mxu0
        %912 = vmatprep.mubr.f32.mxu0 0.0
        %913 = vmatmul.mubr.f32.gmra.mrb[0].mxu0 %v724
        %v914 = vpop.f32.mrb[0].mxu0
        %v915 = vadd.f32 %v626, %v914
        %v916 = vpop.f32.mrb[0].mxu0
        %917 = vmatprep.mubr.f32.mxu0 0.0
        %918 = vmatmul.mubr.f32.gmra.mrb[0].mxu0 %v726
        %v919 = vpop.f32.mrb[0].mxu0
        %v920 = vadd.f32 %v631, %v919
        %v921 = vpop.f32.mrb[0].mxu0
        %922 = vmatprep.mubr.f32.mxu0 0.0
        %923 = vmatmul.mubr.f32.gmra.mrb[0].mxu0 %v728
        %v924 = vpop.f32.mrb[0].mxu0
        %v925 = vadd.f32 %v636, %v924
        %v926 = vpop.f32.mrb[0].mxu0
        %927 = vmatprep.mubr.f32.mxu0 0.0
        %928 = vmatmul.mubr.f32.gmra.mrb[0].mxu0 %v730
        %v929 = vpop.f32.mrb[0].mxu0
        %v930 = vadd.f32 %v641, %v929
        %v931 = vpop.f32.mrb[0].mxu0
        %932 = vmatprep.mubr.f32.mxu0 0.0
        %933 = vmatmul.mubr.f32.gmra.mrb[0].mxu0 %v732
        %v934 = vpop.f32.mrb[0].mxu0
        %v935 = vadd.f32 %v646, %v934
        %v936 = vpop.f32.mrb[0].mxu0
        %937 = vmatprep.mubr.f32.mxu0 0.0
        %938 = vmatmul.mubr.f32.gmra.mrb[0].mxu0 %v734
        %v939 = vpop.f32.mrb[0].mxu0
        %v940 = vadd.f32 %v651, %v939
        %v941 = vpop.f32.mrb[0].mxu0
        %942 = vmatprep.mubr.f32.mxu0 0.0
        %943 = vmatmul.mubr.f32.gmra.mrb[0].mxu0 %v736
        %v944 = vpop.f32.mrb[0].mxu0
        %v945 = vadd.f32 %v656, %v944
        %v946 = vpop.f32.mrb[0].mxu0
        %947 = vmatprep.mubr.f32.mxu0 0.0
        %948 = vmatmul.mubr.f32.gmra.mrb[0].mxu0 %v738
        %v949 = vpop.f32.mrb[0].mxu0
        %v950 = vadd.f32 %v661, %v949
        %v951 = vpop.f32.mrb[0].mxu0
        %952 = vmatprep.mubr.f32.mxu0 0.0
        %953 = vmatmul.mubr.f32.gmra.mrb[0].mxu0 %v740
        %v954 = vpop.f32.mrb[0].mxu0
        %v955 = vadd.f32 %v666, %v954
        %v956 = vpop.f32.mrb[0].mxu0
        %957 = vmatprep.mubr.f32.mxu0 0.0
        %958 = vmatmul.mubr.f32.gmra.mrb[0].mxu0 %v742
        %v959 = vpop.f32.mrb[0].mxu0
        %v960 = vadd.f32 %v671, %v959
        %v961 = vpop.f32.mrb[0].mxu0
        %962 = vmatprep.mubr.f32.mxu0 0.0
        %963 = vmatmul.mubr.f32.gmra.mrb[0].mxu0 %v744
        %v964 = vpop.f32.mrb[0].mxu0
        %v965 = vadd.f32 %v676, %v964
        %v966 = vpop.f32.mrb[0].mxu0
        %967 = vmatprep.mubr.f32.mxu0 0.0
        %968 = vmatmul.mubr.f32.gmra.mrb[0].mxu0 %v746
        %v969 = vpop.f32.mrb[0].mxu0
        %v970 = vadd.f32 %v681, %v969
        %v971 = vpop.f32.mrb[0].mxu0
        %972 = vdwg.mxu0
        %vm973 = vcmask 1045504
        %v974 = vrot.slane %v202, 2
        %v975 = vrot.slane %v203, 2
        %v976 = vsel %vm973, %v974, %v975
        %v977 = vrot.slane %v204, 2
        %v978 = vsel %vm973, %v975, %v977
        %v979 = vrot.slane %v205, 2
        %v980 = vrot.slane %v206, 2
        %v981 = vsel %vm973, %v979, %v980
        %v982 = vrot.slane %v207, 2
        %v983 = vsel %vm973, %v980, %v982
        %v984 = vrot.slane %v208, 2
        %v985 = vrot.slane %v209, 2
        %v986 = vsel %vm973, %v984, %v985
        %v987 = vrot.slane %v210, 2
        %v988 = vsel %vm973, %v985, %v987
        %v989 = vrot.slane %v211, 2
        %v990 = vrot.slane %v212, 2
        %v991 = vsel %vm973, %v989, %v990
        %v992 = vrot.slane %v213, 2
        %v993 = vsel %vm973, %v990, %v992
        %v994 = vrot.slane %v214, 2
        %v995 = vrot.slane %v215, 2
        %v996 = vsel %vm973, %v994, %v995
        %v997 = vrot.slane %v216, 2
        %v998 = vsel %vm973, %v995, %v997
        %v999 = vrot.slane %v217, 2
        %v1000 = vrot.slane %v218, 2
        %v1001 = vsel %vm973, %v999, %v1000
        %v1002 = vrot.slane %v219, 2
        %v1003 = vsel %vm973, %v1000, %v1002
        %v1004 = vrot.slane %v220, 2
        %v1005 = vrot.slane %v221, 2
        %v1006 = vsel %vm973, %v1004, %v1005
        %v1007 = vrot.slane %v222, 2
        %v1008 = vsel %vm973, %v1005, %v1007
        %v1009 = vrot.slane %v223, 2
        %v1010 = vrot.slane %v224, 2
        %v1011 = vsel %vm973, %v1009, %v1010
        %v1012 = vrot.slane %v225, 2
        %v1013 = vsel %vm973, %v1010, %v1012
        %v1014 = vrot.slane %v226, 2
        %v1015 = vrot.slane %v227, 2
        %v1016 = vsel %vm973, %v1014, %v1015
        %v1017 = vrot.slane %v228, 2
        %v1018 = vsel %vm973, %v1015, %v1017
        %v1019 = vrot.slane %v229, 2
        %v1020 = vrot.slane %v230, 2
        %v1021 = vsel %vm973, %v1019, %v1020
        %v1022 = vrot.slane %v231, 2
        %v1023 = vsel %vm973, %v1020, %v1022
        %v1024 = vrot.slane %v232, 2
        %v1025 = vrot.slane %v233, 2
        %v1026 = vsel %vm973, %v1024, %v1025
        %v1027 = vrot.slane %v234, 2
        %v1028 = vsel %vm973, %v1025, %v1027
        %v1029 = vrot.slane %v235, 2
        %v1030 = vrot.slane %v236, 2
        %v1031 = vsel %vm973, %v1029, %v1030
        %v1032 = vrot.slane %v237, 2
        %v1033 = vsel %vm973, %v1030, %v1032
        %v1034 = vrot.slane %v238, 2
        %v1035 = vrot.slane %v239, 2
        %v1036 = vsel %vm973, %v1034, %v1035
        %v1037 = vrot.slane %v240, 2
        %v1038 = vsel %vm973, %v1035, %v1037
        %v1039 = vrot.slane %v241, 2
        %v1040 = vrot.slane %v242, 2
        %v1041 = vsel %vm973, %v1039, %v1040
        %v1042 = vrot.slane %v243, 2
        %v1043 = vsel %vm973, %v1040, %v1042
        %v1044 = vrot.slane %v244, 2
        %v1045 = vrot.slane %v245, 2
        %v1046 = vsel %vm973, %v1044, %v1045
        %v1047 = vrot.slane %v246, 2
        %v1048 = vsel %vm973, %v1045, %v1047
        %v1049 = vrot.slane %v247, 2
        %v1050 = vrot.slane %v248, 2
        %v1051 = vsel %vm973, %v1049, %v1050
        %v1052 = vrot.slane %v249, 2
        %v1053 = vsel %vm973, %v1050, %v1052
        %v1054 = vsel %vm394, %v976, 0
        %v1056 = vsel %vm394, %v978, 0
        %v1058 = vsel %vm394, %v981, 0
        %v1060 = vsel %vm394, %v983, 0
        %v1062 = vsel %vm394, %v986, 0
        %v1064 = vsel %vm394, %v988, 0
        %v1066 = vsel %vm394, %v991, 0
        %v1068 = vsel %vm394, %v993, 0
        %v1070 = vsel %vm394, %v996, 0
        %v1072 = vsel %vm394, %v998, 0
        %v1074 = vsel %vm394, %v1001, 0
        %v1076 = vsel %vm394, %v1003, 0
        %v1078 = vsel %vm394, %v1006, 0
        %v1080 = vsel %vm394, %v1008, 0
        %v1082 = vsel %vm394, %v1011, 0
        %v1084 = vsel %vm394, %v1013, 0
        %v1086 = vsel %vm394, %v1016, 0
        %v1088 = vsel %vm394, %v1018, 0
        %v1090 = vsel %vm394, %v1021, 0
        %v1092 = vsel %vm394, %v1023, 0
        %v1094 = vsel %vm394, %v1026, 0
        %v1096 = vsel %vm394, %v1028, 0
        %v1098 = vsel %vm394, %v1031, 0
        %v1100 = vsel %vm394, %v1033, 0
        %v1102 = vsel %vm394, %v1036, 0
        %v1104 = vsel %vm394, %v1038, 0
        %v1106 = vsel %vm394, %v1041, 0
        %v1108 = vsel %vm394, %v1043, 0
        %v1110 = vsel %vm394, %v1046, 0
        %v1112 = vsel %vm394, %v1048, 0
        %v1114 = vsel %vm394, %v1051, 0
        %v1116 = vsel %vm394, %v1053, 0
        %1118 = vmatprep.subr.mxu0 0.0
        %1119 = vmatpush1.msra.mxu0 %v258
        %1120 = vmatprep.subr.mxu0 0.0
        %1121 = vmatpush1.msra.mxu0 0.0
        %1122 = vmatprep.subr.mxu0 0.0
        %1123 = vmatpush1.msra.mxu0 0.0
        %1124 = vmatprep.subr.mxu0 0.0
        %1125 = vmatpush1.msra.mxu0 0.0
        %1126 = vmatprep.subr.mxu0 0.0
        %1127 = vmatpush1.msra.mxu0 0.0
        %1128 = vmatprep.subr.mxu0 0.0
        %1129 = vmatpush1.msra.mxu0 0.0
        %1130 = vmatprep.subr.mxu0 0.0
        %1131 = vmatpush1.msra.mxu0 0.0
        %1132 = vmatprep.subr.mxu0 0.0
        %1133 = vmatpush1.msra.mxu0 0.0
        %1134 = vmatprep.subr.mxu0 0.0
        %1135 = vmatpush1.msra.mxu0 0.0
        %1136 = vmatprep.subr.mxu0 0.0
        %1137 = vmatpush1.msra.mxu0 0.0
        %1138 = vmatprep.subr.mxu0 0.0
        %1139 = vmatpush1.msra.mxu0 0.0
        %1140 = vmatprep.subr.mxu0 0.0
        %1141 = vmatpush1.msra.mxu0 0.0
        %1142 = vmatprep.subr.mxu0 0.0
        %1143 = vmatpush1.msra.mxu0 0.0
        %1144 = vmatprep.subr.mxu0 0.0
        %1145 = vmatpush1.msra.mxu0 0.0
        %1146 = vmatprep.subr.mxu0 0.0
        %1147 = vmatpush1.msra.mxu0 0.0
        %1148 = vmatprep.subr.mxu0 0.0
        %1149 = vmatpush1.msra.mxu0 0.0
        %1150 = vmatprep.subr.mxu0 0.0
        %1151 = vmatpush1.msra.mxu0 0.0
        %1152 = vmatprep.subr.mxu0 0.0
        %1153 = vmatpush1.msra.mxu0 0.0
        %1154 = vmatprep.subr.mxu0 0.0
        %1155 = vmatpush1.msra.mxu0 0.0
        %1156 = vmatprep.subr.mxu0 0.0
        %1157 = vmatpush1.msra.mxu0 0.0
        %1158 = vmatprep.subr.mxu0 0.0
        %1159 = vmatpush1.msra.mxu0 0.0
        %1160 = vmatprep.subr.mxu0 0.0
        %1161 = vmatpush1.msra.mxu0 0.0
        %1162 = vmatprep.subr.mxu0 0.0
        %1163 = vmatpush1.msra.mxu0 0.0
        %1164 = vmatprep.subr.mxu0 0.0
        %1165 = vmatpush1.msra.mxu0 0.0
        %1166 = vmatprep.subr.mxu0 0.0
        %1167 = vmatpush1.msra.mxu0 0.0
        %1168 = vmatprep.subr.mxu0 0.0
        %1169 = vmatpush1.msra.mxu0 0.0
        %1170 = vmatprep.subr.mxu0 0.0
        %1171 = vmatpush1.msra.mxu0 0.0
        %1172 = vmatprep.subr.mxu0 0.0
        %1173 = vmatpush1.msra.mxu0 0.0
        %1174 = vmatprep.subr.mxu0 0.0
        %1175 = vmatpush1.msra.mxu0 0.0
        %1176 = vmatprep.subr.mxu0 0.0
        %1177 = vmatpush1.msra.mxu0 0.0
        %1178 = vmatprep.subr.mxu0 0.0
        %1179 = vmatpush1.msra.mxu0 0.0
        %1180 = vmatprep.subr.mxu0 0.0
        %1181 = vmatpush1.msra.mxu0 0.0
        %1182 = vmatprep.mubr.f32.mxu0 0.0
        %1183 = vmatmul.mubr.f32.gmra.mrb[0].mxu0 %v1054
        %v1184 = vpop.f32.mrb[0].mxu0
        %v1185 = vadd.f32 0.0, %v1184
        %v1186 = vpop.f32.mrb[0].mxu0
        %1187 = vmatprep.mubr.f32.mxu0 0.0
        %1188 = vmatmul.mubr.f32.gmra.mrb[0].mxu0 %v1056
        %v1189 = vpop.f32.mrb[0].mxu0
        %v1190 = vadd.f32 0.0, %v1189
        %v1191 = vpop.f32.mrb[0].mxu0
        %1192 = vmatprep.mubr.f32.mxu0 0.0
        %1193 = vmatmul.mubr.f32.gmra.mrb[0].mxu0 %v1058
        %v1194 = vpop.f32.mrb[0].mxu0
        %v1195 = vadd.f32 0.0, %v1194
        %v1196 = vpop.f32.mrb[0].mxu0
        %1197 = vmatprep.mubr.f32.mxu0 0.0
        %1198 = vmatmul.mubr.f32.gmra.mrb[0].mxu0 %v1060
        %v1199 = vpop.f32.mrb[0].mxu0
        %v1200 = vadd.f32 0.0, %v1199
        %v1201 = vpop.f32.mrb[0].mxu0
        %1202 = vmatprep.mubr.f32.mxu0 0.0
        %1203 = vmatmul.mubr.f32.gmra.mrb[0].mxu0 %v1062
        %v1204 = vpop.f32.mrb[0].mxu0
        %v1205 = vadd.f32 0.0, %v1204
        %v1206 = vpop.f32.mrb[0].mxu0
        %1207 = vmatprep.mubr.f32.mxu0 0.0
        %1208 = vmatmul.mubr.f32.gmra.mrb[0].mxu0 %v1064
        %v1209 = vpop.f32.mrb[0].mxu0
        %v1210 = vadd.f32 0.0, %v1209
        %v1211 = vpop.f32.mrb[0].mxu0
        %1212 = vmatprep.mubr.f32.mxu0 0.0
        %1213 = vmatmul.mubr.f32.gmra.mrb[0].mxu0 %v1066
        %v1214 = vpop.f32.mrb[0].mxu0
        %v1215 = vadd.f32 0.0, %v1214
        %v1216 = vpop.f32.mrb[0].mxu0
        %1217 = vmatprep.mubr.f32.mxu0 0.0
        %1218 = vmatmul.mubr.f32.gmra.mrb[0].mxu0 %v1068
        %v1219 = vpop.f32.mrb[0].mxu0
        %v1220 = vadd.f32 0.0, %v1219
        %v1221 = vpop.f32.mrb[0].mxu0
        %1222 = vmatprep.mubr.f32.mxu0 0.0
        %1223 = vmatmul.mubr.f32.gmra.mrb[0].mxu0 %v1070
        %v1224 = vpop.f32.mrb[0].mxu0
        %v1225 = vadd.f32 0.0, %v1224
        %v1226 = vpop.f32.mrb[0].mxu0
        %1227 = vmatprep.mubr.f32.mxu0 0.0
        %1228 = vmatmul.mubr.f32.gmra.mrb[0].mxu0 %v1072
        %v1229 = vpop.f32.mrb[0].mxu0
        %v1230 = vadd.f32 0.0, %v1229
        %v1231 = vpop.f32.mrb[0].mxu0
        %1232 = vmatprep.mubr.f32.mxu0 0.0
        %1233 = vmatmul.mubr.f32.gmra.mrb[0].mxu0 %v1074
        %v1234 = vpop.f32.mrb[0].mxu0
        %v1235 = vadd.f32 0.0, %v1234
        %v1236 = vpop.f32.mrb[0].mxu0
        %1237 = vmatprep.mubr.f32.mxu0 0.0
        %1238 = vmatmul.mubr.f32.gmra.mrb[0].mxu0 %v1076
        %v1239 = vpop.f32.mrb[0].mxu0
        %v1240 = vadd.f32 0.0, %v1239
        %v1241 = vpop.f32.mrb[0].mxu0
        %1242 = vmatprep.mubr.f32.mxu0 0.0
        %1243 = vmatmul.mubr.f32.gmra.mrb[0].mxu0 %v1078
        %v1244 = vpop.f32.mrb[0].mxu0
        %v1245 = vadd.f32 0.0, %v1244
        %v1246 = vpop.f32.mrb[0].mxu0
        %1247 = vmatprep.mubr.f32.mxu0 0.0
        %1248 = vmatmul.mubr.f32.gmra.mrb[0].mxu0 %v1080
        %v1249 = vpop.f32.mrb[0].mxu0
        %v1250 = vadd.f32 0.0, %v1249
        %v1251 = vpop.f32.mrb[0].mxu0
        %1252 = vmatprep.mubr.f32.mxu0 0.0
        %1253 = vmatmul.mubr.f32.gmra.mrb[0].mxu0 %v1082
        %v1254 = vpop.f32.mrb[0].mxu0
        %v1255 = vadd.f32 0.0, %v1254
        %v1256 = vpop.f32.mrb[0].mxu0
        %1257 = vmatprep.mubr.f32.mxu0 0.0
        %1258 = vmatmul.mubr.f32.gmra.mrb[0].mxu0 %v1084
        %v1259 = vpop.f32.mrb[0].mxu0
        %v1260 = vadd.f32 0.0, %v1259
        %v1261 = vpop.f32.mrb[0].mxu0
        %1262 = vmatprep.mubr.f32.mxu0 0.0
        %1263 = vmatmul.mubr.f32.gmra.mrb[0].mxu0 %v1086
        %v1264 = vpop.f32.mrb[0].mxu0
        %v1265 = vadd.f32 0.0, %v1264
        %v1266 = vpop.f32.mrb[0].mxu0
        %1267 = vmatprep.mubr.f32.mxu0 0.0
        %1268 = vmatmul.mubr.f32.gmra.mrb[0].mxu0 %v1088
        %v1269 = vpop.f32.mrb[0].mxu0
        %v1270 = vadd.f32 0.0, %v1269
        %v1271 = vpop.f32.mrb[0].mxu0
        %1272 = vmatprep.mubr.f32.mxu0 0.0
        %1273 = vmatmul.mubr.f32.gmra.mrb[0].mxu0 %v1090
        %v1274 = vpop.f32.mrb[0].mxu0
        %v1275 = vadd.f32 0.0, %v1274
        %v1276 = vpop.f32.mrb[0].mxu0
        %1277 = vmatprep.mubr.f32.mxu0 0.0
        %1278 = vmatmul.mubr.f32.gmra.mrb[0].mxu0 %v1092
        %v1279 = vpop.f32.mrb[0].mxu0
        %v1280 = vadd.f32 0.0, %v1279
        %v1281 = vpop.f32.mrb[0].mxu0
        %1282 = vmatprep.mubr.f32.mxu0 0.0
        %1283 = vmatmul.mubr.f32.gmra.mrb[0].mxu0 %v1094
        %v1284 = vpop.f32.mrb[0].mxu0
        %v1285 = vadd.f32 0.0, %v1284
        %v1286 = vpop.f32.mrb[0].mxu0
        %1287 = vmatprep.mubr.f32.mxu0 0.0
        %1288 = vmatmul.mubr.f32.gmra.mrb[0].mxu0 %v1096
        %v1289 = vpop.f32.mrb[0].mxu0
        %v1290 = vadd.f32 0.0, %v1289
        %v1291 = vpop.f32.mrb[0].mxu0
        %1292 = vmatprep.mubr.f32.mxu0 0.0
        %1293 = vmatmul.mubr.f32.gmra.mrb[0].mxu0 %v1098
        %v1294 = vpop.f32.mrb[0].mxu0
        %v1295 = vadd.f32 0.0, %v1294
        %v1296 = vpop.f32.mrb[0].mxu0
        %1297 = vmatprep.mubr.f32.mxu0 0.0
        %1298 = vmatmul.mubr.f32.gmra.mrb[0].mxu0 %v1100
        %v1299 = vpop.f32.mrb[0].mxu0
        %v1300 = vadd.f32 0.0, %v1299
        %v1301 = vpop.f32.mrb[0].mxu0
        %1302 = vmatprep.mubr.f32.mxu0 0.0
        %1303 = vmatmul.mubr.f32.gmra.mrb[0].mxu0 %v1102
        %v1304 = vpop.f32.mrb[0].mxu0
        %v1305 = vadd.f32 0.0, %v1304
        %v1306 = vpop.f32.mrb[0].mxu0
        %1307 = vmatprep.mubr.f32.mxu0 0.0
        %1308 = vmatmul.mubr.f32.gmra.mrb[0].mxu0 %v1104
        %v1309 = vpop.f32.mrb[0].mxu0
        %v1310 = vadd.f32 0.0, %v1309
        %v1311 = vpop.f32.mrb[0].mxu0
        %1312 = vmatprep.mubr.f32.mxu0 0.0
        %1313 = vmatmul.mubr.f32.gmra.mrb[0].mxu0 %v1106
        %v1314 = vpop.f32.mrb[0].mxu0
        %v1315 = vadd.f32 0.0, %v1314
        %v1316 = vpop.f32.mrb[0].mxu0
        %1317 = vmatprep.mubr.f32.mxu0 0.0
        %1318 = vmatmul.mubr.f32.gmra.mrb[0].mxu0 %v1108
        %v1319 = vpop.f32.mrb[0].mxu0
        %v1320 = vadd.f32 0.0, %v1319
        %v1321 = vpop.f32.mrb[0].mxu0
        %1322 = vmatprep.mubr.f32.mxu0 0.0
        %1323 = vmatmul.mubr.f32.gmra.mrb[0].mxu0 %v1110
        %v1324 = vpop.f32.mrb[0].mxu0
        %v1325 = vadd.f32 0.0, %v1324
        %v1326 = vpop.f32.mrb[0].mxu0
        %1327 = vmatprep.mubr.f32.mxu0 0.0
        %1328 = vmatmul.mubr.f32.gmra.mrb[0].mxu0 %v1112
        %v1329 = vpop.f32.mrb[0].mxu0
        %v1330 = vadd.f32 0.0, %v1329
        %v1331 = vpop.f32.mrb[0].mxu0
        %1332 = vmatprep.mubr.f32.mxu0 0.0
        %1333 = vmatmul.mubr.f32.gmra.mrb[0].mxu0 %v1114
        %v1334 = vpop.f32.mrb[0].mxu0
        %v1335 = vadd.f32 0.0, %v1334
        %v1336 = vpop.f32.mrb[0].mxu0
        %1337 = vmatprep.mubr.f32.mxu0 0.0
        %1338 = vmatmul.mubr.f32.gmra.mrb[0].mxu0 %v1116
        %v1339 = vpop.f32.mrb[0].mxu0
        %v1340 = vadd.f32 0.0, %v1339
        %v1341 = vpop.f32.mrb[0].mxu0
        %1342 = vdwg.mxu0
        %v1343 = vadd.f32 %v815, %v1185
        %v1344 = vadd.f32 %v820, %v1190
        %v1345 = vadd.f32 %v825, %v1195
        %v1346 = vadd.f32 %v830, %v1200
        %v1347 = vadd.f32 %v835, %v1205
        %v1348 = vadd.f32 %v840, %v1210
        %v1349 = vadd.f32 %v845, %v1215
        %v1350 = vadd.f32 %v850, %v1220
        %v1351 = vadd.f32 %v855, %v1225
        %v1352 = vadd.f32 %v860, %v1230
        %v1353 = vadd.f32 %v865, %v1235
        %v1354 = vadd.f32 %v870, %v1240
        %v1355 = vadd.f32 %v875, %v1245
        %v1356 = vadd.f32 %v880, %v1250
        %v1357 = vadd.f32 %v885, %v1255
        %v1358 = vadd.f32 %v890, %v1260
        %v1359 = vadd.f32 %v895, %v1265
        %v1360 = vadd.f32 %v900, %v1270
        %v1361 = vadd.f32 %v905, %v1275
        %v1362 = vadd.f32 %v910, %v1280
        %v1363 = vadd.f32 %v915, %v1285
        %v1364 = vadd.f32 %v920, %v1290
        %v1365 = vadd.f32 %v925, %v1295
        %v1366 = vadd.f32 %v930, %v1300
        %v1367 = vadd.f32 %v935, %v1305
        %v1368 = vadd.f32 %v940, %v1310
        %v1369 = vadd.f32 %v945, %v1315
        %v1370 = vadd.f32 %v950, %v1320
        %v1371 = vadd.f32 %v955, %v1325
        %v1372 = vadd.f32 %v960, %v1330
        %v1373 = vadd.f32 %v965, %v1335
        %v1374 = vadd.f32 %v970, %v1340
        %v1376 = vsel %vm394, %v250, 0
        %v1379 = vsel %vm394, %v251, 0
        %1381 = vmatprep.subr.mxu0 0.0
        %1382 = vmatpush1.msra.mxu0 %v259
        %1383 = vmatprep.subr.mxu0 0.0
        %1384 = vmatpush1.msra.mxu0 0.0
        %1385 = vmatprep.subr.mxu0 0.0
        %1386 = vmatpush1.msra.mxu0 0.0
        %1387 = vmatprep.subr.mxu0 0.0
        %1388 = vmatpush1.msra.mxu0 0.0
        %1389 = vmatprep.subr.mxu0 0.0
        %1390 = vmatpush1.msra.mxu0 0.0
        %1391 = vmatprep.subr.mxu0 0.0
        %1392 = vmatpush1.msra.mxu0 0.0
        %1393 = vmatprep.subr.mxu0 0.0
        %1394 = vmatpush1.msra.mxu0 0.0
        %1395 = vmatprep.subr.mxu0 0.0
        %1396 = vmatpush1.msra.mxu0 0.0
        %1397 = vmatprep.subr.mxu0 0.0
        %1398 = vmatpush1.msra.mxu0 0.0
        %1399 = vmatprep.subr.mxu0 0.0
        %1400 = vmatpush1.msra.mxu0 0.0
        %1401 = vmatprep.subr.mxu0 0.0
        %1402 = vmatpush1.msra.mxu0 0.0
        %1403 = vmatprep.subr.mxu0 0.0
        %1404 = vmatpush1.msra.mxu0 0.0
        %1405 = vmatprep.subr.mxu0 0.0
        %1406 = vmatpush1.msra.mxu0 0.0
        %1407 = vmatprep.subr.mxu0 0.0
        %1408 = vmatpush1.msra.mxu0 0.0
        %1409 = vmatprep.subr.mxu0 0.0
        %1410 = vmatpush1.msra.mxu0 0.0
        %1411 = vmatprep.subr.mxu0 0.0
        %1412 = vmatpush1.msra.mxu0 0.0
        %1413 = vmatprep.subr.mxu0 0.0
        %1414 = vmatpush1.msra.mxu0 0.0
        %1415 = vmatprep.subr.mxu0 0.0
        %1416 = vmatpush1.msra.mxu0 0.0
        %1417 = vmatprep.subr.mxu0 0.0
        %1418 = vmatpush1.msra.mxu0 0.0
        %1419 = vmatprep.subr.mxu0 0.0
        %1420 = vmatpush1.msra.mxu0 0.0
        %1421 = vmatprep.subr.mxu0 0.0
        %1422 = vmatpush1.msra.mxu0 0.0
        %1423 = vmatprep.subr.mxu0 0.0
        %1424 = vmatpush1.msra.mxu0 0.0
        %1425 = vmatprep.subr.mxu0 0.0
        %1426 = vmatpush1.msra.mxu0 0.0
        %1427 = vmatprep.subr.mxu0 0.0
        %1428 = vmatpush1.msra.mxu0 0.0
        %1429 = vmatprep.subr.mxu0 0.0
        %1430 = vmatpush1.msra.mxu0 0.0
        %1431 = vmatprep.subr.mxu0 0.0
        %1432 = vmatpush1.msra.mxu0 0.0
        %1433 = vmatprep.subr.mxu0 0.0
        %1434 = vmatpush1.msra.mxu0 0.0
        %1435 = vmatprep.subr.mxu0 0.0
        %1436 = vmatpush1.msra.mxu0 0.0
        %1437 = vmatprep.subr.mxu0 0.0
        %1438 = vmatpush1.msra.mxu0 0.0
        %1439 = vmatprep.subr.mxu0 0.0
        %1440 = vmatpush1.msra.mxu0 0.0
        %1441 = vmatprep.subr.mxu0 0.0
        %1442 = vmatpush1.msra.mxu0 0.0
        %1443 = vmatprep.subr.mxu0 0.0
        %1444 = vmatpush1.msra.mxu0 0.0
        %1445 = vmatprep.mubr.f32.mxu0 0.0
        %1446 = vmatmul.mubr.f32.gmra.mrb[0].mxu0 %v688
        %v1447 = vpop.f32.mrb[0].mxu0
        %v1448 = vadd.f32 0.0, %v1447
        %v1449 = vpop.f32.mrb[0].mxu0
        %1450 = vmatprep.mubr.f32.mxu0 0.0
        %1451 = vmatmul.mubr.f32.gmra.mrb[0].mxu0 %v690
        %v1452 = vpop.f32.mrb[0].mxu0
        %v1453 = vadd.f32 0.0, %v1452
        %v1454 = vpop.f32.mrb[0].mxu0
        %1455 = vmatprep.mubr.f32.mxu0 0.0
        %1456 = vmatmul.mubr.f32.gmra.mrb[0].mxu0 %v692
        %v1457 = vpop.f32.mrb[0].mxu0
        %v1458 = vadd.f32 0.0, %v1457
        %v1459 = vpop.f32.mrb[0].mxu0
        %1460 = vmatprep.mubr.f32.mxu0 0.0
        %1461 = vmatmul.mubr.f32.gmra.mrb[0].mxu0 %v694
        %v1462 = vpop.f32.mrb[0].mxu0
        %v1463 = vadd.f32 0.0, %v1462
        %v1464 = vpop.f32.mrb[0].mxu0
        %1465 = vmatprep.mubr.f32.mxu0 0.0
        %1466 = vmatmul.mubr.f32.gmra.mrb[0].mxu0 %v696
        %v1467 = vpop.f32.mrb[0].mxu0
        %v1468 = vadd.f32 0.0, %v1467
        %v1469 = vpop.f32.mrb[0].mxu0
        %1470 = vmatprep.mubr.f32.mxu0 0.0
        %1471 = vmatmul.mubr.f32.gmra.mrb[0].mxu0 %v698
        %v1472 = vpop.f32.mrb[0].mxu0
        %v1473 = vadd.f32 0.0, %v1472
        %v1474 = vpop.f32.mrb[0].mxu0
        %1475 = vmatprep.mubr.f32.mxu0 0.0
        %1476 = vmatmul.mubr.f32.gmra.mrb[0].mxu0 %v700
        %v1477 = vpop.f32.mrb[0].mxu0
        %v1478 = vadd.f32 0.0, %v1477
        %v1479 = vpop.f32.mrb[0].mxu0
        %1480 = vmatprep.mubr.f32.mxu0 0.0
        %1481 = vmatmul.mubr.f32.gmra.mrb[0].mxu0 %v702
        %v1482 = vpop.f32.mrb[0].mxu0
        %v1483 = vadd.f32 0.0, %v1482
        %v1484 = vpop.f32.mrb[0].mxu0
        %1485 = vmatprep.mubr.f32.mxu0 0.0
        %1486 = vmatmul.mubr.f32.gmra.mrb[0].mxu0 %v704
        %v1487 = vpop.f32.mrb[0].mxu0
        %v1488 = vadd.f32 0.0, %v1487
        %v1489 = vpop.f32.mrb[0].mxu0
        %1490 = vmatprep.mubr.f32.mxu0 0.0
        %1491 = vmatmul.mubr.f32.gmra.mrb[0].mxu0 %v706
        %v1492 = vpop.f32.mrb[0].mxu0
        %v1493 = vadd.f32 0.0, %v1492
        %v1494 = vpop.f32.mrb[0].mxu0
        %1495 = vmatprep.mubr.f32.mxu0 0.0
        %1496 = vmatmul.mubr.f32.gmra.mrb[0].mxu0 %v708
        %v1497 = vpop.f32.mrb[0].mxu0
        %v1498 = vadd.f32 0.0, %v1497
        %v1499 = vpop.f32.mrb[0].mxu0
        %1500 = vmatprep.mubr.f32.mxu0 0.0
        %1501 = vmatmul.mubr.f32.gmra.mrb[0].mxu0 %v710
        %v1502 = vpop.f32.mrb[0].mxu0
        %v1503 = vadd.f32 0.0, %v1502
        %v1504 = vpop.f32.mrb[0].mxu0
        %1505 = vmatprep.mubr.f32.mxu0 0.0
        %1506 = vmatmul.mubr.f32.gmra.mrb[0].mxu0 %v712
        %v1507 = vpop.f32.mrb[0].mxu0
        %v1508 = vadd.f32 0.0, %v1507
        %v1509 = vpop.f32.mrb[0].mxu0
        %1510 = vmatprep.mubr.f32.mxu0 0.0
        %1511 = vmatmul.mubr.f32.gmra.mrb[0].mxu0 %v714
        %v1512 = vpop.f32.mrb[0].mxu0
        %v1513 = vadd.f32 0.0, %v1512
        %v1514 = vpop.f32.mrb[0].mxu0
        %1515 = vmatprep.mubr.f32.mxu0 0.0
        %1516 = vmatmul.mubr.f32.gmra.mrb[0].mxu0 %v716
        %v1517 = vpop.f32.mrb[0].mxu0
        %v1518 = vadd.f32 0.0, %v1517
        %v1519 = vpop.f32.mrb[0].mxu0
        %1520 = vmatprep.mubr.f32.mxu0 0.0
        %1521 = vmatmul.mubr.f32.gmra.mrb[0].mxu0 %v718
        %v1522 = vpop.f32.mrb[0].mxu0
        %v1523 = vadd.f32 0.0, %v1522
        %v1524 = vpop.f32.mrb[0].mxu0
        %1525 = vmatprep.mubr.f32.mxu0 0.0
        %1526 = vmatmul.mubr.f32.gmra.mrb[0].mxu0 %v720
        %v1527 = vpop.f32.mrb[0].mxu0
        %v1528 = vadd.f32 0.0, %v1527
        %v1529 = vpop.f32.mrb[0].mxu0
        %1530 = vmatprep.mubr.f32.mxu0 0.0
        %1531 = vmatmul.mubr.f32.gmra.mrb[0].mxu0 %v722
        %v1532 = vpop.f32.mrb[0].mxu0
        %v1533 = vadd.f32 0.0, %v1532
        %v1534 = vpop.f32.mrb[0].mxu0
        %1535 = vmatprep.mubr.f32.mxu0 0.0
        %1536 = vmatmul.mubr.f32.gmra.mrb[0].mxu0 %v724
        %v1537 = vpop.f32.mrb[0].mxu0
        %v1538 = vadd.f32 0.0, %v1537
        %v1539 = vpop.f32.mrb[0].mxu0
        %1540 = vmatprep.mubr.f32.mxu0 0.0
        %1541 = vmatmul.mubr.f32.gmra.mrb[0].mxu0 %v726
        %v1542 = vpop.f32.mrb[0].mxu0
        %v1543 = vadd.f32 0.0, %v1542
        %v1544 = vpop.f32.mrb[0].mxu0
        %1545 = vmatprep.mubr.f32.mxu0 0.0
        %1546 = vmatmul.mubr.f32.gmra.mrb[0].mxu0 %v728
        %v1547 = vpop.f32.mrb[0].mxu0
        %v1548 = vadd.f32 0.0, %v1547
        %v1549 = vpop.f32.mrb[0].mxu0
        %1550 = vmatprep.mubr.f32.mxu0 0.0
        %1551 = vmatmul.mubr.f32.gmra.mrb[0].mxu0 %v730
        %v1552 = vpop.f32.mrb[0].mxu0
        %v1553 = vadd.f32 0.0, %v1552
        %v1554 = vpop.f32.mrb[0].mxu0
        %1555 = vmatprep.mubr.f32.mxu0 0.0
        %1556 = vmatmul.mubr.f32.gmra.mrb[0].mxu0 %v732
        %v1557 = vpop.f32.mrb[0].mxu0
        %v1558 = vadd.f32 0.0, %v1557
        %v1559 = vpop.f32.mrb[0].mxu0
        %1560 = vmatprep.mubr.f32.mxu0 0.0
        %1561 = vmatmul.mubr.f32.gmra.mrb[0].mxu0 %v734
        %v1562 = vpop.f32.mrb[0].mxu0
        %v1563 = vadd.f32 0.0, %v1562
        %v1564 = vpop.f32.mrb[0].mxu0
        %1565 = vmatprep.mubr.f32.mxu0 0.0
        %1566 = vmatmul.mubr.f32.gmra.mrb[0].mxu0 %v736
        %v1567 = vpop.f32.mrb[0].mxu0
        %v1568 = vadd.f32 0.0, %v1567
        %v1569 = vpop.f32.mrb[0].mxu0
        %1570 = vmatprep.mubr.f32.mxu0 0.0
        %1571 = vmatmul.mubr.f32.gmra.mrb[0].mxu0 %v738
        %v1572 = vpop.f32.mrb[0].mxu0
        %v1573 = vadd.f32 0.0, %v1572
        %v1574 = vpop.f32.mrb[0].mxu0
        %1575 = vmatprep.mubr.f32.mxu0 0.0
        %1576 = vmatmul.mubr.f32.gmra.mrb[0].mxu0 %v740
        %v1577 = vpop.f32.mrb[0].mxu0
        %v1578 = vadd.f32 0.0, %v1577
        %v1579 = vpop.f32.mrb[0].mxu0
        %1580 = vmatprep.mubr.f32.mxu0 0.0
        %1581 = vmatmul.mubr.f32.gmra.mrb[0].mxu0 %v742
        %v1582 = vpop.f32.mrb[0].mxu0
        %v1583 = vadd.f32 0.0, %v1582
        %v1584 = vpop.f32.mrb[0].mxu0
        %1585 = vmatprep.mubr.f32.mxu0 0.0
        %1586 = vmatmul.mubr.f32.gmra.mrb[0].mxu0 %v744
        %v1587 = vpop.f32.mrb[0].mxu0
        %v1588 = vadd.f32 0.0, %v1587
        %v1589 = vpop.f32.mrb[0].mxu0
        %1590 = vmatprep.mubr.f32.mxu0 0.0
        %1591 = vmatmul.mubr.f32.gmra.mrb[0].mxu0 %v746
        %v1592 = vpop.f32.mrb[0].mxu0
        %v1593 = vadd.f32 0.0, %v1592
        %v1594 = vpop.f32.mrb[0].mxu0
        %1595 = vmatprep.mubr.f32.mxu0 0.0
        %1596 = vmatmul.mubr.f32.gmra.mrb[0].mxu0 %v1376
        %v1597 = vpop.f32.mrb[0].mxu0
        %v1598 = vadd.f32 0.0, %v1597
        %v1599 = vpop.f32.mrb[0].mxu0
        %1600 = vmatprep.mubr.f32.mxu0 0.0
        %1601 = vmatmul.mubr.f32.gmra.mrb[0].mxu0 %v1379
        %v1602 = vpop.f32.mrb[0].mxu0
        %v1603 = vadd.f32 0.0, %v1602
        %v1604 = vpop.f32.mrb[0].mxu0
        %1605 = vdwg.mxu0
        %v1606 = vadd.f32 %v1343, %v1448
        %v1607 = vadd.f32 %v1344, %v1453
        %v1608 = vadd.f32 %v1345, %v1458
        %v1609 = vadd.f32 %v1346, %v1463
        %v1610 = vadd.f32 %v1347, %v1468
        %v1611 = vadd.f32 %v1348, %v1473
        %v1612 = vadd.f32 %v1349, %v1478
        %v1613 = vadd.f32 %v1350, %v1483
        %v1614 = vadd.f32 %v1351, %v1488
        %v1615 = vadd.f32 %v1352, %v1493
        %v1616 = vadd.f32 %v1353, %v1498
        %v1617 = vadd.f32 %v1354, %v1503
        %v1618 = vadd.f32 %v1355, %v1508
        %v1619 = vadd.f32 %v1356, %v1513
        %v1620 = vadd.f32 %v1357, %v1518
        %v1621 = vadd.f32 %v1358, %v1523
        %v1622 = vadd.f32 %v1359, %v1528
        %v1623 = vadd.f32 %v1360, %v1533
        %v1624 = vadd.f32 %v1361, %v1538
        %v1625 = vadd.f32 %v1362, %v1543
        %v1626 = vadd.f32 %v1363, %v1548
        %v1627 = vadd.f32 %v1364, %v1553
        %v1628 = vadd.f32 %v1365, %v1558
        %v1629 = vadd.f32 %v1366, %v1563
        %v1630 = vadd.f32 %v1367, %v1568
        %v1631 = vadd.f32 %v1368, %v1573
        %v1632 = vadd.f32 %v1369, %v1578
        %v1633 = vadd.f32 %v1370, %v1583
        %v1634 = vadd.f32 %v1371, %v1588
        %v1635 = vadd.f32 %v1372, %v1593
        %v1636 = vadd.f32 %v1373, %v1598
        %v1637 = vadd.f32 %v1374, %v1603
        %v1639 = vrot.slane %v250, 1
        %v1640 = vrot.slane %v251, 1
        %v1641 = vsel %vm313, %v1639, %v1640
        %v1642 = vrot.slane %v252, 1
        %v1643 = vsel %vm313, %v1640, %v1642
        %v1644 = vsel %vm394, %v1641, 0
        %v1646 = vsel %vm394, %v1643, 0
        %1648 = vmatprep.subr.mxu0 0.0
        %1649 = vmatpush1.msra.mxu0 %v260
        %1650 = vmatprep.subr.mxu0 0.0
        %1651 = vmatpush1.msra.mxu0 0.0
        %1652 = vmatprep.subr.mxu0 0.0
        %1653 = vmatpush1.msra.mxu0 0.0
        %1654 = vmatprep.subr.mxu0 0.0
        %1655 = vmatpush1.msra.mxu0 0.0
        %1656 = vmatprep.subr.mxu0 0.0
        %1657 = vmatpush1.msra.mxu0 0.0
        %1658 = vmatprep.subr.mxu0 0.0
        %1659 = vmatpush1.msra.mxu0 0.0
        %1660 = vmatprep.subr.mxu0 0.0
        %1661 = vmatpush1.msra.mxu0 0.0
        %1662 = vmatprep.subr.mxu0 0.0
        %1663 = vmatpush1.msra.mxu0 0.0
        %1664 = vmatprep.subr.mxu0 0.0
        %1665 = vmatpush1.msra.mxu0 0.0
        %1666 = vmatprep.subr.mxu0 0.0
        %1667 = vmatpush1.msra.mxu0 0.0
        %1668 = vmatprep.subr.mxu0 0.0
        %1669 = vmatpush1.msra.mxu0 0.0
        %1670 = vmatprep.subr.mxu0 0.0
        %1671 = vmatpush1.msra.mxu0 0.0
        %1672 = vmatprep.subr.mxu0 0.0
        %1673 = vmatpush1.msra.mxu0 0.0
        %1674 = vmatprep.subr.mxu0 0.0
        %1675 = vmatpush1.msra.mxu0 0.0
        %1676 = vmatprep.subr.mxu0 0.0
        %1677 = vmatpush1.msra.mxu0 0.0
        %1678 = vmatprep.subr.mxu0 0.0
        %1679 = vmatpush1.msra.mxu0 0.0
        %1680 = vmatprep.subr.mxu0 0.0
        %1681 = vmatpush1.msra.mxu0 0.0
        %1682 = vmatprep.subr.mxu0 0.0
        %1683 = vmatpush1.msra.mxu0 0.0
        %1684 = vmatprep.subr.mxu0 0.0
        %1685 = vmatpush1.msra.mxu0 0.0
        %1686 = vmatprep.subr.mxu0 0.0
        %1687 = vmatpush1.msra.mxu0 0.0
        %1688 = vmatprep.subr.mxu0 0.0
        %1689 = vmatpush1.msra.mxu0 0.0
        %1690 = vmatprep.subr.mxu0 0.0
        %1691 = vmatpush1.msra.mxu0 0.0
        %1692 = vmatprep.subr.mxu0 0.0
        %1693 = vmatpush1.msra.mxu0 0.0
        %1694 = vmatprep.subr.mxu0 0.0
        %1695 = vmatpush1.msra.mxu0 0.0
        %1696 = vmatprep.subr.mxu0 0.0
        %1697 = vmatpush1.msra.mxu0 0.0
        %1698 = vmatprep.subr.mxu0 0.0
        %1699 = vmatpush1.msra.mxu0 0.0
        %1700 = vmatprep.subr.mxu0 0.0
        %1701 = vmatpush1.msra.mxu0 0.0
        %1702 = vmatprep.subr.mxu0 0.0
        %1703 = vmatpush1.msra.mxu0 0.0
        %1704 = vmatprep.subr.mxu0 0.0
        %1705 = vmatpush1.msra.mxu0 0.0
        %1706 = vmatprep.subr.mxu0 0.0
        %1707 = vmatpush1.msra.mxu0 0.0
        %1708 = vmatprep.subr.mxu0 0.0
        %1709 = vmatpush1.msra.mxu0 0.0
        %1710 = vmatprep.subr.mxu0 0.0
        %1711 = vmatpush1.msra.mxu0 0.0
        %1712 = vmatprep.mubr.f32.mxu0 0.0
        %1713 = vmatmul.mubr.f32.gmra.mrb[0].mxu0 %v399
        %v1714 = vpop.f32.mrb[0].mxu0
        %v1715 = vadd.f32 0.0, %v1714
        %v1716 = vpop.f32.mrb[0].mxu0
        %1717 = vmatprep.mubr.f32.mxu0 0.0
        %1718 = vmatmul.mubr.f32.gmra.mrb[0].mxu0 %v401
        %v1719 = vpop.f32.mrb[0].mxu0
        %v1720 = vadd.f32 0.0, %v1719
        %v1721 = vpop.f32.mrb[0].mxu0
        %1722 = vmatprep.mubr.f32.mxu0 0.0
        %1723 = vmatmul.mubr.f32.gmra.mrb[0].mxu0 %v403
        %v1724 = vpop.f32.mrb[0].mxu0
        %v1725 = vadd.f32 0.0, %v1724
        %v1726 = vpop.f32.mrb[0].mxu0
        %1727 = vmatprep.mubr.f32.mxu0 0.0
        %1728 = vmatmul.mubr.f32.gmra.mrb[0].mxu0 %v405
        %v1729 = vpop.f32.mrb[0].mxu0
        %v1730 = vadd.f32 0.0, %v1729
        %v1731 = vpop.f32.mrb[0].mxu0
        %1732 = vmatprep.mubr.f32.mxu0 0.0
        %1733 = vmatmul.mubr.f32.gmra.mrb[0].mxu0 %v407
        %v1734 = vpop.f32.mrb[0].mxu0
        %v1735 = vadd.f32 0.0, %v1734
        %v1736 = vpop.f32.mrb[0].mxu0
        %1737 = vmatprep.mubr.f32.mxu0 0.0
        %1738 = vmatmul.mubr.f32.gmra.mrb[0].mxu0 %v409
        %v1739 = vpop.f32.mrb[0].mxu0
        %v1740 = vadd.f32 0.0, %v1739
        %v1741 = vpop.f32.mrb[0].mxu0
        %1742 = vmatprep.mubr.f32.mxu0 0.0
        %1743 = vmatmul.mubr.f32.gmra.mrb[0].mxu0 %v411
        %v1744 = vpop.f32.mrb[0].mxu0
        %v1745 = vadd.f32 0.0, %v1744
        %v1746 = vpop.f32.mrb[0].mxu0
        %1747 = vmatprep.mubr.f32.mxu0 0.0
        %1748 = vmatmul.mubr.f32.gmra.mrb[0].mxu0 %v413
        %v1749 = vpop.f32.mrb[0].mxu0
        %v1750 = vadd.f32 0.0, %v1749
        %v1751 = vpop.f32.mrb[0].mxu0
        %1752 = vmatprep.mubr.f32.mxu0 0.0
        %1753 = vmatmul.mubr.f32.gmra.mrb[0].mxu0 %v415
        %v1754 = vpop.f32.mrb[0].mxu0
        %v1755 = vadd.f32 0.0, %v1754
        %v1756 = vpop.f32.mrb[0].mxu0
        %1757 = vmatprep.mubr.f32.mxu0 0.0
        %1758 = vmatmul.mubr.f32.gmra.mrb[0].mxu0 %v417
        %v1759 = vpop.f32.mrb[0].mxu0
        %v1760 = vadd.f32 0.0, %v1759
        %v1761 = vpop.f32.mrb[0].mxu0
        %1762 = vmatprep.mubr.f32.mxu0 0.0
        %1763 = vmatmul.mubr.f32.gmra.mrb[0].mxu0 %v419
        %v1764 = vpop.f32.mrb[0].mxu0
        %v1765 = vadd.f32 0.0, %v1764
        %v1766 = vpop.f32.mrb[0].mxu0
        %1767 = vmatprep.mubr.f32.mxu0 0.0
        %1768 = vmatmul.mubr.f32.gmra.mrb[0].mxu0 %v421
        %v1769 = vpop.f32.mrb[0].mxu0
        %v1770 = vadd.f32 0.0, %v1769
        %v1771 = vpop.f32.mrb[0].mxu0
        %1772 = vmatprep.mubr.f32.mxu0 0.0
        %1773 = vmatmul.mubr.f32.gmra.mrb[0].mxu0 %v423
        %v1774 = vpop.f32.mrb[0].mxu0
        %v1775 = vadd.f32 0.0, %v1774
        %v1776 = vpop.f32.mrb[0].mxu0
        %1777 = vmatprep.mubr.f32.mxu0 0.0
        %1778 = vmatmul.mubr.f32.gmra.mrb[0].mxu0 %v425
        %v1779 = vpop.f32.mrb[0].mxu0
        %v1780 = vadd.f32 0.0, %v1779
        %v1781 = vpop.f32.mrb[0].mxu0
        %1782 = vmatprep.mubr.f32.mxu0 0.0
        %1783 = vmatmul.mubr.f32.gmra.mrb[0].mxu0 %v427
        %v1784 = vpop.f32.mrb[0].mxu0
        %v1785 = vadd.f32 0.0, %v1784
        %v1786 = vpop.f32.mrb[0].mxu0
        %1787 = vmatprep.mubr.f32.mxu0 0.0
        %1788 = vmatmul.mubr.f32.gmra.mrb[0].mxu0 %v429
        %v1789 = vpop.f32.mrb[0].mxu0
        %v1790 = vadd.f32 0.0, %v1789
        %v1791 = vpop.f32.mrb[0].mxu0
        %1792 = vmatprep.mubr.f32.mxu0 0.0
        %1793 = vmatmul.mubr.f32.gmra.mrb[0].mxu0 %v431
        %v1794 = vpop.f32.mrb[0].mxu0
        %v1795 = vadd.f32 0.0, %v1794
        %v1796 = vpop.f32.mrb[0].mxu0
        %1797 = vmatprep.mubr.f32.mxu0 0.0
        %1798 = vmatmul.mubr.f32.gmra.mrb[0].mxu0 %v433
        %v1799 = vpop.f32.mrb[0].mxu0
        %v1800 = vadd.f32 0.0, %v1799
        %v1801 = vpop.f32.mrb[0].mxu0
        %1802 = vmatprep.mubr.f32.mxu0 0.0
        %1803 = vmatmul.mubr.f32.gmra.mrb[0].mxu0 %v435
        %v1804 = vpop.f32.mrb[0].mxu0
        %v1805 = vadd.f32 0.0, %v1804
        %v1806 = vpop.f32.mrb[0].mxu0
        %1807 = vmatprep.mubr.f32.mxu0 0.0
        %1808 = vmatmul.mubr.f32.gmra.mrb[0].mxu0 %v437
        %v1809 = vpop.f32.mrb[0].mxu0
        %v1810 = vadd.f32 0.0, %v1809
        %v1811 = vpop.f32.mrb[0].mxu0
        %1812 = vmatprep.mubr.f32.mxu0 0.0
        %1813 = vmatmul.mubr.f32.gmra.mrb[0].mxu0 %v439
        %v1814 = vpop.f32.mrb[0].mxu0
        %v1815 = vadd.f32 0.0, %v1814
        %v1816 = vpop.f32.mrb[0].mxu0
        %1817 = vmatprep.mubr.f32.mxu0 0.0
        %1818 = vmatmul.mubr.f32.gmra.mrb[0].mxu0 %v441
        %v1819 = vpop.f32.mrb[0].mxu0
        %v1820 = vadd.f32 0.0, %v1819
        %v1821 = vpop.f32.mrb[0].mxu0
        %1822 = vmatprep.mubr.f32.mxu0 0.0
        %1823 = vmatmul.mubr.f32.gmra.mrb[0].mxu0 %v443
        %v1824 = vpop.f32.mrb[0].mxu0
        %v1825 = vadd.f32 0.0, %v1824
        %v1826 = vpop.f32.mrb[0].mxu0
        %1827 = vmatprep.mubr.f32.mxu0 0.0
        %1828 = vmatmul.mubr.f32.gmra.mrb[0].mxu0 %v445
        %v1829 = vpop.f32.mrb[0].mxu0
        %v1830 = vadd.f32 0.0, %v1829
        %v1831 = vpop.f32.mrb[0].mxu0
        %1832 = vmatprep.mubr.f32.mxu0 0.0
        %1833 = vmatmul.mubr.f32.gmra.mrb[0].mxu0 %v447
        %v1834 = vpop.f32.mrb[0].mxu0
        %v1835 = vadd.f32 0.0, %v1834
        %v1836 = vpop.f32.mrb[0].mxu0
        %1837 = vmatprep.mubr.f32.mxu0 0.0
        %1838 = vmatmul.mubr.f32.gmra.mrb[0].mxu0 %v449
        %v1839 = vpop.f32.mrb[0].mxu0
        %v1840 = vadd.f32 0.0, %v1839
        %v1841 = vpop.f32.mrb[0].mxu0
        %1842 = vmatprep.mubr.f32.mxu0 0.0
        %1843 = vmatmul.mubr.f32.gmra.mrb[0].mxu0 %v451
        %v1844 = vpop.f32.mrb[0].mxu0
        %v1845 = vadd.f32 0.0, %v1844
        %v1846 = vpop.f32.mrb[0].mxu0
        %1847 = vmatprep.mubr.f32.mxu0 0.0
        %1848 = vmatmul.mubr.f32.gmra.mrb[0].mxu0 %v453
        %v1849 = vpop.f32.mrb[0].mxu0
        %v1850 = vadd.f32 0.0, %v1849
        %v1851 = vpop.f32.mrb[0].mxu0
        %1852 = vmatprep.mubr.f32.mxu0 0.0
        %1853 = vmatmul.mubr.f32.gmra.mrb[0].mxu0 %v455
        %v1854 = vpop.f32.mrb[0].mxu0
        %v1855 = vadd.f32 0.0, %v1854
        %v1856 = vpop.f32.mrb[0].mxu0
        %1857 = vmatprep.mubr.f32.mxu0 0.0
        %1858 = vmatmul.mubr.f32.gmra.mrb[0].mxu0 %v457
        %v1859 = vpop.f32.mrb[0].mxu0
        %v1860 = vadd.f32 0.0, %v1859
        %v1861 = vpop.f32.mrb[0].mxu0
        %1862 = vmatprep.mubr.f32.mxu0 0.0
        %1863 = vmatmul.mubr.f32.gmra.mrb[0].mxu0 %v1644
        %v1864 = vpop.f32.mrb[0].mxu0
        %v1865 = vadd.f32 0.0, %v1864
        %v1866 = vpop.f32.mrb[0].mxu0
        %1867 = vmatprep.mubr.f32.mxu0 0.0
        %1868 = vmatmul.mubr.f32.gmra.mrb[0].mxu0 %v1646
        %v1869 = vpop.f32.mrb[0].mxu0
        %v1870 = vadd.f32 0.0, %v1869
        %v1871 = vpop.f32.mrb[0].mxu0
        %1872 = vdwg.mxu0
        %v1873 = vadd.f32 %v1606, %v1715
        %v1874 = vadd.f32 %v1607, %v1720
        %v1875 = vadd.f32 %v1608, %v1725
        %v1876 = vadd.f32 %v1609, %v1730
        %v1877 = vadd.f32 %v1610, %v1735
        %v1878 = vadd.f32 %v1611, %v1740
        %v1879 = vadd.f32 %v1612, %v1745
        %v1880 = vadd.f32 %v1613, %v1750
        %v1881 = vadd.f32 %v1614, %v1755
        %v1882 = vadd.f32 %v1615, %v1760
        %v1883 = vadd.f32 %v1616, %v1765
        %v1884 = vadd.f32 %v1617, %v1770
        %v1885 = vadd.f32 %v1618, %v1775
        %v1886 = vadd.f32 %v1619, %v1780
        %v1887 = vadd.f32 %v1620, %v1785
        %v1888 = vadd.f32 %v1621, %v1790
        %v1889 = vadd.f32 %v1622, %v1795
        %v1890 = vadd.f32 %v1623, %v1800
        %v1891 = vadd.f32 %v1624, %v1805
        %v1892 = vadd.f32 %v1625, %v1810
        %v1893 = vadd.f32 %v1626, %v1815
        %v1894 = vadd.f32 %v1627, %v1820
        %v1895 = vadd.f32 %v1628, %v1825
        %v1896 = vadd.f32 %v1629, %v1830
        %v1897 = vadd.f32 %v1630, %v1835
        %v1898 = vadd.f32 %v1631, %v1840
        %v1899 = vadd.f32 %v1632, %v1845
        %v1900 = vadd.f32 %v1633, %v1850
        %v1901 = vadd.f32 %v1634, %v1855
        %v1902 = vadd.f32 %v1635, %v1860
        %v1903 = vadd.f32 %v1636, %v1865
        %v1904 = vadd.f32 %v1637, %v1870
        %v1905 = vrot.slane %v250, 2
        %v1906 = vrot.slane %v251, 2
        %v1907 = vsel %vm973, %v1905, %v1906
        %v1908 = vrot.slane %v252, 2
        %v1909 = vsel %vm973, %v1906, %v1908
        %v1910 = vsel %vm394, %v1907, 0
        %v1912 = vsel %vm394, %v1909, 0
        %1914 = vmatprep.subr.mxu0 0.0
        %1915 = vmatpush1.msra.mxu0 %v261
        %1916 = vmatprep.subr.mxu0 0.0
        %1917 = vmatpush1.msra.mxu0 0.0
        %1918 = vmatprep.subr.mxu0 0.0
        %1919 = vmatpush1.msra.mxu0 0.0
        %1920 = vmatprep.subr.mxu0 0.0
        %1921 = vmatpush1.msra.mxu0 0.0
        %1922 = vmatprep.subr.mxu0 0.0
        %1923 = vmatpush1.msra.mxu0 0.0
        %1924 = vmatprep.subr.mxu0 0.0
        %1925 = vmatpush1.msra.mxu0 0.0
        %1926 = vmatprep.subr.mxu0 0.0
        %1927 = vmatpush1.msra.mxu0 0.0
        %1928 = vmatprep.subr.mxu0 0.0
        %1929 = vmatpush1.msra.mxu0 0.0
        %1930 = vmatprep.subr.mxu0 0.0
        %1931 = vmatpush1.msra.mxu0 0.0
        %1932 = vmatprep.subr.mxu0 0.0
        %1933 = vmatpush1.msra.mxu0 0.0
        %1934 = vmatprep.subr.mxu0 0.0
        %1935 = vmatpush1.msra.mxu0 0.0
        %1936 = vmatprep.subr.mxu0 0.0
        %1937 = vmatpush1.msra.mxu0 0.0
        %1938 = vmatprep.subr.mxu0 0.0
        %1939 = vmatpush1.msra.mxu0 0.0
        %1940 = vmatprep.subr.mxu0 0.0
        %1941 = vmatpush1.msra.mxu0 0.0
        %1942 = vmatprep.subr.mxu0 0.0
        %1943 = vmatpush1.msra.mxu0 0.0
        %1944 = vmatprep.subr.mxu0 0.0
        %1945 = vmatpush1.msra.mxu0 0.0
        %1946 = vmatprep.subr.mxu0 0.0
        %1947 = vmatpush1.msra.mxu0 0.0
        %1948 = vmatprep.subr.mxu0 0.0
        %1949 = vmatpush1.msra.mxu0 0.0
        %1950 = vmatprep.subr.mxu0 0.0
        %1951 = vmatpush1.msra.mxu0 0.0
        %1952 = vmatprep.subr.mxu0 0.0
        %1953 = vmatpush1.msra.mxu0 0.0
        %1954 = vmatprep.subr.mxu0 0.0
        %1955 = vmatpush1.msra.mxu0 0.0
        %1956 = vmatprep.subr.mxu0 0.0
        %1957 = vmatpush1.msra.mxu0 0.0
        %1958 = vmatprep.subr.mxu0 0.0
        %1959 = vmatpush1.msra.mxu0 0.0
        %1960 = vmatprep.subr.mxu0 0.0
        %1961 = vmatpush1.msra.mxu0 0.0
        %1962 = vmatprep.subr.mxu0 0.0
        %1963 = vmatpush1.msra.mxu0 0.0
        %1964 = vmatprep.subr.mxu0 0.0
        %1965 = vmatpush1.msra.mxu0 0.0
        %1966 = vmatprep.subr.mxu0 0.0
        %1967 = vmatpush1.msra.mxu0 0.0
        %1968 = vmatprep.subr.mxu0 0.0
        %1969 = vmatpush1.msra.mxu0 0.0
        %1970 = vmatprep.subr.mxu0 0.0
        %1971 = vmatpush1.msra.mxu0 0.0
        %1972 = vmatprep.subr.mxu0 0.0
        %1973 = vmatpush1.msra.mxu0 0.0
        %1974 = vmatprep.subr.mxu0 0.0
        %1975 = vmatpush1.msra.mxu0 0.0
        %1976 = vmatprep.subr.mxu0 0.0
        %1977 = vmatpush1.msra.mxu0 0.0
        %1978 = vmatprep.mubr.f32.mxu0 0.0
        %1979 = vmatmul.mubr.f32.gmra.mrb[0].mxu0 %v1058
        %v1980 = vpop.f32.mrb[0].mxu0
        %v1981 = vadd.f32 0.0, %v1980
        %v1982 = vpop.f32.mrb[0].mxu0
        %1983 = vmatprep.mubr.f32.mxu0 0.0
        %1984 = vmatmul.mubr.f32.gmra.mrb[0].mxu0 %v1060
        %v1985 = vpop.f32.mrb[0].mxu0
        %v1986 = vadd.f32 0.0, %v1985
        %v1987 = vpop.f32.mrb[0].mxu0
        %1988 = vmatprep.mubr.f32.mxu0 0.0
        %1989 = vmatmul.mubr.f32.gmra.mrb[0].mxu0 %v1062
        %v1990 = vpop.f32.mrb[0].mxu0
        %v1991 = vadd.f32 0.0, %v1990
        %v1992 = vpop.f32.mrb[0].mxu0
        %1993 = vmatprep.mubr.f32.mxu0 0.0
        %1994 = vmatmul.mubr.f32.gmra.mrb[0].mxu0 %v1064
        %v1995 = vpop.f32.mrb[0].mxu0
        %v1996 = vadd.f32 0.0, %v1995
        %v1997 = vpop.f32.mrb[0].mxu0
        %1998 = vmatprep.mubr.f32.mxu0 0.0
        %1999 = vmatmul.mubr.f32.gmra.mrb[0].mxu0 %v1066
        %v2000 = vpop.f32.mrb[0].mxu0
        %v2001 = vadd.f32 0.0, %v2000
        %v2002 = vpop.f32.mrb[0].mxu0
        %2003 = vmatprep.mubr.f32.mxu0 0.0
        %2004 = vmatmul.mubr.f32.gmra.mrb[0].mxu0 %v1068
        %v2005 = vpop.f32.mrb[0].mxu0
        %v2006 = vadd.f32 0.0, %v2005
        %v2007 = vpop.f32.mrb[0].mxu0
        %2008 = vmatprep.mubr.f32.mxu0 0.0
        %2009 = vmatmul.mubr.f32.gmra.mrb[0].mxu0 %v1070
        %v2010 = vpop.f32.mrb[0].mxu0
        %v2011 = vadd.f32 0.0, %v2010
        %v2012 = vpop.f32.mrb[0].mxu0
        %2013 = vmatprep.mubr.f32.mxu0 0.0
        %2014 = vmatmul.mubr.f32.gmra.mrb[0].mxu0 %v1072
        %v2015 = vpop.f32.mrb[0].mxu0
        %v2016 = vadd.f32 0.0, %v2015
        %v2017 = vpop.f32.mrb[0].mxu0
        %2018 = vmatprep.mubr.f32.mxu0 0.0
        %2019 = vmatmul.mubr.f32.gmra.mrb[0].mxu0 %v1074
        %v2020 = vpop.f32.mrb[0].mxu0
        %v2021 = vadd.f32 0.0, %v2020
        %v2022 = vpop.f32.mrb[0].mxu0
        %2023 = vmatprep.mubr.f32.mxu0 0.0
        %2024 = vmatmul.mubr.f32.gmra.mrb[0].mxu0 %v1076
        %v2025 = vpop.f32.mrb[0].mxu0
        %v2026 = vadd.f32 0.0, %v2025
        %v2027 = vpop.f32.mrb[0].mxu0
        %2028 = vmatprep.mubr.f32.mxu0 0.0
        %2029 = vmatmul.mubr.f32.gmra.mrb[0].mxu0 %v1078
        %v2030 = vpop.f32.mrb[0].mxu0
        %v2031 = vadd.f32 0.0, %v2030
        %v2032 = vpop.f32.mrb[0].mxu0
        %2033 = vmatprep.mubr.f32.mxu0 0.0
        %2034 = vmatmul.mubr.f32.gmra.mrb[0].mxu0 %v1080
        %v2035 = vpop.f32.mrb[0].mxu0
        %v2036 = vadd.f32 0.0, %v2035
        %v2037 = vpop.f32.mrb[0].mxu0
        %2038 = vmatprep.mubr.f32.mxu0 0.0
        %2039 = vmatmul.mubr.f32.gmra.mrb[0].mxu0 %v1082
        %v2040 = vpop.f32.mrb[0].mxu0
        %v2041 = vadd.f32 0.0, %v2040
        %v2042 = vpop.f32.mrb[0].mxu0
        %2043 = vmatprep.mubr.f32.mxu0 0.0
        %2044 = vmatmul.mubr.f32.gmra.mrb[0].mxu0 %v1084
        %v2045 = vpop.f32.mrb[0].mxu0
        %v2046 = vadd.f32 0.0, %v2045
        %v2047 = vpop.f32.mrb[0].mxu0
        %2048 = vmatprep.mubr.f32.mxu0 0.0
        %2049 = vmatmul.mubr.f32.gmra.mrb[0].mxu0 %v1086
        %v2050 = vpop.f32.mrb[0].mxu0
        %v2051 = vadd.f32 0.0, %v2050
        %v2052 = vpop.f32.mrb[0].mxu0
        %2053 = vmatprep.mubr.f32.mxu0 0.0
        %2054 = vmatmul.mubr.f32.gmra.mrb[0].mxu0 %v1088
        %v2055 = vpop.f32.mrb[0].mxu0
        %v2056 = vadd.f32 0.0, %v2055
        %v2057 = vpop.f32.mrb[0].mxu0
        %2058 = vmatprep.mubr.f32.mxu0 0.0
        %2059 = vmatmul.mubr.f32.gmra.mrb[0].mxu0 %v1090
        %v2060 = vpop.f32.mrb[0].mxu0
        %v2061 = vadd.f32 0.0, %v2060
        %v2062 = vpop.f32.mrb[0].mxu0
        %2063 = vmatprep.mubr.f32.mxu0 0.0
        %2064 = vmatmul.mubr.f32.gmra.mrb[0].mxu0 %v1092
        %v2065 = vpop.f32.mrb[0].mxu0
        %v2066 = vadd.f32 0.0, %v2065
        %v2067 = vpop.f32.mrb[0].mxu0
        %2068 = vmatprep.mubr.f32.mxu0 0.0
        %2069 = vmatmul.mubr.f32.gmra.mrb[0].mxu0 %v1094
        %v2070 = vpop.f32.mrb[0].mxu0
        %v2071 = vadd.f32 0.0, %v2070
        %v2072 = vpop.f32.mrb[0].mxu0
        %2073 = vmatprep.mubr.f32.mxu0 0.0
        %2074 = vmatmul.mubr.f32.gmra.mrb[0].mxu0 %v1096
        %v2075 = vpop.f32.mrb[0].mxu0
        %v2076 = vadd.f32 0.0, %v2075
        %v2077 = vpop.f32.mrb[0].mxu0
        %2078 = vmatprep.mubr.f32.mxu0 0.0
        %2079 = vmatmul.mubr.f32.gmra.mrb[0].mxu0 %v1098
        %v2080 = vpop.f32.mrb[0].mxu0
        %v2081 = vadd.f32 0.0, %v2080
        %v2082 = vpop.f32.mrb[0].mxu0
        %2083 = vmatprep.mubr.f32.mxu0 0.0
        %2084 = vmatmul.mubr.f32.gmra.mrb[0].mxu0 %v1100
        %v2085 = vpop.f32.mrb[0].mxu0
        %v2086 = vadd.f32 0.0, %v2085
        %v2087 = vpop.f32.mrb[0].mxu0
        %2088 = vmatprep.mubr.f32.mxu0 0.0
        %2089 = vmatmul.mubr.f32.gmra.mrb[0].mxu0 %v1102
        %v2090 = vpop.f32.mrb[0].mxu0
        %v2091 = vadd.f32 0.0, %v2090
        %v2092 = vpop.f32.mrb[0].mxu0
        %2093 = vmatprep.mubr.f32.mxu0 0.0
        %2094 = vmatmul.mubr.f32.gmra.mrb[0].mxu0 %v1104
        %v2095 = vpop.f32.mrb[0].mxu0
        %v2096 = vadd.f32 0.0, %v2095
        %v2097 = vpop.f32.mrb[0].mxu0
        %2098 = vmatprep.mubr.f32.mxu0 0.0
        %2099 = vmatmul.mubr.f32.gmra.mrb[0].mxu0 %v1106
        %v2100 = vpop.f32.mrb[0].mxu0
        %v2101 = vadd.f32 0.0, %v2100
        %v2102 = vpop.f32.mrb[0].mxu0
        %2103 = vmatprep.mubr.f32.mxu0 0.0
        %2104 = vmatmul.mubr.f32.gmra.mrb[0].mxu0 %v1108
        %v2105 = vpop.f32.mrb[0].mxu0
        %v2106 = vadd.f32 0.0, %v2105
        %v2107 = vpop.f32.mrb[0].mxu0
        %2108 = vmatprep.mubr.f32.mxu0 0.0
        %2109 = vmatmul.mubr.f32.gmra.mrb[0].mxu0 %v1110
        %v2110 = vpop.f32.mrb[0].mxu0
        %v2111 = vadd.f32 0.0, %v2110
        %v2112 = vpop.f32.mrb[0].mxu0
        %2113 = vmatprep.mubr.f32.mxu0 0.0
        %2114 = vmatmul.mubr.f32.gmra.mrb[0].mxu0 %v1112
        %v2115 = vpop.f32.mrb[0].mxu0
        %v2116 = vadd.f32 0.0, %v2115
        %v2117 = vpop.f32.mrb[0].mxu0
        %2118 = vmatprep.mubr.f32.mxu0 0.0
        %2119 = vmatmul.mubr.f32.gmra.mrb[0].mxu0 %v1114
        %v2120 = vpop.f32.mrb[0].mxu0
        %v2121 = vadd.f32 0.0, %v2120
        %v2122 = vpop.f32.mrb[0].mxu0
        %2123 = vmatprep.mubr.f32.mxu0 0.0
        %2124 = vmatmul.mubr.f32.gmra.mrb[0].mxu0 %v1116
        %v2125 = vpop.f32.mrb[0].mxu0
        %v2126 = vadd.f32 0.0, %v2125
        %v2127 = vpop.f32.mrb[0].mxu0
        %2128 = vmatprep.mubr.f32.mxu0 0.0
        %2129 = vmatmul.mubr.f32.gmra.mrb[0].mxu0 %v1910
        %v2130 = vpop.f32.mrb[0].mxu0
        %v2131 = vadd.f32 0.0, %v2130
        %v2132 = vpop.f32.mrb[0].mxu0
        %2133 = vmatprep.mubr.f32.mxu0 0.0
        %2134 = vmatmul.mubr.f32.gmra.mrb[0].mxu0 %v1912
        %v2135 = vpop.f32.mrb[0].mxu0
        %v2136 = vadd.f32 0.0, %v2135
        %v2137 = vpop.f32.mrb[0].mxu0
        %2138 = vdwg.mxu0
        %v2139 = vadd.f32 %v1873, %v1981
        %v2140 = vadd.f32 %v1874, %v1986
        %v2141 = vadd.f32 %v1875, %v1991
        %v2142 = vadd.f32 %v1876, %v1996
        %v2143 = vadd.f32 %v1877, %v2001
        %v2144 = vadd.f32 %v1878, %v2006
        %v2145 = vadd.f32 %v1879, %v2011
        %v2146 = vadd.f32 %v1880, %v2016
        %v2147 = vadd.f32 %v1881, %v2021
        %v2148 = vadd.f32 %v1882, %v2026
        %v2149 = vadd.f32 %v1883, %v2031
        %v2150 = vadd.f32 %v1884, %v2036
        %v2151 = vadd.f32 %v1885, %v2041
        %v2152 = vadd.f32 %v1886, %v2046
        %v2153 = vadd.f32 %v1887, %v2051
        %v2154 = vadd.f32 %v1888, %v2056
        %v2155 = vadd.f32 %v1889, %v2061
        %v2156 = vadd.f32 %v1890, %v2066
        %v2157 = vadd.f32 %v1891, %v2071
        %v2158 = vadd.f32 %v1892, %v2076
        %v2159 = vadd.f32 %v1893, %v2081
        %v2160 = vadd.f32 %v1894, %v2086
        %v2161 = vadd.f32 %v1895, %v2091
        %v2162 = vadd.f32 %v1896, %v2096
        %v2163 = vadd.f32 %v1897, %v2101
        %v2164 = vadd.f32 %v1898, %v2106
        %v2165 = vadd.f32 %v1899, %v2111
        %v2166 = vadd.f32 %v1900, %v2116
        %v2167 = vadd.f32 %v1901, %v2121
        %v2168 = vadd.f32 %v1902, %v2126
        %v2169 = vadd.f32 %v1903, %v2131
        %v2170 = vadd.f32 %v1904, %v2136
        %v2172 = vsel %vm394, %v253, 0
        %v2175 = vsel %vm394, %v254, 0
        %2177 = vmatprep.subr.mxu0 0.0
        %2178 = vmatpush1.msra.mxu0 %v262
        %2179 = vmatprep.subr.mxu0 0.0
        %2180 = vmatpush1.msra.mxu0 0.0
        %2181 = vmatprep.subr.mxu0 0.0
        %2182 = vmatpush1.msra.mxu0 0.0
        %2183 = vmatprep.subr.mxu0 0.0
        %2184 = vmatpush1.msra.mxu0 0.0
        %2185 = vmatprep.subr.mxu0 0.0
        %2186 = vmatpush1.msra.mxu0 0.0
        %2187 = vmatprep.subr.mxu0 0.0
        %2188 = vmatpush1.msra.mxu0 0.0
        %2189 = vmatprep.subr.mxu0 0.0
        %2190 = vmatpush1.msra.mxu0 0.0
        %2191 = vmatprep.subr.mxu0 0.0
        %2192 = vmatpush1.msra.mxu0 0.0
        %2193 = vmatprep.subr.mxu0 0.0
        %2194 = vmatpush1.msra.mxu0 0.0
        %2195 = vmatprep.subr.mxu0 0.0
        %2196 = vmatpush1.msra.mxu0 0.0
        %2197 = vmatprep.subr.mxu0 0.0
        %2198 = vmatpush1.msra.mxu0 0.0
        %2199 = vmatprep.subr.mxu0 0.0
        %2200 = vmatpush1.msra.mxu0 0.0
        %2201 = vmatprep.subr.mxu0 0.0
        %2202 = vmatpush1.msra.mxu0 0.0
        %2203 = vmatprep.subr.mxu0 0.0
        %2204 = vmatpush1.msra.mxu0 0.0
        %2205 = vmatprep.subr.mxu0 0.0
        %2206 = vmatpush1.msra.mxu0 0.0
        %2207 = vmatprep.subr.mxu0 0.0
        %2208 = vmatpush1.msra.mxu0 0.0
        %2209 = vmatprep.subr.mxu0 0.0
        %2210 = vmatpush1.msra.mxu0 0.0
        %2211 = vmatprep.subr.mxu0 0.0
        %2212 = vmatpush1.msra.mxu0 0.0
        %2213 = vmatprep.subr.mxu0 0.0
        %2214 = vmatpush1.msra.mxu0 0.0
        %2215 = vmatprep.subr.mxu0 0.0
        %2216 = vmatpush1.msra.mxu0 0.0
        %2217 = vmatprep.subr.mxu0 0.0
        %2218 = vmatpush1.msra.mxu0 0.0
        %2219 = vmatprep.subr.mxu0 0.0
        %2220 = vmatpush1.msra.mxu0 0.0
        %2221 = vmatprep.subr.mxu0 0.0
        %2222 = vmatpush1.msra.mxu0 0.0
        %2223 = vmatprep.subr.mxu0 0.0
        %2224 = vmatpush1.msra.mxu0 0.0
        %2225 = vmatprep.subr.mxu0 0.0
        %2226 = vmatpush1.msra.mxu0 0.0
        %2227 = vmatprep.subr.mxu0 0.0
        %2228 = vmatpush1.msra.mxu0 0.0
        %2229 = vmatprep.subr.mxu0 0.0
        %2230 = vmatpush1.msra.mxu0 0.0
        %2231 = vmatprep.subr.mxu0 0.0
        %2232 = vmatpush1.msra.mxu0 0.0
        %2233 = vmatprep.subr.mxu0 0.0
        %2234 = vmatpush1.msra.mxu0 0.0
        %2235 = vmatprep.subr.mxu0 0.0
        %2236 = vmatpush1.msra.mxu0 0.0
        %2237 = vmatprep.subr.mxu0 0.0
        %2238 = vmatpush1.msra.mxu0 0.0
        %2239 = vmatprep.subr.mxu0 0.0
        %2240 = vmatpush1.msra.mxu0 0.0
        %2241 = vmatprep.mubr.f32.mxu0 0.0
        %2242 = vmatmul.mubr.f32.gmra.mrb[0].mxu0 %v692
        %v2243 = vpop.f32.mrb[0].mxu0
        %v2244 = vadd.f32 0.0, %v2243
        %v2245 = vpop.f32.mrb[0].mxu0
        %2246 = vmatprep.mubr.f32.mxu0 0.0
        %2247 = vmatmul.mubr.f32.gmra.mrb[0].mxu0 %v694
        %v2248 = vpop.f32.mrb[0].mxu0
        %v2249 = vadd.f32 0.0, %v2248
        %v2250 = vpop.f32.mrb[0].mxu0
        %2251 = vmatprep.mubr.f32.mxu0 0.0
        %2252 = vmatmul.mubr.f32.gmra.mrb[0].mxu0 %v696
        %v2253 = vpop.f32.mrb[0].mxu0
        %v2254 = vadd.f32 0.0, %v2253
        %v2255 = vpop.f32.mrb[0].mxu0
        %2256 = vmatprep.mubr.f32.mxu0 0.0
        %2257 = vmatmul.mubr.f32.gmra.mrb[0].mxu0 %v698
        %v2258 = vpop.f32.mrb[0].mxu0
        %v2259 = vadd.f32 0.0, %v2258
        %v2260 = vpop.f32.mrb[0].mxu0
        %2261 = vmatprep.mubr.f32.mxu0 0.0
        %2262 = vmatmul.mubr.f32.gmra.mrb[0].mxu0 %v700
        %v2263 = vpop.f32.mrb[0].mxu0
        %v2264 = vadd.f32 0.0, %v2263
        %v2265 = vpop.f32.mrb[0].mxu0
        %2266 = vmatprep.mubr.f32.mxu0 0.0
        %2267 = vmatmul.mubr.f32.gmra.mrb[0].mxu0 %v702
        %v2268 = vpop.f32.mrb[0].mxu0
        %v2269 = vadd.f32 0.0, %v2268
        %v2270 = vpop.f32.mrb[0].mxu0
        %2271 = vmatprep.mubr.f32.mxu0 0.0
        %2272 = vmatmul.mubr.f32.gmra.mrb[0].mxu0 %v704
        %v2273 = vpop.f32.mrb[0].mxu0
        %v2274 = vadd.f32 0.0, %v2273
        %v2275 = vpop.f32.mrb[0].mxu0
        %2276 = vmatprep.mubr.f32.mxu0 0.0
        %2277 = vmatmul.mubr.f32.gmra.mrb[0].mxu0 %v706
        %v2278 = vpop.f32.mrb[0].mxu0
        %v2279 = vadd.f32 0.0, %v2278
        %v2280 = vpop.f32.mrb[0].mxu0
        %2281 = vmatprep.mubr.f32.mxu0 0.0
        %2282 = vmatmul.mubr.f32.gmra.mrb[0].mxu0 %v708
        %v2283 = vpop.f32.mrb[0].mxu0
        %v2284 = vadd.f32 0.0, %v2283
        %v2285 = vpop.f32.mrb[0].mxu0
        %2286 = vmatprep.mubr.f32.mxu0 0.0
        %2287 = vmatmul.mubr.f32.gmra.mrb[0].mxu0 %v710
        %v2288 = vpop.f32.mrb[0].mxu0
        %v2289 = vadd.f32 0.0, %v2288
        %v2290 = vpop.f32.mrb[0].mxu0
        %2291 = vmatprep.mubr.f32.mxu0 0.0
        %2292 = vmatmul.mubr.f32.gmra.mrb[0].mxu0 %v712
        %v2293 = vpop.f32.mrb[0].mxu0
        %v2294 = vadd.f32 0.0, %v2293
        %v2295 = vpop.f32.mrb[0].mxu0
        %2296 = vmatprep.mubr.f32.mxu0 0.0
        %2297 = vmatmul.mubr.f32.gmra.mrb[0].mxu0 %v714
        %v2298 = vpop.f32.mrb[0].mxu0
        %v2299 = vadd.f32 0.0, %v2298
        %v2300 = vpop.f32.mrb[0].mxu0
        %2301 = vmatprep.mubr.f32.mxu0 0.0
        %2302 = vmatmul.mubr.f32.gmra.mrb[0].mxu0 %v716
        %v2303 = vpop.f32.mrb[0].mxu0
        %v2304 = vadd.f32 0.0, %v2303
        %v2305 = vpop.f32.mrb[0].mxu0
        %2306 = vmatprep.mubr.f32.mxu0 0.0
        %2307 = vmatmul.mubr.f32.gmra.mrb[0].mxu0 %v718
        %v2308 = vpop.f32.mrb[0].mxu0
        %v2309 = vadd.f32 0.0, %v2308
        %v2310 = vpop.f32.mrb[0].mxu0
        %2311 = vmatprep.mubr.f32.mxu0 0.0
        %2312 = vmatmul.mubr.f32.gmra.mrb[0].mxu0 %v720
        %v2313 = vpop.f32.mrb[0].mxu0
        %v2314 = vadd.f32 0.0, %v2313
        %v2315 = vpop.f32.mrb[0].mxu0
        %2316 = vmatprep.mubr.f32.mxu0 0.0
        %2317 = vmatmul.mubr.f32.gmra.mrb[0].mxu0 %v722
        %v2318 = vpop.f32.mrb[0].mxu0
        %v2319 = vadd.f32 0.0, %v2318
        %v2320 = vpop.f32.mrb[0].mxu0
        %2321 = vmatprep.mubr.f32.mxu0 0.0
        %2322 = vmatmul.mubr.f32.gmra.mrb[0].mxu0 %v724
        %v2323 = vpop.f32.mrb[0].mxu0
        %v2324 = vadd.f32 0.0, %v2323
        %v2325 = vpop.f32.mrb[0].mxu0
        %2326 = vmatprep.mubr.f32.mxu0 0.0
        %2327 = vmatmul.mubr.f32.gmra.mrb[0].mxu0 %v726
        %v2328 = vpop.f32.mrb[0].mxu0
        %v2329 = vadd.f32 0.0, %v2328
        %v2330 = vpop.f32.mrb[0].mxu0
        %2331 = vmatprep.mubr.f32.mxu0 0.0
        %2332 = vmatmul.mubr.f32.gmra.mrb[0].mxu0 %v728
        %v2333 = vpop.f32.mrb[0].mxu0
        %v2334 = vadd.f32 0.0, %v2333
        %v2335 = vpop.f32.mrb[0].mxu0
        %2336 = vmatprep.mubr.f32.mxu0 0.0
        %2337 = vmatmul.mubr.f32.gmra.mrb[0].mxu0 %v730
        %v2338 = vpop.f32.mrb[0].mxu0
        %v2339 = vadd.f32 0.0, %v2338
        %v2340 = vpop.f32.mrb[0].mxu0
        %2341 = vmatprep.mubr.f32.mxu0 0.0
        %2342 = vmatmul.mubr.f32.gmra.mrb[0].mxu0 %v732
        %v2343 = vpop.f32.mrb[0].mxu0
        %v2344 = vadd.f32 0.0, %v2343
        %v2345 = vpop.f32.mrb[0].mxu0
        %2346 = vmatprep.mubr.f32.mxu0 0.0
        %2347 = vmatmul.mubr.f32.gmra.mrb[0].mxu0 %v734
        %v2348 = vpop.f32.mrb[0].mxu0
        %v2349 = vadd.f32 0.0, %v2348
        %v2350 = vpop.f32.mrb[0].mxu0
        %2351 = vmatprep.mubr.f32.mxu0 0.0
        %2352 = vmatmul.mubr.f32.gmra.mrb[0].mxu0 %v736
        %v2353 = vpop.f32.mrb[0].mxu0
        %v2354 = vadd.f32 0.0, %v2353
        %v2355 = vpop.f32.mrb[0].mxu0
        %2356 = vmatprep.mubr.f32.mxu0 0.0
        %2357 = vmatmul.mubr.f32.gmra.mrb[0].mxu0 %v738
        %v2358 = vpop.f32.mrb[0].mxu0
        %v2359 = vadd.f32 0.0, %v2358
        %v2360 = vpop.f32.mrb[0].mxu0
        %2361 = vmatprep.mubr.f32.mxu0 0.0
        %2362 = vmatmul.mubr.f32.gmra.mrb[0].mxu0 %v740
        %v2363 = vpop.f32.mrb[0].mxu0
        %v2364 = vadd.f32 0.0, %v2363
        %v2365 = vpop.f32.mrb[0].mxu0
        %2366 = vmatprep.mubr.f32.mxu0 0.0
        %2367 = vmatmul.mubr.f32.gmra.mrb[0].mxu0 %v742
        %v2368 = vpop.f32.mrb[0].mxu0
        %v2369 = vadd.f32 0.0, %v2368
        %v2370 = vpop.f32.mrb[0].mxu0
        %2371 = vmatprep.mubr.f32.mxu0 0.0
        %2372 = vmatmul.mubr.f32.gmra.mrb[0].mxu0 %v744
        %v2373 = vpop.f32.mrb[0].mxu0
        %v2374 = vadd.f32 0.0, %v2373
        %v2375 = vpop.f32.mrb[0].mxu0
        %2376 = vmatprep.mubr.f32.mxu0 0.0
        %2377 = vmatmul.mubr.f32.gmra.mrb[0].mxu0 %v746
        %v2378 = vpop.f32.mrb[0].mxu0
        %v2379 = vadd.f32 0.0, %v2378
        %v2380 = vpop.f32.mrb[0].mxu0
        %2381 = vmatprep.mubr.f32.mxu0 0.0
        %2382 = vmatmul.mubr.f32.gmra.mrb[0].mxu0 %v1376
        %v2383 = vpop.f32.mrb[0].mxu0
        %v2384 = vadd.f32 0.0, %v2383
        %v2385 = vpop.f32.mrb[0].mxu0
        %2386 = vmatprep.mubr.f32.mxu0 0.0
        %2387 = vmatmul.mubr.f32.gmra.mrb[0].mxu0 %v1379
        %v2388 = vpop.f32.mrb[0].mxu0
        %v2389 = vadd.f32 0.0, %v2388
        %v2390 = vpop.f32.mrb[0].mxu0
        %2391 = vmatprep.mubr.f32.mxu0 0.0
        %2392 = vmatmul.mubr.f32.gmra.mrb[0].mxu0 %v2172
        %v2393 = vpop.f32.mrb[0].mxu0
        %v2394 = vadd.f32 0.0, %v2393
        %v2395 = vpop.f32.mrb[0].mxu0
        %2396 = vmatprep.mubr.f32.mxu0 0.0
        %2397 = vmatmul.mubr.f32.gmra.mrb[0].mxu0 %v2175
        %v2398 = vpop.f32.mrb[0].mxu0
        %v2399 = vadd.f32 0.0, %v2398
        %v2400 = vpop.f32.mrb[0].mxu0
        %2401 = vdwg.mxu0
        %v2402 = vadd.f32 %v2139, %v2244
        %v2403 = vadd.f32 %v2140, %v2249
        %v2404 = vadd.f32 %v2141, %v2254
        %v2405 = vadd.f32 %v2142, %v2259
        %v2406 = vadd.f32 %v2143, %v2264
        %v2407 = vadd.f32 %v2144, %v2269
        %v2408 = vadd.f32 %v2145, %v2274
        %v2409 = vadd.f32 %v2146, %v2279
        %v2410 = vadd.f32 %v2147, %v2284
        %v2411 = vadd.f32 %v2148, %v2289
        %v2412 = vadd.f32 %v2149, %v2294
        %v2413 = vadd.f32 %v2150, %v2299
        %v2414 = vadd.f32 %v2151, %v2304
        %v2415 = vadd.f32 %v2152, %v2309
        %v2416 = vadd.f32 %v2153, %v2314
        %v2417 = vadd.f32 %v2154, %v2319
        %v2418 = vadd.f32 %v2155, %v2324
        %v2419 = vadd.f32 %v2156, %v2329
        %v2420 = vadd.f32 %v2157, %v2334
        %v2421 = vadd.f32 %v2158, %v2339
        %v2422 = vadd.f32 %v2159, %v2344
        %v2423 = vadd.f32 %v2160, %v2349
        %v2424 = vadd.f32 %v2161, %v2354
        %v2425 = vadd.f32 %v2162, %v2359
        %v2426 = vadd.f32 %v2163, %v2364
        %v2427 = vadd.f32 %v2164, %v2369
        %v2428 = vadd.f32 %v2165, %v2374
        %v2429 = vadd.f32 %v2166, %v2379
        %v2430 = vadd.f32 %v2167, %v2384
        %v2431 = vadd.f32 %v2168, %v2389
        %v2432 = vadd.f32 %v2169, %v2394
        %v2433 = vadd.f32 %v2170, %v2399
        %v2435 = vrot.slane %v253, 1
        %v2436 = vrot.slane %v254, 1
        %v2437 = vsel %vm313, %v2435, %v2436
        %v2438 = vrot.slane %v255, 1
        %v2439 = vsel %vm313, %v2436, %v2438
        %v2440 = vsel %vm394, %v2437, 0
        %v2442 = vsel %vm394, %v2439, 0
        %2444 = vmatprep.subr.mxu0 0.0
        %2445 = vmatpush1.msra.mxu0 %v263
        %2446 = vmatprep.subr.mxu0 0.0
        %2447 = vmatpush1.msra.mxu0 0.0
        %2448 = vmatprep.subr.mxu0 0.0
        %2449 = vmatpush1.msra.mxu0 0.0
        %2450 = vmatprep.subr.mxu0 0.0
        %2451 = vmatpush1.msra.mxu0 0.0
        %2452 = vmatprep.subr.mxu0 0.0
        %2453 = vmatpush1.msra.mxu0 0.0
        %2454 = vmatprep.subr.mxu0 0.0
        %2455 = vmatpush1.msra.mxu0 0.0
        %2456 = vmatprep.subr.mxu0 0.0
        %2457 = vmatpush1.msra.mxu0 0.0
        %2458 = vmatprep.subr.mxu0 0.0
        %2459 = vmatpush1.msra.mxu0 0.0
        %2460 = vmatprep.subr.mxu0 0.0
        %2461 = vmatpush1.msra.mxu0 0.0
        %2462 = vmatprep.subr.mxu0 0.0
        %2463 = vmatpush1.msra.mxu0 0.0
        %2464 = vmatprep.subr.mxu0 0.0
        %2465 = vmatpush1.msra.mxu0 0.0
        %2466 = vmatprep.subr.mxu0 0.0
        %2467 = vmatpush1.msra.mxu0 0.0
        %2468 = vmatprep.subr.mxu0 0.0
        %2469 = vmatpush1.msra.mxu0 0.0
        %2470 = vmatprep.subr.mxu0 0.0
        %2471 = vmatpush1.msra.mxu0 0.0
        %2472 = vmatprep.subr.mxu0 0.0
        %2473 = vmatpush1.msra.mxu0 0.0
        %2474 = vmatprep.subr.mxu0 0.0
        %2475 = vmatpush1.msra.mxu0 0.0
        %2476 = vmatprep.subr.mxu0 0.0
        %2477 = vmatpush1.msra.mxu0 0.0
        %2478 = vmatprep.subr.mxu0 0.0
        %2479 = vmatpush1.msra.mxu0 0.0
        %2480 = vmatprep.subr.mxu0 0.0
        %2481 = vmatpush1.msra.mxu0 0.0
        %2482 = vmatprep.subr.mxu0 0.0
        %2483 = vmatpush1.msra.mxu0 0.0
        %2484 = vmatprep.subr.mxu0 0.0
        %2485 = vmatpush1.msra.mxu0 0.0
        %2486 = vmatprep.subr.mxu0 0.0
        %2487 = vmatpush1.msra.mxu0 0.0
        %2488 = vmatprep.subr.mxu0 0.0
        %2489 = vmatpush1.msra.mxu0 0.0
        %2490 = vmatprep.subr.mxu0 0.0
        %2491 = vmatpush1.msra.mxu0 0.0
        %2492 = vmatprep.subr.mxu0 0.0
        %2493 = vmatpush1.msra.mxu0 0.0
        %2494 = vmatprep.subr.mxu0 0.0
        %2495 = vmatpush1.msra.mxu0 0.0
        %2496 = vmatprep.subr.mxu0 0.0
        %2497 = vmatpush1.msra.mxu0 0.0
        %2498 = vmatprep.subr.mxu0 0.0
        %2499 = vmatpush1.msra.mxu0 0.0
        %2500 = vmatprep.subr.mxu0 0.0
        %2501 = vmatpush1.msra.mxu0 0.0
        %2502 = vmatprep.subr.mxu0 0.0
        %2503 = vmatpush1.msra.mxu0 0.0
        %2504 = vmatprep.subr.mxu0 0.0
        %2505 = vmatpush1.msra.mxu0 0.0
        %2506 = vmatprep.subr.mxu0 0.0
        %2507 = vmatpush1.msra.mxu0 0.0
        %2508 = vmatprep.mubr.f32.mxu0 0.0
        %2509 = vmatmul.mubr.f32.gmra.mrb[0].mxu0 %v403
        %v2510 = vpop.f32.mrb[0].mxu0
        %v2511 = vadd.f32 0.0, %v2510
        %v2512 = vpop.f32.mrb[0].mxu0
        %2513 = vmatprep.mubr.f32.mxu0 0.0
        %2514 = vmatmul.mubr.f32.gmra.mrb[0].mxu0 %v405
        %v2515 = vpop.f32.mrb[0].mxu0
        %v2516 = vadd.f32 0.0, %v2515
        %v2517 = vpop.f32.mrb[0].mxu0
        %2518 = vmatprep.mubr.f32.mxu0 0.0
        %2519 = vmatmul.mubr.f32.gmra.mrb[0].mxu0 %v407
        %v2520 = vpop.f32.mrb[0].mxu0
        %v2521 = vadd.f32 0.0, %v2520
        %v2522 = vpop.f32.mrb[0].mxu0
        %2523 = vmatprep.mubr.f32.mxu0 0.0
        %2524 = vmatmul.mubr.f32.gmra.mrb[0].mxu0 %v409
        %v2525 = vpop.f32.mrb[0].mxu0
        %v2526 = vadd.f32 0.0, %v2525
        %v2527 = vpop.f32.mrb[0].mxu0
        %2528 = vmatprep.mubr.f32.mxu0 0.0
        %2529 = vmatmul.mubr.f32.gmra.mrb[0].mxu0 %v411
        %v2530 = vpop.f32.mrb[0].mxu0
        %v2531 = vadd.f32 0.0, %v2530
        %v2532 = vpop.f32.mrb[0].mxu0
        %2533 = vmatprep.mubr.f32.mxu0 0.0
        %2534 = vmatmul.mubr.f32.gmra.mrb[0].mxu0 %v413
        %v2535 = vpop.f32.mrb[0].mxu0
        %v2536 = vadd.f32 0.0, %v2535
        %v2537 = vpop.f32.mrb[0].mxu0
        %2538 = vmatprep.mubr.f32.mxu0 0.0
        %2539 = vmatmul.mubr.f32.gmra.mrb[0].mxu0 %v415
        %v2540 = vpop.f32.mrb[0].mxu0
        %v2541 = vadd.f32 0.0, %v2540
        %v2542 = vpop.f32.mrb[0].mxu0
        %2543 = vmatprep.mubr.f32.mxu0 0.0
        %2544 = vmatmul.mubr.f32.gmra.mrb[0].mxu0 %v417
        %v2545 = vpop.f32.mrb[0].mxu0
        %v2546 = vadd.f32 0.0, %v2545
        %v2547 = vpop.f32.mrb[0].mxu0
        %2548 = vmatprep.mubr.f32.mxu0 0.0
        %2549 = vmatmul.mubr.f32.gmra.mrb[0].mxu0 %v419
        %v2550 = vpop.f32.mrb[0].mxu0
        %v2551 = vadd.f32 0.0, %v2550
        %v2552 = vpop.f32.mrb[0].mxu0
        %2553 = vmatprep.mubr.f32.mxu0 0.0
        %2554 = vmatmul.mubr.f32.gmra.mrb[0].mxu0 %v421
        %v2555 = vpop.f32.mrb[0].mxu0
        %v2556 = vadd.f32 0.0, %v2555
        %v2557 = vpop.f32.mrb[0].mxu0
        %2558 = vmatprep.mubr.f32.mxu0 0.0
        %2559 = vmatmul.mubr.f32.gmra.mrb[0].mxu0 %v423
        %v2560 = vpop.f32.mrb[0].mxu0
        %v2561 = vadd.f32 0.0, %v2560
        %v2562 = vpop.f32.mrb[0].mxu0
        %2563 = vmatprep.mubr.f32.mxu0 0.0
        %2564 = vmatmul.mubr.f32.gmra.mrb[0].mxu0 %v425
        %v2565 = vpop.f32.mrb[0].mxu0
        %v2566 = vadd.f32 0.0, %v2565
        %v2567 = vpop.f32.mrb[0].mxu0
        %2568 = vmatprep.mubr.f32.mxu0 0.0
        %2569 = vmatmul.mubr.f32.gmra.mrb[0].mxu0 %v427
        %v2570 = vpop.f32.mrb[0].mxu0
        %v2571 = vadd.f32 0.0, %v2570
        %v2572 = vpop.f32.mrb[0].mxu0
        %2573 = vmatprep.mubr.f32.mxu0 0.0
        %2574 = vmatmul.mubr.f32.gmra.mrb[0].mxu0 %v429
        %v2575 = vpop.f32.mrb[0].mxu0
        %v2576 = vadd.f32 0.0, %v2575
        %v2577 = vpop.f32.mrb[0].mxu0
        %2578 = vmatprep.mubr.f32.mxu0 0.0
        %2579 = vmatmul.mubr.f32.gmra.mrb[0].mxu0 %v431
        %v2580 = vpop.f32.mrb[0].mxu0
        %v2581 = vadd.f32 0.0, %v2580
        %v2582 = vpop.f32.mrb[0].mxu0
        %2583 = vmatprep.mubr.f32.mxu0 0.0
        %2584 = vmatmul.mubr.f32.gmra.mrb[0].mxu0 %v433
        %v2585 = vpop.f32.mrb[0].mxu0
        %v2586 = vadd.f32 0.0, %v2585
        %v2587 = vpop.f32.mrb[0].mxu0
        %2588 = vmatprep.mubr.f32.mxu0 0.0
        %2589 = vmatmul.mubr.f32.gmra.mrb[0].mxu0 %v435
        %v2590 = vpop.f32.mrb[0].mxu0
        %v2591 = vadd.f32 0.0, %v2590
        %v2592 = vpop.f32.mrb[0].mxu0
        %2593 = vmatprep.mubr.f32.mxu0 0.0
        %2594 = vmatmul.mubr.f32.gmra.mrb[0].mxu0 %v437
        %v2595 = vpop.f32.mrb[0].mxu0
        %v2596 = vadd.f32 0.0, %v2595
        %v2597 = vpop.f32.mrb[0].mxu0
        %2598 = vmatprep.mubr.f32.mxu0 0.0
        %2599 = vmatmul.mubr.f32.gmra.mrb[0].mxu0 %v439
        %v2600 = vpop.f32.mrb[0].mxu0
        %v2601 = vadd.f32 0.0, %v2600
        %v2602 = vpop.f32.mrb[0].mxu0
        %2603 = vmatprep.mubr.f32.mxu0 0.0
        %2604 = vmatmul.mubr.f32.gmra.mrb[0].mxu0 %v441
        %v2605 = vpop.f32.mrb[0].mxu0
        %v2606 = vadd.f32 0.0, %v2605
        %v2607 = vpop.f32.mrb[0].mxu0
        %2608 = vmatprep.mubr.f32.mxu0 0.0
        %2609 = vmatmul.mubr.f32.gmra.mrb[0].mxu0 %v443
        %v2610 = vpop.f32.mrb[0].mxu0
        %v2611 = vadd.f32 0.0, %v2610
        %v2612 = vpop.f32.mrb[0].mxu0
        %2613 = vmatprep.mubr.f32.mxu0 0.0
        %2614 = vmatmul.mubr.f32.gmra.mrb[0].mxu0 %v445
        %v2615 = vpop.f32.mrb[0].mxu0
        %v2616 = vadd.f32 0.0, %v2615
        %v2617 = vpop.f32.mrb[0].mxu0
        %2618 = vmatprep.mubr.f32.mxu0 0.0
        %2619 = vmatmul.mubr.f32.gmra.mrb[0].mxu0 %v447
        %v2620 = vpop.f32.mrb[0].mxu0
        %v2621 = vadd.f32 0.0, %v2620
        %v2622 = vpop.f32.mrb[0].mxu0
        %2623 = vmatprep.mubr.f32.mxu0 0.0
        %2624 = vmatmul.mubr.f32.gmra.mrb[0].mxu0 %v449
        %v2625 = vpop.f32.mrb[0].mxu0
        %v2626 = vadd.f32 0.0, %v2625
        %v2627 = vpop.f32.mrb[0].mxu0
        %2628 = vmatprep.mubr.f32.mxu0 0.0
        %2629 = vmatmul.mubr.f32.gmra.mrb[0].mxu0 %v451
        %v2630 = vpop.f32.mrb[0].mxu0
        %v2631 = vadd.f32 0.0, %v2630
        %v2632 = vpop.f32.mrb[0].mxu0
        %2633 = vmatprep.mubr.f32.mxu0 0.0
        %2634 = vmatmul.mubr.f32.gmra.mrb[0].mxu0 %v453
        %v2635 = vpop.f32.mrb[0].mxu0
        %v2636 = vadd.f32 0.0, %v2635
        %v2637 = vpop.f32.mrb[0].mxu0
        %2638 = vmatprep.mubr.f32.mxu0 0.0
        %2639 = vmatmul.mubr.f32.gmra.mrb[0].mxu0 %v455
        %v2640 = vpop.f32.mrb[0].mxu0
        %v2641 = vadd.f32 0.0, %v2640
        %v2642 = vpop.f32.mrb[0].mxu0
        %2643 = vmatprep.mubr.f32.mxu0 0.0
        %2644 = vmatmul.mubr.f32.gmra.mrb[0].mxu0 %v457
        %v2645 = vpop.f32.mrb[0].mxu0
        %v2646 = vadd.f32 0.0, %v2645
        %v2647 = vpop.f32.mrb[0].mxu0
        %2648 = vmatprep.mubr.f32.mxu0 0.0
        %2649 = vmatmul.mubr.f32.gmra.mrb[0].mxu0 %v1644
        %v2650 = vpop.f32.mrb[0].mxu0
        %v2651 = vadd.f32 0.0, %v2650
        %v2652 = vpop.f32.mrb[0].mxu0
        %2653 = vmatprep.mubr.f32.mxu0 0.0
        %2654 = vmatmul.mubr.f32.gmra.mrb[0].mxu0 %v1646
        %v2655 = vpop.f32.mrb[0].mxu0
        %v2656 = vadd.f32 0.0, %v2655
        %v2657 = vpop.f32.mrb[0].mxu0
        %2658 = vmatprep.mubr.f32.mxu0 0.0
        %2659 = vmatmul.mubr.f32.gmra.mrb[0].mxu0 %v2440
        %v2660 = vpop.f32.mrb[0].mxu0
        %v2661 = vadd.f32 0.0, %v2660
        %v2662 = vpop.f32.mrb[0].mxu0
        %2663 = vmatprep.mubr.f32.mxu0 0.0
        %2664 = vmatmul.mubr.f32.gmra.mrb[0].mxu0 %v2442
        %v2665 = vpop.f32.mrb[0].mxu0
        %v2666 = vadd.f32 0.0, %v2665
        %v2667 = vpop.f32.mrb[0].mxu0
        %2668 = vdwg.mxu0
        %v2669 = vadd.f32 %v2402, %v2511
        %v2670 = vadd.f32 %v2403, %v2516
        %v2671 = vadd.f32 %v2404, %v2521
        %v2672 = vadd.f32 %v2405, %v2526
        %v2673 = vadd.f32 %v2406, %v2531
        %v2674 = vadd.f32 %v2407, %v2536
        %v2675 = vadd.f32 %v2408, %v2541
        %v2676 = vadd.f32 %v2409, %v2546
        %v2677 = vadd.f32 %v2410, %v2551
        %v2678 = vadd.f32 %v2411, %v2556
        %v2679 = vadd.f32 %v2412, %v2561
        %v2680 = vadd.f32 %v2413, %v2566
        %v2681 = vadd.f32 %v2414, %v2571
        %v2682 = vadd.f32 %v2415, %v2576
        %v2683 = vadd.f32 %v2416, %v2581
        %v2684 = vadd.f32 %v2417, %v2586
        %v2685 = vadd.f32 %v2418, %v2591
        %v2686 = vadd.f32 %v2419, %v2596
        %v2687 = vadd.f32 %v2420, %v2601
        %v2688 = vadd.f32 %v2421, %v2606
        %v2689 = vadd.f32 %v2422, %v2611
        %v2690 = vadd.f32 %v2423, %v2616
        %v2691 = vadd.f32 %v2424, %v2621
        %v2692 = vadd.f32 %v2425, %v2626
        %v2693 = vadd.f32 %v2426, %v2631
        %v2694 = vadd.f32 %v2427, %v2636
        %v2695 = vadd.f32 %v2428, %v2641
        %v2696 = vadd.f32 %v2429, %v2646
        %v2697 = vadd.f32 %v2430, %v2651
        %v2698 = vadd.f32 %v2431, %v2656
        %v2699 = vadd.f32 %v2432, %v2661
        %v2700 = vadd.f32 %v2433, %v2666
        %v2701 = vrot.slane %v253, 2
        %v2702 = vrot.slane %v254, 2
        %v2703 = vsel %vm973, %v2701, %v2702
        %v2704 = vrot.slane %v255, 2
        %v2705 = vsel %vm973, %v2702, %v2704
        %v2706 = vsel %vm394, %v2703, 0
        %v2708 = vsel %vm394, %v2705, 0
        %2710 = vmatprep.subr.mxu0 0.0
        %2711 = vmatpush1.msra.mxu0 %v264
        %2712 = vmatprep.subr.mxu0 0.0
        %2713 = vmatpush1.msra.mxu0 0.0
        %2714 = vmatprep.subr.mxu0 0.0
        %2715 = vmatpush1.msra.mxu0 0.0
        %2716 = vmatprep.subr.mxu0 0.0
        %2717 = vmatpush1.msra.mxu0 0.0
        %2718 = vmatprep.subr.mxu0 0.0
        %2719 = vmatpush1.msra.mxu0 0.0
        %2720 = vmatprep.subr.mxu0 0.0
        %2721 = vmatpush1.msra.mxu0 0.0
        %2722 = vmatprep.subr.mxu0 0.0
        %2723 = vmatpush1.msra.mxu0 0.0
        %2724 = vmatprep.subr.mxu0 0.0
        %2725 = vmatpush1.msra.mxu0 0.0
        %2726 = vmatprep.subr.mxu0 0.0
        %2727 = vmatpush1.msra.mxu0 0.0
        %2728 = vmatprep.subr.mxu0 0.0
        %2729 = vmatpush1.msra.mxu0 0.0
        %2730 = vmatprep.subr.mxu0 0.0
        %2731 = vmatpush1.msra.mxu0 0.0
        %2732 = vmatprep.subr.mxu0 0.0
        %2733 = vmatpush1.msra.mxu0 0.0
        %2734 = vmatprep.subr.mxu0 0.0
        %2735 = vmatpush1.msra.mxu0 0.0
        %2736 = vmatprep.subr.mxu0 0.0
        %2737 = vmatpush1.msra.mxu0 0.0
        %2738 = vmatprep.subr.mxu0 0.0
        %2739 = vmatpush1.msra.mxu0 0.0
        %2740 = vmatprep.subr.mxu0 0.0
        %2741 = vmatpush1.msra.mxu0 0.0
        %2742 = vmatprep.subr.mxu0 0.0
        %2743 = vmatpush1.msra.mxu0 0.0
        %2744 = vmatprep.subr.mxu0 0.0
        %2745 = vmatpush1.msra.mxu0 0.0
        %2746 = vmatprep.subr.mxu0 0.0
        %2747 = vmatpush1.msra.mxu0 0.0
        %2748 = vmatprep.subr.mxu0 0.0
        %2749 = vmatpush1.msra.mxu0 0.0
        %2750 = vmatprep.subr.mxu0 0.0
        %2751 = vmatpush1.msra.mxu0 0.0
        %2752 = vmatprep.subr.mxu0 0.0
        %2753 = vmatpush1.msra.mxu0 0.0
        %2754 = vmatprep.subr.mxu0 0.0
        %2755 = vmatpush1.msra.mxu0 0.0
        %2756 = vmatprep.subr.mxu0 0.0
        %2757 = vmatpush1.msra.mxu0 0.0
        %2758 = vmatprep.subr.mxu0 0.0
        %2759 = vmatpush1.msra.mxu0 0.0
        %2760 = vmatprep.subr.mxu0 0.0
        %2761 = vmatpush1.msra.mxu0 0.0
        %2762 = vmatprep.subr.mxu0 0.0
        %2763 = vmatpush1.msra.mxu0 0.0
        %2764 = vmatprep.subr.mxu0 0.0
        %2765 = vmatpush1.msra.mxu0 0.0
        %2766 = vmatprep.subr.mxu0 0.0
        %2767 = vmatpush1.msra.mxu0 0.0
        %2768 = vmatprep.subr.mxu0 0.0
        %2769 = vmatpush1.msra.mxu0 0.0
        %2770 = vmatprep.subr.mxu0 0.0
        %2771 = vmatpush1.msra.mxu0 0.0
        %2772 = vmatprep.subr.mxu0 0.0
        %2773 = vmatpush1.msra.mxu0 0.0
        %2774 = vmatprep.mubr.f32.mxu0 0.0
        %2775 = vmatmul.mubr.f32.gmra.mrb[0].mxu0 %v1062
        %v2776 = vpop.f32.mrb[0].mxu0
        %v2777 = vadd.f32 0.0, %v2776
        %v2778 = vpop.f32.mrb[0].mxu0
        %2779 = vmatprep.mubr.f32.mxu0 0.0
        %2780 = vmatmul.mubr.f32.gmra.mrb[0].mxu0 %v1064
        %v2781 = vpop.f32.mrb[0].mxu0
        %v2782 = vadd.f32 0.0, %v2781
        %v2783 = vpop.f32.mrb[0].mxu0
        %2784 = vmatprep.mubr.f32.mxu0 0.0
        %2785 = vmatmul.mubr.f32.gmra.mrb[0].mxu0 %v1066
        %v2786 = vpop.f32.mrb[0].mxu0
        %v2787 = vadd.f32 0.0, %v2786
        %v2788 = vpop.f32.mrb[0].mxu0
        %2789 = vmatprep.mubr.f32.mxu0 0.0
        %2790 = vmatmul.mubr.f32.gmra.mrb[0].mxu0 %v1068
        %v2791 = vpop.f32.mrb[0].mxu0
        %v2792 = vadd.f32 0.0, %v2791
        %v2793 = vpop.f32.mrb[0].mxu0
        %2794 = vmatprep.mubr.f32.mxu0 0.0
        %2795 = vmatmul.mubr.f32.gmra.mrb[0].mxu0 %v1070
        %v2796 = vpop.f32.mrb[0].mxu0
        %v2797 = vadd.f32 0.0, %v2796
        %v2798 = vpop.f32.mrb[0].mxu0
        %2799 = vmatprep.mubr.f32.mxu0 0.0
        %2800 = vmatmul.mubr.f32.gmra.mrb[0].mxu0 %v1072
        %v2801 = vpop.f32.mrb[0].mxu0
        %v2802 = vadd.f32 0.0, %v2801
        %v2803 = vpop.f32.mrb[0].mxu0
        %2804 = vmatprep.mubr.f32.mxu0 0.0
        %2805 = vmatmul.mubr.f32.gmra.mrb[0].mxu0 %v1074
        %v2806 = vpop.f32.mrb[0].mxu0
        %v2807 = vadd.f32 0.0, %v2806
        %v2808 = vpop.f32.mrb[0].mxu0
        %2809 = vmatprep.mubr.f32.mxu0 0.0
        %2810 = vmatmul.mubr.f32.gmra.mrb[0].mxu0 %v1076
        %v2811 = vpop.f32.mrb[0].mxu0
        %v2812 = vadd.f32 0.0, %v2811
        %v2813 = vpop.f32.mrb[0].mxu0
        %2814 = vmatprep.mubr.f32.mxu0 0.0
        %2815 = vmatmul.mubr.f32.gmra.mrb[0].mxu0 %v1078
        %v2816 = vpop.f32.mrb[0].mxu0
        %v2817 = vadd.f32 0.0, %v2816
        %v2818 = vpop.f32.mrb[0].mxu0
        %2819 = vmatprep.mubr.f32.mxu0 0.0
        %2820 = vmatmul.mubr.f32.gmra.mrb[0].mxu0 %v1080
        %v2821 = vpop.f32.mrb[0].mxu0
        %v2822 = vadd.f32 0.0, %v2821
        %v2823 = vpop.f32.mrb[0].mxu0
        %2824 = vmatprep.mubr.f32.mxu0 0.0
        %2825 = vmatmul.mubr.f32.gmra.mrb[0].mxu0 %v1082
        %v2826 = vpop.f32.mrb[0].mxu0
        %v2827 = vadd.f32 0.0, %v2826
        %v2828 = vpop.f32.mrb[0].mxu0
        %2829 = vmatprep.mubr.f32.mxu0 0.0
        %2830 = vmatmul.mubr.f32.gmra.mrb[0].mxu0 %v1084
        %v2831 = vpop.f32.mrb[0].mxu0
        %v2832 = vadd.f32 0.0, %v2831
        %v2833 = vpop.f32.mrb[0].mxu0
        %2834 = vmatprep.mubr.f32.mxu0 0.0
        %2835 = vmatmul.mubr.f32.gmra.mrb[0].mxu0 %v1086
        %v2836 = vpop.f32.mrb[0].mxu0
        %v2837 = vadd.f32 0.0, %v2836
        %v2838 = vpop.f32.mrb[0].mxu0
        %2839 = vmatprep.mubr.f32.mxu0 0.0
        %2840 = vmatmul.mubr.f32.gmra.mrb[0].mxu0 %v1088
        %v2841 = vpop.f32.mrb[0].mxu0
        %v2842 = vadd.f32 0.0, %v2841
        %v2843 = vpop.f32.mrb[0].mxu0
        %2844 = vmatprep.mubr.f32.mxu0 0.0
        %2845 = vmatmul.mubr.f32.gmra.mrb[0].mxu0 %v1090
        %v2846 = vpop.f32.mrb[0].mxu0
        %v2847 = vadd.f32 0.0, %v2846
        %v2848 = vpop.f32.mrb[0].mxu0
        %2849 = vmatprep.mubr.f32.mxu0 0.0
        %2850 = vmatmul.mubr.f32.gmra.mrb[0].mxu0 %v1092
        %v2851 = vpop.f32.mrb[0].mxu0
        %v2852 = vadd.f32 0.0, %v2851
        %v2853 = vpop.f32.mrb[0].mxu0
        %2854 = vmatprep.mubr.f32.mxu0 0.0
        %2855 = vmatmul.mubr.f32.gmra.mrb[0].mxu0 %v1094
        %v2856 = vpop.f32.mrb[0].mxu0
        %v2857 = vadd.f32 0.0, %v2856
        %v2858 = vpop.f32.mrb[0].mxu0
        %2859 = vmatprep.mubr.f32.mxu0 0.0
        %2860 = vmatmul.mubr.f32.gmra.mrb[0].mxu0 %v1096
        %v2861 = vpop.f32.mrb[0].mxu0
        %v2862 = vadd.f32 0.0, %v2861
        %v2863 = vpop.f32.mrb[0].mxu0
        %2864 = vmatprep.mubr.f32.mxu0 0.0
        %2865 = vmatmul.mubr.f32.gmra.mrb[0].mxu0 %v1098
        %v2866 = vpop.f32.mrb[0].mxu0
        %v2867 = vadd.f32 0.0, %v2866
        %v2868 = vpop.f32.mrb[0].mxu0
        %2869 = vmatprep.mubr.f32.mxu0 0.0
        %2870 = vmatmul.mubr.f32.gmra.mrb[0].mxu0 %v1100
        %v2871 = vpop.f32.mrb[0].mxu0
        %v2872 = vadd.f32 0.0, %v2871
        %v2873 = vpop.f32.mrb[0].mxu0
        %2874 = vmatprep.mubr.f32.mxu0 0.0
        %2875 = vmatmul.mubr.f32.gmra.mrb[0].mxu0 %v1102
        %v2876 = vpop.f32.mrb[0].mxu0
        %v2877 = vadd.f32 0.0, %v2876
        %v2878 = vpop.f32.mrb[0].mxu0
        %2879 = vmatprep.mubr.f32.mxu0 0.0
        %2880 = vmatmul.mubr.f32.gmra.mrb[0].mxu0 %v1104
        %v2881 = vpop.f32.mrb[0].mxu0
        %v2882 = vadd.f32 0.0, %v2881
        %v2883 = vpop.f32.mrb[0].mxu0
        %2884 = vmatprep.mubr.f32.mxu0 0.0
        %2885 = vmatmul.mubr.f32.gmra.mrb[0].mxu0 %v1106
        %v2886 = vpop.f32.mrb[0].mxu0
        %v2887 = vadd.f32 0.0, %v2886
        %v2888 = vpop.f32.mrb[0].mxu0
        %2889 = vmatprep.mubr.f32.mxu0 0.0
        %2890 = vmatmul.mubr.f32.gmra.mrb[0].mxu0 %v1108
        %v2891 = vpop.f32.mrb[0].mxu0
        %v2892 = vadd.f32 0.0, %v2891
        %v2893 = vpop.f32.mrb[0].mxu0
        %2894 = vmatprep.mubr.f32.mxu0 0.0
        %2895 = vmatmul.mubr.f32.gmra.mrb[0].mxu0 %v1110
        %v2896 = vpop.f32.mrb[0].mxu0
        %v2897 = vadd.f32 0.0, %v2896
        %v2898 = vpop.f32.mrb[0].mxu0
        %2899 = vmatprep.mubr.f32.mxu0 0.0
        %2900 = vmatmul.mubr.f32.gmra.mrb[0].mxu0 %v1112
        %v2901 = vpop.f32.mrb[0].mxu0
        %v2902 = vadd.f32 0.0, %v2901
        %v2903 = vpop.f32.mrb[0].mxu0
        %2904 = vmatprep.mubr.f32.mxu0 0.0
        %2905 = vmatmul.mubr.f32.gmra.mrb[0].mxu0 %v1114
        %v2906 = vpop.f32.mrb[0].mxu0
        %v2907 = vadd.f32 0.0, %v2906
        %v2908 = vpop.f32.mrb[0].mxu0
        %2909 = vmatprep.mubr.f32.mxu0 0.0
        %2910 = vmatmul.mubr.f32.gmra.mrb[0].mxu0 %v1116
        %v2911 = vpop.f32.mrb[0].mxu0
        %v2912 = vadd.f32 0.0, %v2911
        %v2913 = vpop.f32.mrb[0].mxu0
        %2914 = vmatprep.mubr.f32.mxu0 0.0
        %2915 = vmatmul.mubr.f32.gmra.mrb[0].mxu0 %v1910
        %v2916 = vpop.f32.mrb[0].mxu0
        %v2917 = vadd.f32 0.0, %v2916
        %v2918 = vpop.f32.mrb[0].mxu0
        %2919 = vmatprep.mubr.f32.mxu0 0.0
        %2920 = vmatmul.mubr.f32.gmra.mrb[0].mxu0 %v1912
        %v2921 = vpop.f32.mrb[0].mxu0
        %v2922 = vadd.f32 0.0, %v2921
        %v2923 = vpop.f32.mrb[0].mxu0
        %2924 = vmatprep.mubr.f32.mxu0 0.0
        %2925 = vmatmul.mubr.f32.gmra.mrb[0].mxu0 %v2706
        %v2926 = vpop.f32.mrb[0].mxu0
        %v2927 = vadd.f32 0.0, %v2926
        %v2928 = vpop.f32.mrb[0].mxu0
        %2929 = vmatprep.mubr.f32.mxu0 0.0
        %2930 = vmatmul.mubr.f32.gmra.mrb[0].mxu0 %v2708
        %v2931 = vpop.f32.mrb[0].mxu0
        %v2932 = vadd.f32 0.0, %v2931
        %v2933 = vpop.f32.mrb[0].mxu0
        %2934 = vdwg.mxu0
        %v2935 = vadd.f32 %v2669, %v2777
        %v2936 = vadd.f32 %v2670, %v2782
        %v2937 = vadd.f32 %v2671, %v2787
        %v2938 = vadd.f32 %v2672, %v2792
        %v2939 = vadd.f32 %v2673, %v2797
        %v2940 = vadd.f32 %v2674, %v2802
        %v2941 = vadd.f32 %v2675, %v2807
        %v2942 = vadd.f32 %v2676, %v2812
        %v2943 = vadd.f32 %v2677, %v2817
        %v2944 = vadd.f32 %v2678, %v2822
        %v2945 = vadd.f32 %v2679, %v2827
        %v2946 = vadd.f32 %v2680, %v2832
        %v2947 = vadd.f32 %v2681, %v2837
        %v2948 = vadd.f32 %v2682, %v2842
        %v2949 = vadd.f32 %v2683, %v2847
        %v2950 = vadd.f32 %v2684, %v2852
        %v2951 = vadd.f32 %v2685, %v2857
        %v2952 = vadd.f32 %v2686, %v2862
        %v2953 = vadd.f32 %v2687, %v2867
        %v2954 = vadd.f32 %v2688, %v2872
        %v2955 = vadd.f32 %v2689, %v2877
        %v2956 = vadd.f32 %v2690, %v2882
        %v2957 = vadd.f32 %v2691, %v2887
        %v2958 = vadd.f32 %v2692, %v2892
        %v2959 = vadd.f32 %v2693, %v2897
        %v2960 = vadd.f32 %v2694, %v2902
        %v2961 = vadd.f32 %v2695, %v2907
        %v2962 = vadd.f32 %v2696, %v2912
        %v2963 = vadd.f32 %v2697, %v2917
        %v2964 = vadd.f32 %v2698, %v2922
        %v2965 = vadd.f32 %v2699, %v2927
        %v2966 = vadd.f32 %v2700, %v2932
        %2967 = vst.msk [vmem:[%s194] sm:$0xff] %vm394, %v2935
        %2968 = vst.msk [vmem:[%s194 + $0x8] sm:$0xff] %vm394, %v2936
        %2969 = vst.msk [vmem:[%s194 + $0x10] sm:$0xff] %vm394, %v2937
        %2970 = vst.msk [vmem:[%s194 + $0x18] sm:$0xff] %vm394, %v2938
        %2971 = vst.msk [vmem:[%s194 + $0x20] sm:$0xff] %vm394, %v2939
        %2972 = vst.msk [vmem:[%s194 + $0x28] sm:$0xff] %vm394, %v2940
        %2973 = vst.msk [vmem:[%s194 + $0x30] sm:$0xff] %vm394, %v2941
        %2974 = vst.msk [vmem:[%s194 + $0x38] sm:$0xff] %vm394, %v2942
        %2975 = vst.msk [vmem:[%s194 + $0x40] sm:$0xff] %vm394, %v2943
        %2976 = vst.msk [vmem:[%s194 + $0x48] sm:$0xff] %vm394, %v2944
        %2977 = vst.msk [vmem:[%s194 + $0x50] sm:$0xff] %vm394, %v2945
        %2978 = vst.msk [vmem:[%s194 + $0x58] sm:$0xff] %vm394, %v2946
        %2979 = vst.msk [vmem:[%s194 + $0x60] sm:$0xff] %vm394, %v2947
        %2980 = vst.msk [vmem:[%s194 + $0x68] sm:$0xff] %vm394, %v2948
        %2981 = vst.msk [vmem:[%s194 + $0x70] sm:$0xff] %vm394, %v2949
        %2982 = vst.msk [vmem:[%s194 + $0x78] sm:$0xff] %vm394, %v2950
        %2983 = vst.msk [vmem:[%s194 + $0x80] sm:$0xff] %vm394, %v2951
        %2984 = vst.msk [vmem:[%s194 + $0x88] sm:$0xff] %vm394, %v2952
        %2985 = vst.msk [vmem:[%s194 + $0x90] sm:$0xff] %vm394, %v2953
        %2986 = vst.msk [vmem:[%s194 + $0x98] sm:$0xff] %vm394, %v2954
        %2987 = vst.msk [vmem:[%s194 + $0xa0] sm:$0xff] %vm394, %v2955
        %2988 = vst.msk [vmem:[%s194 + $0xa8] sm:$0xff] %vm394, %v2956
        %2989 = vst.msk [vmem:[%s194 + $0xb0] sm:$0xff] %vm394, %v2957
        %2990 = vst.msk [vmem:[%s194 + $0xb8] sm:$0xff] %vm394, %v2958
        %2991 = vst.msk [vmem:[%s194 + $0xc0] sm:$0xff] %vm394, %v2959
        %2992 = vst.msk [vmem:[%s194 + $0xc8] sm:$0xff] %vm394, %v2960
        %2993 = vst.msk [vmem:[%s194 + $0xd0] sm:$0xff] %vm394, %v2961
        %2994 = vst.msk [vmem:[%s194 + $0xd8] sm:$0xff] %vm394, %v2962
        %2995 = vst.msk [vmem:[%s194 + $0xe0] sm:$0xff] %vm394, %v2963
        %2996 = vst.msk [vmem:[%s194 + $0xe8] sm:$0xff] %vm394, %v2964
        %2997 = vst.msk [vmem:[%s194 + $0xf0] sm:$0xff] %vm394, %v2965
        %2998 = vst.msk [vmem:[%s194 + $0xf8] sm:$0xff] %vm394, %v2966
        %v2999 = vld [vmem:[#allocation2] sm:$0x1]
        %v3000 = vsel %vm394, %v2935, 0.0
        %v3001 = vsel %vm394, %v2936, 0.0
        %v3002 = vadd.f32 %v3000, %v3001
        %v3003 = vsel %vm394, %v2937, 0.0
        %v3004 = vadd.f32 %v3002, %v3003
        %v3005 = vsel %vm394, %v2938, 0.0
        %v3006 = vadd.f32 %v3004, %v3005
        %v3007 = vsel %vm394, %v2939, 0.0
        %v3008 = vadd.f32 %v3006, %v3007
        %v3009 = vsel %vm394, %v2940, 0.0
        %v3010 = vadd.f32 %v3008, %v3009
        %v3011 = vsel %vm394, %v2941, 0.0
        %v3012 = vadd.f32 %v3010, %v3011
        %v3013 = vsel %vm394, %v2942, 0.0
        %v3014 = vadd.f32 %v3012, %v3013
        %v3015 = vsel %vm394, %v2943, 0.0
        %v3016 = vadd.f32 %v3014, %v3015
        %v3017 = vsel %vm394, %v2944, 0.0
        %v3018 = vadd.f32 %v3016, %v3017
        %v3019 = vsel %vm394, %v2945, 0.0
        %v3020 = vadd.f32 %v3018, %v3019
        %v3021 = vsel %vm394, %v2946, 0.0
        %v3022 = vadd.f32 %v3020, %v3021
        %v3023 = vsel %vm394, %v2947, 0.0
        %v3024 = vadd.f32 %v3022, %v3023
        %v3025 = vsel %vm394, %v2948, 0.0
        %v3026 = vadd.f32 %v3024, %v3025
        %v3027 = vsel %vm394, %v2949, 0.0
        %v3028 = vadd.f32 %v3026, %v3027
        %v3029 = vsel %vm394, %v2950, 0.0
        %v3030 = vadd.f32 %v3028, %v3029
        %v3031 = vsel %vm394, %v2951, 0.0
        %v3032 = vadd.f32 %v3030, %v3031
        %v3033 = vsel %vm394, %v2952, 0.0
        %v3034 = vadd.f32 %v3032, %v3033
        %v3035 = vsel %vm394, %v2953, 0.0
        %v3036 = vadd.f32 %v3034, %v3035
        %v3037 = vsel %vm394, %v2954, 0.0
        %v3038 = vadd.f32 %v3036, %v3037
        %v3039 = vsel %vm394, %v2955, 0.0
        %v3040 = vadd.f32 %v3038, %v3039
        %v3041 = vsel %vm394, %v2956, 0.0
        %v3042 = vadd.f32 %v3040, %v3041
        %v3043 = vsel %vm394, %v2957, 0.0
        %v3044 = vadd.f32 %v3042, %v3043
        %v3045 = vsel %vm394, %v2958, 0.0
        %v3046 = vadd.f32 %v3044, %v3045
        %v3047 = vsel %vm394, %v2959, 0.0
        %v3048 = vadd.f32 %v3046, %v3047
        %v3049 = vsel %vm394, %v2960, 0.0
        %v3050 = vadd.f32 %v3048, %v3049
        %v3051 = vsel %vm394, %v2961, 0.0
        %v3052 = vadd.f32 %v3050, %v3051
        %v3053 = vsel %vm394, %v2962, 0.0
        %v3054 = vadd.f32 %v3052, %v3053
        %v3055 = vsel %vm394, %v2963, 0.0
        %v3056 = vadd.f32 %v3054, %v3055
        %v3057 = vsel %vm394, %v2964, 0.0
        %v3058 = vadd.f32 %v3056, %v3057
        %v3059 = vsel %vm394, %v2965, 0.0
        %v3060 = vadd.f32 %v3058, %v3059
        %v3061 = vsel %vm394, %v2966, 0.0
        %v3062 = vadd.f32 %v3060, %v3061
        %v3063 = vrot.slane %v3062, 4
        %v3064 = vadd.f32 %v3062, %v3063
        %v3065 = vrot.slane %v3064, 2
        %v3066 = vadd.f32 %v3064, %v3065
        %v3067 = vrot.slane %v3066, 1
        %v3068 = vadd.f32 %v3066, %v3067
        %v3069 = vadd.f32 %v2999, %v3068
        %vm3070 = vcmask 57344
        %3071 = vst.msk [vmem:[#allocation2] sm:$0x1] %vm3070, %v3069
        %v3072 = vld [vmem:[#allocation4] sm:$0x1]
        %v3073 = vmul.f32 %v2935, %v2935
        %v3074 = vmul.f32 %v2936, %v2936
        %v3075 = vmul.f32 %v2937, %v2937
        %v3076 = vmul.f32 %v2938, %v2938
        %v3077 = vmul.f32 %v2939, %v2939
        %v3078 = vmul.f32 %v2940, %v2940
        %v3079 = vmul.f32 %v2941, %v2941
        %v3080 = vmul.f32 %v2942, %v2942
        %v3081 = vmul.f32 %v2943, %v2943
        %v3082 = vmul.f32 %v2944, %v2944
        %v3083 = vmul.f32 %v2945, %v2945
        %v3084 = vmul.f32 %v2946, %v2946
        %v3085 = vmul.f32 %v2947, %v2947
        %v3086 = vmul.f32 %v2948, %v2948
        %v3087 = vmul.f32 %v2949, %v2949
        %v3088 = vmul.f32 %v2950, %v2950
        %v3089 = vmul.f32 %v2951, %v2951
        %v3090 = vmul.f32 %v2952, %v2952
        %v3091 = vmul.f32 %v2953, %v2953
        %v3092 = vmul.f32 %v2954, %v2954
        %v3093 = vmul.f32 %v2955, %v2955
        %v3094 = vmul.f32 %v2956, %v2956
        %v3095 = vmul.f32 %v2957, %v2957
        %v3096 = vmul.f32 %v2958, %v2958
        %v3097 = vmul.f32 %v2959, %v2959
        %v3098 = vmul.f32 %v2960, %v2960
        %v3099 = vmul.f32 %v2961, %v2961
        %v3100 = vmul.f32 %v2962, %v2962
        %v3101 = vmul.f32 %v2963, %v2963
        %v3102 = vmul.f32 %v2964, %v2964
        %v3103 = vmul.f32 %v2965, %v2965
        %v3104 = vmul.f32 %v2966, %v2966
        %v3105 = vsel %vm394, %v3073, 0.0
        %v3106 = vsel %vm394, %v3074, 0.0
        %v3107 = vadd.f32 %v3105, %v3106
        %v3108 = vsel %vm394, %v3075, 0.0
        %v3109 = vadd.f32 %v3107, %v3108
        %v3110 = vsel %vm394, %v3076, 0.0
        %v3111 = vadd.f32 %v3109, %v3110
        %v3112 = vsel %vm394, %v3077, 0.0
        %v3113 = vadd.f32 %v3111, %v3112
        %v3114 = vsel %vm394, %v3078, 0.0
        %v3115 = vadd.f32 %v3113, %v3114
        %v3116 = vsel %vm394, %v3079, 0.0
        %v3117 = vadd.f32 %v3115, %v3116
        %v3118 = vsel %vm394, %v3080, 0.0
        %v3119 = vadd.f32 %v3117, %v3118
        %v3120 = vsel %vm394, %v3081, 0.0
        %v3121 = vadd.f32 %v3119, %v3120
        %v3122 = vsel %vm394, %v3082, 0.0
        %v3123 = vadd.f32 %v3121, %v3122
        %v3124 = vsel %vm394, %v3083, 0.0
        %v3125 = vadd.f32 %v3123, %v3124
        %v3126 = vsel %vm394, %v3084, 0.0
        %v3127 = vadd.f32 %v3125, %v3126
        %v3128 = vsel %vm394, %v3085, 0.0
        %v3129 = vadd.f32 %v3127, %v3128
        %v3130 = vsel %vm394, %v3086, 0.0
        %v3131 = vadd.f32 %v3129, %v3130
        %v3132 = vsel %vm394, %v3087, 0.0
        %v3133 = vadd.f32 %v3131, %v3132
        %v3134 = vsel %vm394, %v3088, 0.0
        %v3135 = vadd.f32 %v3133, %v3134
        %v3136 = vsel %vm394, %v3089, 0.0
        %v3137 = vadd.f32 %v3135, %v3136
        %v3138 = vsel %vm394, %v3090, 0.0
        %v3139 = vadd.f32 %v3137, %v3138
        %v3140 = vsel %vm394, %v3091, 0.0
        %v3141 = vadd.f32 %v3139, %v3140
        %v3142 = vsel %vm394, %v3092, 0.0
        %v3143 = vadd.f32 %v3141, %v3142
        %v3144 = vsel %vm394, %v3093, 0.0
        %v3145 = vadd.f32 %v3143, %v3144
        %v3146 = vsel %vm394, %v3094, 0.0
        %v3147 = vadd.f32 %v3145, %v3146
        %v3148 = vsel %vm394, %v3095, 0.0
        %v3149 = vadd.f32 %v3147, %v3148
        %v3150 = vsel %vm394, %v3096, 0.0
        %v3151 = vadd.f32 %v3149, %v3150
        %v3152 = vsel %vm394, %v3097, 0.0
        %v3153 = vadd.f32 %v3151, %v3152
        %v3154 = vsel %vm394, %v3098, 0.0
        %v3155 = vadd.f32 %v3153, %v3154
        %v3156 = vsel %vm394, %v3099, 0.0
        %v3157 = vadd.f32 %v3155, %v3156
        %v3158 = vsel %vm394, %v3100, 0.0
        %v3159 = vadd.f32 %v3157, %v3158
        %v3160 = vsel %vm394, %v3101, 0.0
        %v3161 = vadd.f32 %v3159, %v3160
        %v3162 = vsel %vm394, %v3102, 0.0
        %v3163 = vadd.f32 %v3161, %v3162
        %v3164 = vsel %vm394, %v3103, 0.0
        %v3165 = vadd.f32 %v3163, %v3164
        %v3166 = vsel %vm394, %v3104, 0.0
        %v3167 = vadd.f32 %v3165, %v3166
        %v3168 = vrot.slane %v3167, 4
        %v3169 = vadd.f32 %v3167, %v3168
        %v3170 = vrot.slane %v3169, 2
        %v3171 = vadd.f32 %v3169, %v3170
        %v3172 = vrot.slane %v3171, 1
        %v3173 = vadd.f32 %v3171, %v3172
        %v3174 = vadd.f32 %v3072, %v3173
        %3175 = vst.msk [vmem:[#allocation4] sm:$0x1] %vm3070, %v3174
        %p3176 = scmp.lt.s32.totalorder %s18, 1
        %s3177 = scalar_select %p3176, %s18, 1
        %s3178 = smul.addr %s3177, 32
        %s3179 = smul.addr %s3178, 8
        %s3180 = scalar_lea.vmem %s2, %s3179
        // Predicated region
        $region33: #{tpu_custom_call.1} parent=27 // pred_check
          %p3181 = pneg %p83
        $region34: #{tpu_custom_call.1} parent=27 // pred_check_branch
          %3183 = sbr.rel (%p3181) target = $region36
        $region35: #{tpu_custom_call.1} parent=27 // pred_region
          _
        $region36: #{tpu_custom_call.1} parent=27 // pred_fallthru
          _
        // Predicated region
        $region37: #{tpu_custom_call.1} parent=27 // pred_check
          %p3184 = pneg %p104
        $region38: #{tpu_custom_call.1} parent=27 // pred_check_branch
          %3186 = sbr.rel (%p3184) target = $region40
        $region39: #{tpu_custom_call.1} parent=27 // pred_region
          %s3188 = ssub.s32 16, 16
          %3189 = vsyncadd [#allocation3], %s3188
          %s3191 = sshll.u32 [#allocation2], 4
          %s3192 = int_to_ptr.vmem [resolvable:$true] %s3191
          %3194 = dma.vmem_to_hbm [thread:$0]  %s3192, 16, %s3, [#allocation3]
        $region40: #{tpu_custom_call.1} parent=27 // pred_fallthru
          _
        // Predicated region
        $region41: #{tpu_custom_call.1} parent=27 // pred_check
          %p3195 = pneg %p125
        $region42: #{tpu_custom_call.1} parent=27 // pred_check_branch
          %3197 = sbr.rel (%p3195) target = $region44
        $region43: #{tpu_custom_call.1} parent=27 // pred_region
          %s3199 = ssub.s32 16, 16
          %3200 = vsyncadd [#allocation5], %s3199
          %s3202 = sshll.u32 [#allocation4], 4
          %s3203 = int_to_ptr.vmem [resolvable:$true] %s3202
          %3205 = dma.vmem_to_hbm [thread:$0]  %s3203, 16, %s4, [#allocation5]
        $region44: #{tpu_custom_call.1} parent=27 // pred_fallthru
          _
        // Predicated region
        $region45: #{tpu_custom_call.1} parent=27 // pred_check
          %p3206 = pneg %p104
        $region46: #{tpu_custom_call.1} parent=27 // pred_check_branch
          %3208 = sbr.rel (%p3206) target = $region48
        $region47: #{tpu_custom_call.1} parent=27 // pred_region
          %3209 = dma.done [#allocation3], 16
        $region48: #{tpu_custom_call.1} parent=27 // pred_fallthru
          _
        // Predicated region
        $region49: #{tpu_custom_call.1} parent=27 // pred_check
          %p3210 = pneg %p125
        $region50: #{tpu_custom_call.1} parent=27 // pred_check_branch
          %3212 = sbr.rel (%p3210) target = $region52
        $region51: #{tpu_custom_call.1} parent=27 // pred_region
          %3213 = dma.done [#allocation5], 16
        $region52: #{tpu_custom_call.1} parent=27 // pred_fallthru
          _
      $region28: #{tpu_custom_call.1} parent=5 // pred_fallthru
        _
      %p3214 = scmp.le.s32.totalorder 2, %s13
      // Predicated region
      $region53: #{tpu_custom_call.1} parent=5 // pred_check
        %p3215 = pneg %p3214
      $region54: #{tpu_custom_call.1} parent=5 // pred_check_branch
        %3217 = sbr.rel (%p3215) target = $region56
      $region55: #{tpu_custom_call.1} parent=5 // pred_region
        %s3218 = ssub.s32 %s13, 2
        // Predicated region
        $region57: #{tpu_custom_call.1} parent=55 // pred_check
          %p3219 = pneg %p89
        $region58: #{tpu_custom_call.1} parent=55 // pred_check_branch
          %3221 = sbr.rel (%p3219) target = $region60
        $region59: #{tpu_custom_call.1} parent=55 // pred_region
          %p3222 = scmp.lt.s32.totalorder %s19, 1
          %s3223 = scalar_select %p3222, %s19, 1
          %s3224 = smul.addr %s3223, 32
          %s3225 = smul.addr %s3224, 8
          %s3226 = scalar_lea.vmem %s2, %s3225
        $region60: #{tpu_custom_call.1} parent=55 // pred_fallthru
          _
      $region56: #{tpu_custom_call.1} parent=5 // pred_fallthru
        _
    $region6: #{tpu_custom_call.1} parent=1 // loop_footer
      %s17 = sadd.s32 1, %s13
    $region7: #{tpu_custom_call.1} parent=1 // loop_footer_branch
      %12 = sbr.rel target = $region3
    $region8: #{tpu_custom_call.1} parent=1 // loop_exit
      _
    %3227 = vsyncpa [#allocation3], 1
    %s3228 = scalar_lea.sflag [#allocation3], 1
    %3229 = vsyncpa %s3228, 1
    %3230 = vsyncpa [#allocation5], 1

</llo_original>
